<compile_context>
chip_gen: v5e
topology: v5e:2x2
jax: 0.10.0
libtpu: 0.0.40
codegen_flags: <defaults>
</compile_context>

<pallas_src>
import functools

import jax
import jax.numpy as jnp
from jax.experimental import pallas as pl
from jax.experimental.pallas import tpu as pltpu

GRID_SIZE = 5
SPLINE_ORDER = 3
GRID_RANGE = (-1.0, 1.0)
N_COEF = GRID_SIZE + SPLINE_ORDER  # b-spline basis functions per input feature
_KNOT_H = (GRID_RANGE[1] - GRID_RANGE[0]) / GRID_SIZE
# Uniform extended knot vector (identical for every input feature), baked in.
_GRID_VALS = tuple(GRID_RANGE[0] + _KNOT_H * i
                   for i in range(-SPLINE_ORDER, GRID_SIZE + SPLINE_ORDER + 1))


def aggregator_kernel(x_ref, wqkv_ref, bqkv_ref, ln_g_ref, ln_b_ref, kan_w_ref,
                      out_ref, *, hidden_dim, seq_len, batch_tile, kan_chunk,
                      mxu_dtype):
    H = hidden_dim
    S = seq_len
    TB = batch_tile
    KC = kan_chunk
    n_chunks = H // KC
    R = TB * S                         # rows per view in this grid step
    inv_sqrt_h = 1.0 / (float(H) ** 0.5)
    eps = 1e-5

    # ---- fused shared Q/K/V projection for all three views at once ---------
    x2d = x_ref[...].reshape(3 * R, H)                                   # (3R, H) f32
    qkv = jnp.dot(x2d.astype(mxu_dtype), wqkv_ref[...],
                  preferred_element_type=jnp.float32) + bqkv_ref[...]    # (3R, 3H)
    q = qkv[:, 0:H].reshape(3 * TB, S, H)
    k = qkv[:, H:2 * H].reshape(3 * TB, S, H)
    v = qkv[:, 2 * H:3 * H].reshape(3 * TB, S, H)

    # ---- per-(view, batch) self-attention -----------------------------------
    # (view-embedding score bias omitted: constant along key axis -> softmax no-op)
    # TODO(synk): for S >= ~512 block the key axis with an online (flash-style)
    # softmax instead of materializing the full (3*TB, S, S) score tile.
    scores = jnp.einsum('bqd,bkd->bqk',
                        q.astype(mxu_dtype), k.astype(mxu_dtype),
                        preferred_element_type=jnp.float32) * inv_sqrt_h
    scores = scores - jnp.max(scores, axis=-1, keepdims=True)
    p = jnp.exp(scores)
    attn = p / jnp.sum(p, axis=-1, keepdims=True)
    attended = jnp.einsum('bqk,bkd->bqd',
                          attn.astype(mxu_dtype), v.astype(mxu_dtype),
                          preferred_element_type=jnp.float32)            # (3TB, S, H)
    att2d = attended.reshape(3 * R, H)

    # ---- residual + per-view LayerNorm + KANLinear(3H -> H) -----------------
    acc = jnp.zeros((R, H), jnp.float32)
    n_init = len(_GRID_VALS) - 1
    for vw in range(3):
        y = att2d[vw * R:(vw + 1) * R] + x2d[vw * R:(vw + 1) * R]        # (R, H)
        mu = jnp.mean(y, axis=-1, keepdims=True)
        d = y - mu
        var = jnp.mean(d * d, axis=-1, keepdims=True)
        y_hat = d * jax.lax.rsqrt(var + eps)
        xv = y_hat * ln_g_ref[vw:vw + 1, :] + ln_b_ref[vw:vw + 1, :]     # (R, H) f32

        for ck in range(n_chunks):
            xc = xv[:, ck * KC:(ck + 1) * KC]                            # (R, KC)

            # base branch: SiLU(x) (efficient-kan KANLinear has no additive bias)
            silu = xc / (1.0 + jnp.exp(-xc))

            # spline branch: Cox-de Boor recursion.  Uniform knots:
            #   (G[j+kk] - G[j]) == kk*h  and  (G[j+kk+1]-x)/(kk*h) == 1 - u[j+1]
            bases = [((xc >= _GRID_VALS[j]) & (xc < _GRID_VALS[j + 1]))
                     .astype(jnp.float32)
                     for j in range(n_init)]
            for kk in range(1, SPLINE_ORDER + 1):
                inv_span = 1.0 / (kk * _KNOT_H)
                u = [(xc - _GRID_VALS[j]) * inv_span for j in range(len(bases))]
                bases = [u[j] * bases[j] + bases[j + 1] - u[j + 1] * bases[j + 1]
                         for j in range(len(bases) - 1)]

            # ONE big-K matmul per (view, chunk): [silu | basis_0 | ... | basis_7]
            # against the matching pre-stacked (9*KC, H) weight block.
            operand = jnp.concatenate(
                [silu.astype(mxu_dtype)] + [b.astype(mxu_dtype) for b in bases],
                axis=1)                                                  # (R, 9*KC)
            acc = acc + jnp.dot(operand, kan_w_ref[vw * n_chunks + ck],
                                preferred_element_type=jnp.float32)

    out_ref[...] = acc.reshape(TB, S, H).astype(out_ref.dtype)


def _pick_batch_tile(batch, seq, row_target=512, min_grid_steps=1):
    """Largest divisor of `batch` targeting ~row_target MXU rows (per view) per
    grid step.  Pass min_grid_steps=2 on v7x (2 TensorCores/chip) so the
    'parallel' grid axis can shard across both cores; keep 1 on v5e/v6e."""
    cap = min(batch, max(1, row_target // max(1, seq)))
    if min_grid_steps > 1:
        cap = min(cap, max(1, batch // min_grid_steps))
    for d in range(cap, 0, -1):
        if batch % d == 0:
            return d
    return 1


def _pick_kan_chunk(hidden, target=128):
    """Feature-chunk size for the spline basis.  KC=128 bounds the live basis
    working set (~11 x (R, KC) f32 vregs/VMEM) while the stacked KAN dot keeps
    K = 9*KC large enough to fill the MXU."""
    if hidden <= target:
        return hidden
    for c in range(target, 0, -1):
        if hidden % c == 0:
            return c
    return hidden


def prepare_params(params, kan_chunk=None, mxu_dtype=jnp.bfloat16):
    """Host-side prep: fold, transpose, stack and cast module params into kernel
    layout so the kernel never transposes, never concatenates weights, and MXU
    operands are bf16 (f32 accumulate).
    TODO(synk): on v7x the KAN weights could optionally be cast to fp8 (e4m3)
    for the fp8 MXU path; keep bf16 on v5e/v6e."""
    H = params["wq"].shape[0]
    KC = _pick_kan_chunk(H) if kan_chunk is None else kan_chunk
    assert H % KC == 0
    n_chunks = H // KC

    wqkv = jnp.concatenate([params["wq"].T, params["wk"].T, params["wv"].T],
                           axis=1).astype(mxu_dtype)                       # (H, 3H)
    bqkv = jnp.concatenate([params["bq"], params["bk"], params["bv"]],
                           axis=-1).reshape(1, 3 * H).astype(jnp.float32)  # (1, 3H)

    # KANLinear weights pre-stacked per (view, chunk): rows are
    # [base rows for the chunk; then the N_COEF spline-coefficient row groups],
    # already transposed to (in, out) and with the standalone scaler folded in.
    base_w_T = params["base_w"].T                                          # (3H, H)
    scaled = params["spline_weight"] * params["spline_scaler"][..., None]  # (H, 3H, C)
    spline_T = jnp.transpose(scaled, (2, 1, 0))                            # (C, 3H, H)
    blocks = []
    for vw in range(3):
        for ck in range(n_chunks):
            w0 = vw * H + ck * KC
            rows = [base_w_T[w0:w0 + KC]] + [spline_T[c, w0:w0 + KC]
                                             for c in range(N_COEF)]
            blocks.append(jnp.concatenate(rows, axis=0))                   # ((1+C)*KC, H)
    kan_w = jnp.stack(blocks, axis=0).astype(mxu_dtype)    # (3*n_chunks, (1+C)*KC, H)

    return {
        "wqkv": wqkv, "bqkv": bqkv,
        "ln_gamma": params["ln_gamma"].astype(jnp.float32),
        "ln_beta": params["ln_beta"].astype(jnp.float32),
        "kan_w": kan_w,
        # params["view_emb"] intentionally dropped: its attention-score bias is
        # constant along the key axis and cancels exactly in softmax.
    }


def multiview_aggregator(axial, sagittal, coronal, prep, *, min_grid_steps=1):
    B, S, H = axial.shape
    kc = prep["kan_w"].shape[1] // (N_COEF + 1)
    tb = _pick_batch_tile(B, S, min_grid_steps=min_grid_steps)
    mxu_dtype = prep["wqkv"].dtype

    # One stacked (3, B, S, H) token array: a single contiguous DMA stream per
    # grid step and no in-kernel (3R, H) concatenation copy for the QKV matmul.
    x_all = jnp.stack([axial, sagittal, coronal], axis=0)

    kernel = functools.partial(
        aggregator_kernel, hidden_dim=H, seq_len=S, batch_tile=tb,
        kan_chunk=kc, mxu_dtype=mxu_dtype)

    tok_spec = pl.BlockSpec((3, tb, S, H), lambda b: (0, b, 0, 0))
    param_list = [prep[k] for k in ("wqkv", "bqkv", "ln_gamma", "ln_beta", "kan_w")]
    # TODO(synk): on v7x (64 MiB VMEM) with H >= ~768, stream `kan_w` via
    # memory_space=pl.ANY + manual double-buffered pltpu.make_async_copy per
    # (view, chunk) block and single-buffer the grid-invariant weights
    # (pipeline_mode=pl.Buffered(1)); kept VMEM-resident here.
    param_specs = [pl.BlockSpec(p.shape, lambda b, nd=p.ndim: (0,) * nd)
                   for p in param_list]

    # TODO(synk): emit bf16 output (out_shape dtype) if downstream tolerates it,
    # and use H multiple of 128 in production for unmasked lane-dense stores.
    return pl.pallas_call(
        kernel,
        out_shape=jax.ShapeDtypeStruct((B, S, H), jnp.float32),
        grid_spec=pltpu.PrefetchScalarGridSpec(
            num_scalar_prefetch=0,
            grid=(B // tb,),
            in_specs=[tok_spec] + param_specs,
            out_specs=pl.BlockSpec((tb, S, H), lambda b: (b, 0, 0)),
        ),
        compiler_params=pltpu.CompilerParams(
            dimension_semantics=("parallel",),
            vmem_limit_bytes=48 * 1024 * 1024,
        ),
    )(x_all, *param_list)


def init_params(key, hidden_dim):
    """Module-layout (PyTorch-like) parameters."""
    H = hidden_dim
    ks = jax.random.split(key, 10)

    def lin_w(k, out_f, in_f):
        bound = 1.0 / (in_f ** 0.5)
        return jax.random.uniform(k, (out_f, in_f), jnp.float32, -bound, bound)

    return {
        "wq": lin_w(ks[0], H, H), "bq": lin_w(ks[1], 1, H),
        "wk": lin_w(ks[2], H, H), "bk": lin_w(ks[3], 1, H),
        "wv": lin_w(ks[4], H, H), "bv": lin_w(ks[5], 1, H),
        # nn.Embedding(3, H): present for parity but mathematically unused
        # (its attention-score contribution is softmax-invariant).
        "view_emb": jax.random.normal(ks[6], (3, H), jnp.float32),
        "ln_gamma": jnp.ones((3, H), jnp.float32),   # axial / sagittal / coronal
        "ln_beta": jnp.zeros((3, H), jnp.float32),
        "base_w": lin_w(ks[7], H, 3 * H),
        "spline_weight": 0.1 * jax.random.normal(ks[8], (H, 3 * H, N_COEF), jnp.float32),
        "spline_scaler": lin_w(ks[9], H, 3 * H),
    }


def reference_forward(axial, sagittal, coronal, params):
    """Pure-JAX f32 reference of the PyTorch module (efficient-kan KANLinear),
    including the (softmax-invariant) view-embedding score bias."""
    H = axial.shape[-1]
    eps = 1e-5
    view_outs = []
    for vw, x in enumerate((axial, sagittal, coronal)):
        q = x @ params["wq"].T + params["bq"]
        k = x @ params["wk"].T + params["bk"]
        v = x @ params["wv"].T + params["bv"]
        scores = jnp.einsum('bqd,bkd->bqk', q, k) / jnp.sqrt(jnp.float32(H))
        scores = scores + jnp.einsum('bqd,d->bq', q, params["view_emb"][vw])[..., None]
        attn = jax.nn.softmax(scores, axis=-1)
        attended = jnp.einsum('bqk,bkd->bqd', attn, v)
        y = attended + x
        mu = jnp.mean(y, axis=-1, keepdims=True)
        d = y - mu
        var = jnp.mean(d * d, axis=-1, keepdims=True)
        y_hat = d / jnp.sqrt(var + eps)
        view_outs.append(y_hat * params["ln_gamma"][vw] + params["ln_beta"][vw])
    xcat = jnp.concatenate(view_outs, axis=-1)                 # (B, S, 3H)
    B, S, _ = xcat.shape
    xf = xcat.reshape(-1, 3 * H)

    grid = jnp.asarray(_GRID_VALS, jnp.float32)
    xe = xf[..., None]
    bases = ((xe >= grid[:-1]) & (xe < grid[1:])).astype(jnp.float32)
    for kk in range(1, SPLINE_ORDER + 1):
        bases = ((xe - grid[:-(kk + 1)]) / (grid[kk:-1] - grid[:-(kk + 1)])
                 * bases[..., :-1]
                 + (grid[kk + 1:] - xe) / (grid[kk + 1:] - grid[1:-kk])
                 * bases[..., 1:])
    base_out = jax.nn.silu(xf) @ params["base_w"].T
    scaled = params["spline_weight"] * params["spline_scaler"][..., None]
    spline_out = jnp.einsum('nic,oic->no', bases, scaled)
    return (base_out + spline_out).reshape(B, S, H)


if __name__ == "__main__":
    # TODO(synk): production shapes should use H (and 3H) multiples of 128 for
    # lane-dense tiles and unmasked output stores; test shape kept small.
    B, S, H = 2, 8, 32
    key = jax.random.PRNGKey(0)
    k_ax, k_sg, k_co, k_par = jax.random.split(key, 4)

    axial = jax.random.normal(k_ax, (B, S, H), jnp.float32)
    sagittal = jax.random.normal(k_sg, (B, S, H), jnp.float32)
    coronal = jax.random.normal(k_co, (B, S, H), jnp.float32)

    params = init_params(k_par, H)
    prep = prepare_params(params, mxu_dtype=jnp.bfloat16)

    fused = multiview_aggregator(axial, sagittal, coronal, prep)
    fused = jax.block_until_ready(fused)

    assert fused.shape == (B, S, H)
    assert bool(jnp.all(jnp.isfinite(fused)))

    ref = reference_forward(axial, sagittal, coronal, params)
    max_err = float(jnp.max(jnp.abs(fused - ref)))
    assert bool(jnp.allclose(fused, ref, atol=5e-2, rtol=5e-2)), max_err

    print("KERNEL_OK")
</pallas_src>

<mosaic_0001>
module attributes {stable_mosaic.version = 11 : i64} {
  func.func @aggregator_kernel(%arg0: i32, %arg1: memref<3x2x8x32xf32, #tpu.memory_space<vmem>>, %arg2: memref<32x96xbf16, #tpu.memory_space<vmem>>, %arg3: memref<1x96xf32, #tpu.memory_space<vmem>>, %arg4: memref<3x32xf32, #tpu.memory_space<vmem>>, %arg5: memref<3x32xf32, #tpu.memory_space<vmem>>, %arg6: memref<3x288x32xbf16, #tpu.memory_space<vmem>>, %arg7: memref<2x8x32xf32, #tpu.memory_space<vmem>>) attributes {dimension_semantics = [#tpu.dimension_semantics<parallel>], iteration_bounds = array<i64: 1>, scalar_prefetch = 0 : i64, scratch_operands = 0 : i64, tpu.core_type = #tpu.core_type<tc>, window_params = [{transform_indices = @transform_0, window_bounds = array<i64: 3, 2, 8, 32>}, {pipeline_mode = #tpu.pipeline_mode<synchronous>, transform_indices = @transform_1, window_bounds = array<i64: 32, 96>}, {pipeline_mode = #tpu.pipeline_mode<synchronous>, transform_indices = @transform_2, window_bounds = array<i64: 1, 96>}, {pipeline_mode = #tpu.pipeline_mode<synchronous>, transform_indices = @transform_3, window_bounds = array<i64: 3, 32>}, {pipeline_mode = #tpu.pipeline_mode<synchronous>, transform_indices = @transform_4, window_bounds = array<i64: 3, 32>}, {pipeline_mode = #tpu.pipeline_mode<synchronous>, transform_indices = @transform_5, window_bounds = array<i64: 3, 288, 32>}, {transform_indices = @transform_6, window_bounds = array<i64: 2, 8, 32>}]} {
    %c0 = arith.constant 0 : index
    %c0_0 = arith.constant 0 : index
    %c0_1 = arith.constant 0 : index
    %c0_2 = arith.constant 0 : index
    %0 = vector.load %arg1[%c0, %c0_0, %c0_1, %c0_2] : memref<3x2x8x32xf32, #tpu.memory_space<vmem>>, vector<3x2x8x32xf32>
    %1 = vector.shape_cast %0 : vector<3x2x8x32xf32> to vector<48x32xf32>
    %2 = arith.truncf %1 : vector<48x32xf32> to vector<48x32xbf16>
    %c0_3 = arith.constant 0 : index
    %c0_4 = arith.constant 0 : index
    %3 = vector.load %arg2[%c0_3, %c0_4] : memref<32x96xbf16, #tpu.memory_space<vmem>>, vector<32x96xbf16>
    %cst = arith.constant dense<0.000000e+00> : vector<48x96xf32>
    %4 = tpu.matmul %2, %3, %cst {dimension_numbers = #tpu.dot_dimension_numbers<[1], [0], [0], [1], [0, 0, 1, 1], [], []>} : vector<48x32xbf16>, vector<32x96xbf16>, vector<48x96xf32> -> vector<48x96xf32>
    %c0_5 = arith.constant 0 : index
    %c0_6 = arith.constant 0 : index
    %5 = vector.load %arg3[%c0_5, %c0_6] : memref<1x96xf32, #tpu.memory_space<vmem>>, vector<1x96xf32>
    %6 = vector.broadcast %5 : vector<1x96xf32> to vector<48x96xf32>
    %7 = arith.addf %4, %6 : vector<48x96xf32>
    %8 = vector.extract_strided_slice %7 {offsets = [0, 0], sizes = [48, 32], strides = [1, 1]} : vector<48x96xf32> to vector<48x32xf32>
    %9 = vector.shape_cast %8 : vector<48x32xf32> to vector<6x8x32xf32>
    %10 = vector.extract_strided_slice %7 {offsets = [0, 32], sizes = [48, 32], strides = [1, 1]} : vector<48x96xf32> to vector<48x32xf32>
    %11 = vector.shape_cast %10 : vector<48x32xf32> to vector<6x8x32xf32>
    %12 = vector.extract_strided_slice %7 {offsets = [0, 64], sizes = [48, 32], strides = [1, 1]} : vector<48x96xf32> to vector<48x32xf32>
    %13 = vector.shape_cast %12 : vector<48x32xf32> to vector<6x8x32xf32>
    %14 = arith.truncf %9 : vector<6x8x32xf32> to vector<6x8x32xbf16>
    %15 = arith.truncf %11 : vector<6x8x32xf32> to vector<6x8x32xbf16>
    "tpu.trace_start"() <{level = 10 : i32, message = "bqd,bkd->bqk"}> : () -> ()
    %cst_7 = arith.constant dense<0.000000e+00> : vector<6x8x8xf32>
    %16 = tpu.matmul %14, %15, %cst_7 {dimension_numbers = #tpu.dot_dimension_numbers<[2], [2], [1], [1], [0, 0, 0, 1, 1, 1], [0], [0]>} : vector<6x8x32xbf16>, vector<6x8x32xbf16>, vector<6x8x8xf32> -> vector<6x8x8xf32>
    "tpu.trace_stop"() : () -> ()
    %cst_8 = arith.constant 0.176776692 : f32
    %17 = vector.broadcast %cst_8 : f32 to vector<6x8x8xf32>
    %18 = arith.mulf %16, %17 : vector<6x8x8xf32>
    %cst_9 = arith.constant dense<0xFF800000> : vector<6x8xf32>
    %19 = vector.multi_reduction <maximumf>, %18, %cst_9 [2] : vector<6x8x8xf32> to vector<6x8xf32>
    %20 = vector.shape_cast %19 : vector<6x8xf32> to vector<6x8x1xf32>
    %21 = vector.broadcast %20 : vector<6x8x1xf32> to vector<6x8x8xf32>
    %22 = arith.subf %18, %21 : vector<6x8x8xf32>
    %23 = math.exp %22 : vector<6x8x8xf32>
    %cst_10 = arith.constant dense<0.000000e+00> : vector<6x8xf32>
    %24 = vector.multi_reduction <add>, %23, %cst_10 [2] : vector<6x8x8xf32> to vector<6x8xf32>
    %25 = vector.shape_cast %24 : vector<6x8xf32> to vector<6x8x1xf32>
    %26 = vector.broadcast %25 : vector<6x8x1xf32> to vector<6x8x8xf32>
    %27 = arith.divf %23, %26 : vector<6x8x8xf32>
    %28 = arith.truncf %27 : vector<6x8x8xf32> to vector<6x8x8xbf16>
    %29 = arith.truncf %13 : vector<6x8x32xf32> to vector<6x8x32xbf16>
    "tpu.trace_start"() <{level = 10 : i32, message = "bqk,bkd->bqd"}> : () -> ()
    %cst_11 = arith.constant dense<0.000000e+00> : vector<6x8x32xf32>
    %30 = tpu.matmul %28, %29, %cst_11 {dimension_numbers = #tpu.dot_dimension_numbers<[2], [1], [1], [2], [0, 0, 0, 1, 1, 2], [0], [0]>} : vector<6x8x8xbf16>, vector<6x8x32xbf16>, vector<6x8x32xf32> -> vector<6x8x32xf32>
    "tpu.trace_stop"() : () -> ()
    %31 = vector.shape_cast %30 : vector<6x8x32xf32> to vector<48x32xf32>
    %cst_12 = arith.constant 0.000000e+00 : f32
    %32 = vector.broadcast %cst_12 : f32 to vector<16x32xf32>
    %33 = vector.extract_strided_slice %31 {offsets = [0, 0], sizes = [16, 32], strides = [1, 1]} : vector<48x32xf32> to vector<16x32xf32>
    %34 = vector.extract_strided_slice %1 {offsets = [0, 0], sizes = [16, 32], strides = [1, 1]} : vector<48x32xf32> to vector<16x32xf32>
    %35 = arith.addf %33, %34 : vector<16x32xf32>
    %cst_13 = arith.constant dense<0.000000e+00> : vector<16xf32>
    %36 = vector.multi_reduction <add>, %35, %cst_13 [1] : vector<16x32xf32> to vector<16xf32>
    %37 = vector.shape_cast %36 : vector<16xf32> to vector<16x1xf32>
    %cst_14 = arith.constant 3.200000e+01 : f32
    %38 = vector.broadcast %cst_14 : f32 to vector<16x1xf32>
    %39 = arith.divf %37, %38 : vector<16x1xf32>
    %40 = vector.broadcast %39 : vector<16x1xf32> to vector<16x32xf32>
    %41 = arith.subf %35, %40 : vector<16x32xf32>
    %42 = arith.mulf %41, %41 : vector<16x32xf32>
    %cst_15 = arith.constant dense<0.000000e+00> : vector<16xf32>
    %43 = vector.multi_reduction <add>, %42, %cst_15 [1] : vector<16x32xf32> to vector<16xf32>
    %44 = vector.shape_cast %43 : vector<16xf32> to vector<16x1xf32>
    %cst_16 = arith.constant 3.200000e+01 : f32
    %45 = vector.broadcast %cst_16 : f32 to vector<16x1xf32>
    %46 = arith.divf %44, %45 : vector<16x1xf32>
    %cst_17 = arith.constant 9.99999974E-6 : f32
    %47 = vector.broadcast %cst_17 : f32 to vector<16x1xf32>
    %48 = arith.addf %46, %47 : vector<16x1xf32>
    %49 = math.rsqrt %48 : vector<16x1xf32>
    %50 = vector.broadcast %49 : vector<16x1xf32> to vector<16x32xf32>
    %51 = arith.mulf %41, %50 : vector<16x32xf32>
    %c0_18 = arith.constant 0 : index
    %c0_19 = arith.constant 0 : index
    %52 = vector.load %arg4[%c0_18, %c0_19] : memref<3x32xf32, #tpu.memory_space<vmem>>, vector<1x32xf32>
    %53 = vector.broadcast %52 : vector<1x32xf32> to vector<16x32xf32>
    %54 = arith.mulf %51, %53 : vector<16x32xf32>
    %c0_20 = arith.constant 0 : index
    %c0_21 = arith.constant 0 : index
    %55 = vector.load %arg5[%c0_20, %c0_21] : memref<3x32xf32, #tpu.memory_space<vmem>>, vector<1x32xf32>
    %56 = vector.broadcast %55 : vector<1x32xf32> to vector<16x32xf32>
    %57 = arith.addf %54, %56 : vector<16x32xf32>
    %cst_22 = arith.constant 0.000000e+00 : f32
    %58 = vector.broadcast %cst_22 : f32 to vector<16x32xf32>
    %59 = arith.subf %58, %57 : vector<16x32xf32>
    %60 = math.exp %59 : vector<16x32xf32>
    %cst_23 = arith.constant 1.000000e+00 : f32
    %61 = vector.broadcast %cst_23 : f32 to vector<16x32xf32>
    %62 = arith.addf %61, %60 : vector<16x32xf32>
    %63 = arith.divf %57, %62 : vector<16x32xf32>
    %cst_24 = arith.constant -2.200000e+00 : f32
    %64 = vector.broadcast %cst_24 : f32 to vector<16x32xf32>
    %65 = arith.cmpf oge, %57, %64 : vector<16x32xf32>
    %cst_25 = arith.constant -1.800000e+00 : f32
    %66 = vector.broadcast %cst_25 : f32 to vector<16x32xf32>
    %67 = arith.cmpf olt, %57, %66 : vector<16x32xf32>
    %68 = arith.andi %65, %67 : vector<16x32xi1>
    %69 = arith.extui %68 : vector<16x32xi1> to vector<16x32xi32>
    %70 = arith.sitofp %69 : vector<16x32xi32> to vector<16x32xf32>
    %cst_26 = arith.constant -1.800000e+00 : f32
    %71 = vector.broadcast %cst_26 : f32 to vector<16x32xf32>
    %72 = arith.cmpf oge, %57, %71 : vector<16x32xf32>
    %cst_27 = arith.constant -1.400000e+00 : f32
    %73 = vector.broadcast %cst_27 : f32 to vector<16x32xf32>
    %74 = arith.cmpf olt, %57, %73 : vector<16x32xf32>
    %75 = arith.andi %72, %74 : vector<16x32xi1>
    %76 = arith.extui %75 : vector<16x32xi1> to vector<16x32xi32>
    %77 = arith.sitofp %76 : vector<16x32xi32> to vector<16x32xf32>
    %cst_28 = arith.constant -1.400000e+00 : f32
    %78 = vector.broadcast %cst_28 : f32 to vector<16x32xf32>
    %79 = arith.cmpf oge, %57, %78 : vector<16x32xf32>
    %cst_29 = arith.constant -1.000000e+00 : f32
    %80 = vector.broadcast %cst_29 : f32 to vector<16x32xf32>
    %81 = arith.cmpf olt, %57, %80 : vector<16x32xf32>
    %82 = arith.andi %79, %81 : vector<16x32xi1>
    %83 = arith.extui %82 : vector<16x32xi1> to vector<16x32xi32>
    %84 = arith.sitofp %83 : vector<16x32xi32> to vector<16x32xf32>
    %cst_30 = arith.constant -1.000000e+00 : f32
    %85 = vector.broadcast %cst_30 : f32 to vector<16x32xf32>
    %86 = arith.cmpf oge, %57, %85 : vector<16x32xf32>
    %cst_31 = arith.constant -6.000000e-01 : f32
    %87 = vector.broadcast %cst_31 : f32 to vector<16x32xf32>
    %88 = arith.cmpf olt, %57, %87 : vector<16x32xf32>
    %89 = arith.andi %86, %88 : vector<16x32xi1>
    %90 = arith.extui %89 : vector<16x32xi1> to vector<16x32xi32>
    %91 = arith.sitofp %90 : vector<16x32xi32> to vector<16x32xf32>
    %cst_32 = arith.constant -6.000000e-01 : f32
    %92 = vector.broadcast %cst_32 : f32 to vector<16x32xf32>
    %93 = arith.cmpf oge, %57, %92 : vector<16x32xf32>
    %cst_33 = arith.constant -2.000000e-01 : f32
    %94 = vector.broadcast %cst_33 : f32 to vector<16x32xf32>
    %95 = arith.cmpf olt, %57, %94 : vector<16x32xf32>
    %96 = arith.andi %93, %95 : vector<16x32xi1>
    %97 = arith.extui %96 : vector<16x32xi1> to vector<16x32xi32>
    %98 = arith.sitofp %97 : vector<16x32xi32> to vector<16x32xf32>
    %cst_34 = arith.constant -2.000000e-01 : f32
    %99 = vector.broadcast %cst_34 : f32 to vector<16x32xf32>
    %100 = arith.cmpf oge, %57, %99 : vector<16x32xf32>
    %cst_35 = arith.constant 2.000000e-01 : f32
    %101 = vector.broadcast %cst_35 : f32 to vector<16x32xf32>
    %102 = arith.cmpf olt, %57, %101 : vector<16x32xf32>
    %103 = arith.andi %100, %102 : vector<16x32xi1>
    %104 = arith.extui %103 : vector<16x32xi1> to vector<16x32xi32>
    %105 = arith.sitofp %104 : vector<16x32xi32> to vector<16x32xf32>
    %cst_36 = arith.constant 2.000000e-01 : f32
    %106 = vector.broadcast %cst_36 : f32 to vector<16x32xf32>
    %107 = arith.cmpf oge, %57, %106 : vector<16x32xf32>
    %cst_37 = arith.constant 6.000000e-01 : f32
    %108 = vector.broadcast %cst_37 : f32 to vector<16x32xf32>
    %109 = arith.cmpf olt, %57, %108 : vector<16x32xf32>
    %110 = arith.andi %107, %109 : vector<16x32xi1>
    %111 = arith.extui %110 : vector<16x32xi1> to vector<16x32xi32>
    %112 = arith.sitofp %111 : vector<16x32xi32> to vector<16x32xf32>
    %cst_38 = arith.constant 6.000000e-01 : f32
    %113 = vector.broadcast %cst_38 : f32 to vector<16x32xf32>
    %114 = arith.cmpf oge, %57, %113 : vector<16x32xf32>
    %cst_39 = arith.constant 1.000000e+00 : f32
    %115 = vector.broadcast %cst_39 : f32 to vector<16x32xf32>
    %116 = arith.cmpf olt, %57, %115 : vector<16x32xf32>
    %117 = arith.andi %114, %116 : vector<16x32xi1>
    %118 = arith.extui %117 : vector<16x32xi1> to vector<16x32xi32>
    %119 = arith.sitofp %118 : vector<16x32xi32> to vector<16x32xf32>
    %cst_40 = arith.constant 1.000000e+00 : f32
    %120 = vector.broadcast %cst_40 : f32 to vector<16x32xf32>
    %121 = arith.cmpf oge, %57, %120 : vector<16x32xf32>
    %cst_41 = arith.constant 1.400000e+00 : f32
    %122 = vector.broadcast %cst_41 : f32 to vector<16x32xf32>
    %123 = arith.cmpf olt, %57, %122 : vector<16x32xf32>
    %124 = arith.andi %121, %123 : vector<16x32xi1>
    %125 = arith.extui %124 : vector<16x32xi1> to vector<16x32xi32>
    %126 = arith.sitofp %125 : vector<16x32xi32> to vector<16x32xf32>
    %cst_42 = arith.constant 1.400000e+00 : f32
    %127 = vector.broadcast %cst_42 : f32 to vector<16x32xf32>
    %128 = arith.cmpf oge, %57, %127 : vector<16x32xf32>
    %cst_43 = arith.constant 1.800000e+00 : f32
    %129 = vector.broadcast %cst_43 : f32 to vector<16x32xf32>
    %130 = arith.cmpf olt, %57, %129 : vector<16x32xf32>
    %131 = arith.andi %128, %130 : vector<16x32xi1>
    %132 = arith.extui %131 : vector<16x32xi1> to vector<16x32xi32>
    %133 = arith.sitofp %132 : vector<16x32xi32> to vector<16x32xf32>
    %cst_44 = arith.constant 1.800000e+00 : f32
    %134 = vector.broadcast %cst_44 : f32 to vector<16x32xf32>
    %135 = arith.cmpf oge, %57, %134 : vector<16x32xf32>
    %cst_45 = arith.constant 2.200000e+00 : f32
    %136 = vector.broadcast %cst_45 : f32 to vector<16x32xf32>
    %137 = arith.cmpf olt, %57, %136 : vector<16x32xf32>
    %138 = arith.andi %135, %137 : vector<16x32xi1>
    %139 = arith.extui %138 : vector<16x32xi1> to vector<16x32xi32>
    %140 = arith.sitofp %139 : vector<16x32xi32> to vector<16x32xf32>
    %cst_46 = arith.constant -2.200000e+00 : f32
    %141 = vector.broadcast %cst_46 : f32 to vector<16x32xf32>
    %142 = arith.subf %57, %141 : vector<16x32xf32>
    %cst_47 = arith.constant 2.500000e+00 : f32
    %143 = vector.broadcast %cst_47 : f32 to vector<16x32xf32>
    %144 = arith.mulf %142, %143 : vector<16x32xf32>
    %cst_48 = arith.constant -1.800000e+00 : f32
    %145 = vector.broadcast %cst_48 : f32 to vector<16x32xf32>
    %146 = arith.subf %57, %145 : vector<16x32xf32>
    %cst_49 = arith.constant 2.500000e+00 : f32
    %147 = vector.broadcast %cst_49 : f32 to vector<16x32xf32>
    %148 = arith.mulf %146, %147 : vector<16x32xf32>
    %cst_50 = arith.constant -1.400000e+00 : f32
    %149 = vector.broadcast %cst_50 : f32 to vector<16x32xf32>
    %150 = arith.subf %57, %149 : vector<16x32xf32>
    %cst_51 = arith.constant 2.500000e+00 : f32
    %151 = vector.broadcast %cst_51 : f32 to vector<16x32xf32>
    %152 = arith.mulf %150, %151 : vector<16x32xf32>
    %cst_52 = arith.constant -1.000000e+00 : f32
    %153 = vector.broadcast %cst_52 : f32 to vector<16x32xf32>
    %154 = arith.subf %57, %153 : vector<16x32xf32>
    %cst_53 = arith.constant 2.500000e+00 : f32
    %155 = vector.broadcast %cst_53 : f32 to vector<16x32xf32>
    %156 = arith.mulf %154, %155 : vector<16x32xf32>
    %cst_54 = arith.constant -6.000000e-01 : f32
    %157 = vector.broadcast %cst_54 : f32 to vector<16x32xf32>
    %158 = arith.subf %57, %157 : vector<16x32xf32>
    %cst_55 = arith.constant 2.500000e+00 : f32
    %159 = vector.broadcast %cst_55 : f32 to vector<16x32xf32>
    %160 = arith.mulf %158, %159 : vector<16x32xf32>
    %cst_56 = arith.constant -2.000000e-01 : f32
    %161 = vector.broadcast %cst_56 : f32 to vector<16x32xf32>
    %162 = arith.subf %57, %161 : vector<16x32xf32>
    %cst_57 = arith.constant 2.500000e+00 : f32
    %163 = vector.broadcast %cst_57 : f32 to vector<16x32xf32>
    %164 = arith.mulf %162, %163 : vector<16x32xf32>
    %cst_58 = arith.constant 2.000000e-01 : f32
    %165 = vector.broadcast %cst_58 : f32 to vector<16x32xf32>
    %166 = arith.subf %57, %165 : vector<16x32xf32>
    %cst_59 = arith.constant 2.500000e+00 : f32
    %167 = vector.broadcast %cst_59 : f32 to vector<16x32xf32>
    %168 = arith.mulf %166, %167 : vector<16x32xf32>
    %cst_60 = arith.constant 6.000000e-01 : f32
    %169 = vector.broadcast %cst_60 : f32 to vector<16x32xf32>
    %170 = arith.subf %57, %169 : vector<16x32xf32>
    %cst_61 = arith.constant 2.500000e+00 : f32
    %171 = vector.broadcast %cst_61 : f32 to vector<16x32xf32>
    %172 = arith.mulf %170, %171 : vector<16x32xf32>
    %cst_62 = arith.constant 1.000000e+00 : f32
    %173 = vector.broadcast %cst_62 : f32 to vector<16x32xf32>
    %174 = arith.subf %57, %173 : vector<16x32xf32>
    %cst_63 = arith.constant 2.500000e+00 : f32
    %175 = vector.broadcast %cst_63 : f32 to vector<16x32xf32>
    %176 = arith.mulf %174, %175 : vector<16x32xf32>
    %cst_64 = arith.constant 1.400000e+00 : f32
    %177 = vector.broadcast %cst_64 : f32 to vector<16x32xf32>
    %178 = arith.subf %57, %177 : vector<16x32xf32>
    %cst_65 = arith.constant 2.500000e+00 : f32
    %179 = vector.broadcast %cst_65 : f32 to vector<16x32xf32>
    %180 = arith.mulf %178, %179 : vector<16x32xf32>
    %cst_66 = arith.constant 1.800000e+00 : f32
    %181 = vector.broadcast %cst_66 : f32 to vector<16x32xf32>
    %182 = arith.subf %57, %181 : vector<16x32xf32>
    %cst_67 = arith.constant 2.500000e+00 : f32
    %183 = vector.broadcast %cst_67 : f32 to vector<16x32xf32>
    %184 = arith.mulf %182, %183 : vector<16x32xf32>
    %185 = arith.mulf %144, %70 : vector<16x32xf32>
    %186 = arith.addf %185, %77 : vector<16x32xf32>
    %187 = arith.mulf %148, %77 : vector<16x32xf32>
    %188 = arith.subf %186, %187 : vector<16x32xf32>
    %189 = arith.mulf %148, %77 : vector<16x32xf32>
    %190 = arith.addf %189, %84 : vector<16x32xf32>
    %191 = arith.mulf %152, %84 : vector<16x32xf32>
    %192 = arith.subf %190, %191 : vector<16x32xf32>
    %193 = arith.mulf %152, %84 : vector<16x32xf32>
    %194 = arith.addf %193, %91 : vector<16x32xf32>
    %195 = arith.mulf %156, %91 : vector<16x32xf32>
    %196 = arith.subf %194, %195 : vector<16x32xf32>
    %197 = arith.mulf %156, %91 : vector<16x32xf32>
    %198 = arith.addf %197, %98 : vector<16x32xf32>
    %199 = arith.mulf %160, %98 : vector<16x32xf32>
    %200 = arith.subf %198, %199 : vector<16x32xf32>
    %201 = arith.mulf %160, %98 : vector<16x32xf32>
    %202 = arith.addf %201, %105 : vector<16x32xf32>
    %203 = arith.mulf %164, %105 : vector<16x32xf32>
    %204 = arith.subf %202, %203 : vector<16x32xf32>
    %205 = arith.mulf %164, %105 : vector<16x32xf32>
    %206 = arith.addf %205, %112 : vector<16x32xf32>
    %207 = arith.mulf %168, %112 : vector<16x32xf32>
    %208 = arith.subf %206, %207 : vector<16x32xf32>
    %209 = arith.mulf %168, %112 : vector<16x32xf32>
    %210 = arith.addf %209, %119 : vector<16x32xf32>
    %211 = arith.mulf %172, %119 : vector<16x32xf32>
    %212 = arith.subf %210, %211 : vector<16x32xf32>
    %213 = arith.mulf %172, %119 : vector<16x32xf32>
    %214 = arith.addf %213, %126 : vector<16x32xf32>
    %215 = arith.mulf %176, %126 : vector<16x32xf32>
    %216 = arith.subf %214, %215 : vector<16x32xf32>
    %217 = arith.mulf %176, %126 : vector<16x32xf32>
    %218 = arith.addf %217, %133 : vector<16x32xf32>
    %219 = arith.mulf %180, %133 : vector<16x32xf32>
    %220 = arith.subf %218, %219 : vector<16x32xf32>
    %221 = arith.mulf %180, %133 : vector<16x32xf32>
    %222 = arith.addf %221, %140 : vector<16x32xf32>
    %223 = arith.mulf %184, %140 : vector<16x32xf32>
    %224 = arith.subf %222, %223 : vector<16x32xf32>
    %cst_68 = arith.constant -2.200000e+00 : f32
    %225 = vector.broadcast %cst_68 : f32 to vector<16x32xf32>
    %226 = arith.subf %57, %225 : vector<16x32xf32>
    %cst_69 = arith.constant 1.250000e+00 : f32
    %227 = vector.broadcast %cst_69 : f32 to vector<16x32xf32>
    %228 = arith.mulf %226, %227 : vector<16x32xf32>
    %cst_70 = arith.constant -1.800000e+00 : f32
    %229 = vector.broadcast %cst_70 : f32 to vector<16x32xf32>
    %230 = arith.subf %57, %229 : vector<16x32xf32>
    %cst_71 = arith.constant 1.250000e+00 : f32
    %231 = vector.broadcast %cst_71 : f32 to vector<16x32xf32>
    %232 = arith.mulf %230, %231 : vector<16x32xf32>
    %cst_72 = arith.constant -1.400000e+00 : f32
    %233 = vector.broadcast %cst_72 : f32 to vector<16x32xf32>
    %234 = arith.subf %57, %233 : vector<16x32xf32>
    %cst_73 = arith.constant 1.250000e+00 : f32
    %235 = vector.broadcast %cst_73 : f32 to vector<16x32xf32>
    %236 = arith.mulf %234, %235 : vector<16x32xf32>
    %cst_74 = arith.constant -1.000000e+00 : f32
    %237 = vector.broadcast %cst_74 : f32 to vector<16x32xf32>
    %238 = arith.subf %57, %237 : vector<16x32xf32>
    %cst_75 = arith.constant 1.250000e+00 : f32
    %239 = vector.broadcast %cst_75 : f32 to vector<16x32xf32>
    %240 = arith.mulf %238, %239 : vector<16x32xf32>
    %cst_76 = arith.constant -6.000000e-01 : f32
    %241 = vector.broadcast %cst_76 : f32 to vector<16x32xf32>
    %242 = arith.subf %57, %241 : vector<16x32xf32>
    %cst_77 = arith.constant 1.250000e+00 : f32
    %243 = vector.broadcast %cst_77 : f32 to vector<16x32xf32>
    %244 = arith.mulf %242, %243 : vector<16x32xf32>
    %cst_78 = arith.constant -2.000000e-01 : f32
    %245 = vector.broadcast %cst_78 : f32 to vector<16x32xf32>
    %246 = arith.subf %57, %245 : vector<16x32xf32>
    %cst_79 = arith.constant 1.250000e+00 : f32
    %247 = vector.broadcast %cst_79 : f32 to vector<16x32xf32>
    %248 = arith.mulf %246, %247 : vector<16x32xf32>
    %cst_80 = arith.constant 2.000000e-01 : f32
    %249 = vector.broadcast %cst_80 : f32 to vector<16x32xf32>
    %250 = arith.subf %57, %249 : vector<16x32xf32>
    %cst_81 = arith.constant 1.250000e+00 : f32
    %251 = vector.broadcast %cst_81 : f32 to vector<16x32xf32>
    %252 = arith.mulf %250, %251 : vector<16x32xf32>
    %cst_82 = arith.constant 6.000000e-01 : f32
    %253 = vector.broadcast %cst_82 : f32 to vector<16x32xf32>
    %254 = arith.subf %57, %253 : vector<16x32xf32>
    %cst_83 = arith.constant 1.250000e+00 : f32
    %255 = vector.broadcast %cst_83 : f32 to vector<16x32xf32>
    %256 = arith.mulf %254, %255 : vector<16x32xf32>
    %cst_84 = arith.constant 1.000000e+00 : f32
    %257 = vector.broadcast %cst_84 : f32 to vector<16x32xf32>
    %258 = arith.subf %57, %257 : vector<16x32xf32>
    %cst_85 = arith.constant 1.250000e+00 : f32
    %259 = vector.broadcast %cst_85 : f32 to vector<16x32xf32>
    %260 = arith.mulf %258, %259 : vector<16x32xf32>
    %cst_86 = arith.constant 1.400000e+00 : f32
    %261 = vector.broadcast %cst_86 : f32 to vector<16x32xf32>
    %262 = arith.subf %57, %261 : vector<16x32xf32>
    %cst_87 = arith.constant 1.250000e+00 : f32
    %263 = vector.broadcast %cst_87 : f32 to vector<16x32xf32>
    %264 = arith.mulf %262, %263 : vector<16x32xf32>
    %265 = arith.mulf %228, %188 : vector<16x32xf32>
    %266 = arith.addf %265, %192 : vector<16x32xf32>
    %267 = arith.mulf %232, %192 : vector<16x32xf32>
    %268 = arith.subf %266, %267 : vector<16x32xf32>
    %269 = arith.mulf %232, %192 : vector<16x32xf32>
    %270 = arith.addf %269, %196 : vector<16x32xf32>
    %271 = arith.mulf %236, %196 : vector<16x32xf32>
    %272 = arith.subf %270, %271 : vector<16x32xf32>
    %273 = arith.mulf %236, %196 : vector<16x32xf32>
    %274 = arith.addf %273, %200 : vector<16x32xf32>
    %275 = arith.mulf %240, %200 : vector<16x32xf32>
    %276 = arith.subf %274, %275 : vector<16x32xf32>
    %277 = arith.mulf %240, %200 : vector<16x32xf32>
    %278 = arith.addf %277, %204 : vector<16x32xf32>
    %279 = arith.mulf %244, %204 : vector<16x32xf32>
    %280 = arith.subf %278, %279 : vector<16x32xf32>
    %281 = arith.mulf %244, %204 : vector<16x32xf32>
    %282 = arith.addf %281, %208 : vector<16x32xf32>
    %283 = arith.mulf %248, %208 : vector<16x32xf32>
    %284 = arith.subf %282, %283 : vector<16x32xf32>
    %285 = arith.mulf %248, %208 : vector<16x32xf32>
    %286 = arith.addf %285, %212 : vector<16x32xf32>
    %287 = arith.mulf %252, %212 : vector<16x32xf32>
    %288 = arith.subf %286, %287 : vector<16x32xf32>
    %289 = arith.mulf %252, %212 : vector<16x32xf32>
    %290 = arith.addf %289, %216 : vector<16x32xf32>
    %291 = arith.mulf %256, %216 : vector<16x32xf32>
    %292 = arith.subf %290, %291 : vector<16x32xf32>
    %293 = arith.mulf %256, %216 : vector<16x32xf32>
    %294 = arith.addf %293, %220 : vector<16x32xf32>
    %295 = arith.mulf %260, %220 : vector<16x32xf32>
    %296 = arith.subf %294, %295 : vector<16x32xf32>
    %297 = arith.mulf %260, %220 : vector<16x32xf32>
    %298 = arith.addf %297, %224 : vector<16x32xf32>
    %299 = arith.mulf %264, %224 : vector<16x32xf32>
    %300 = arith.subf %298, %299 : vector<16x32xf32>
    %cst_88 = arith.constant -2.200000e+00 : f32
    %301 = vector.broadcast %cst_88 : f32 to vector<16x32xf32>
    %302 = arith.subf %57, %301 : vector<16x32xf32>
    %cst_89 = arith.constant 0.833333313 : f32
    %303 = vector.broadcast %cst_89 : f32 to vector<16x32xf32>
    %304 = arith.mulf %302, %303 : vector<16x32xf32>
    %cst_90 = arith.constant -1.800000e+00 : f32
    %305 = vector.broadcast %cst_90 : f32 to vector<16x32xf32>
    %306 = arith.subf %57, %305 : vector<16x32xf32>
    %cst_91 = arith.constant 0.833333313 : f32
    %307 = vector.broadcast %cst_91 : f32 to vector<16x32xf32>
    %308 = arith.mulf %306, %307 : vector<16x32xf32>
    %cst_92 = arith.constant -1.400000e+00 : f32
    %309 = vector.broadcast %cst_92 : f32 to vector<16x32xf32>
    %310 = arith.subf %57, %309 : vector<16x32xf32>
    %cst_93 = arith.constant 0.833333313 : f32
    %311 = vector.broadcast %cst_93 : f32 to vector<16x32xf32>
    %312 = arith.mulf %310, %311 : vector<16x32xf32>
    %cst_94 = arith.constant -1.000000e+00 : f32
    %313 = vector.broadcast %cst_94 : f32 to vector<16x32xf32>
    %314 = arith.subf %57, %313 : vector<16x32xf32>
    %cst_95 = arith.constant 0.833333313 : f32
    %315 = vector.broadcast %cst_95 : f32 to vector<16x32xf32>
    %316 = arith.mulf %314, %315 : vector<16x32xf32>
    %cst_96 = arith.constant -6.000000e-01 : f32
    %317 = vector.broadcast %cst_96 : f32 to vector<16x32xf32>
    %318 = arith.subf %57, %317 : vector<16x32xf32>
    %cst_97 = arith.constant 0.833333313 : f32
    %319 = vector.broadcast %cst_97 : f32 to vector<16x32xf32>
    %320 = arith.mulf %318, %319 : vector<16x32xf32>
    %cst_98 = arith.constant -2.000000e-01 : f32
    %321 = vector.broadcast %cst_98 : f32 to vector<16x32xf32>
    %322 = arith.subf %57, %321 : vector<16x32xf32>
    %cst_99 = arith.constant 0.833333313 : f32
    %323 = vector.broadcast %cst_99 : f32 to vector<16x32xf32>
    %324 = arith.mulf %322, %323 : vector<16x32xf32>
    %cst_100 = arith.constant 2.000000e-01 : f32
    %325 = vector.broadcast %cst_100 : f32 to vector<16x32xf32>
    %326 = arith.subf %57, %325 : vector<16x32xf32>
    %cst_101 = arith.constant 0.833333313 : f32
    %327 = vector.broadcast %cst_101 : f32 to vector<16x32xf32>
    %328 = arith.mulf %326, %327 : vector<16x32xf32>
    %cst_102 = arith.constant 6.000000e-01 : f32
    %329 = vector.broadcast %cst_102 : f32 to vector<16x32xf32>
    %330 = arith.subf %57, %329 : vector<16x32xf32>
    %cst_103 = arith.constant 0.833333313 : f32
    %331 = vector.broadcast %cst_103 : f32 to vector<16x32xf32>
    %332 = arith.mulf %330, %331 : vector<16x32xf32>
    %cst_104 = arith.constant 1.000000e+00 : f32
    %333 = vector.broadcast %cst_104 : f32 to vector<16x32xf32>
    %334 = arith.subf %57, %333 : vector<16x32xf32>
    %cst_105 = arith.constant 0.833333313 : f32
    %335 = vector.broadcast %cst_105 : f32 to vector<16x32xf32>
    %336 = arith.mulf %334, %335 : vector<16x32xf32>
    %337 = arith.mulf %304, %268 : vector<16x32xf32>
    %338 = arith.addf %337, %272 : vector<16x32xf32>
    %339 = arith.mulf %308, %272 : vector<16x32xf32>
    %340 = arith.subf %338, %339 : vector<16x32xf32>
    %341 = arith.mulf %308, %272 : vector<16x32xf32>
    %342 = arith.addf %341, %276 : vector<16x32xf32>
    %343 = arith.mulf %312, %276 : vector<16x32xf32>
    %344 = arith.subf %342, %343 : vector<16x32xf32>
    %345 = arith.mulf %312, %276 : vector<16x32xf32>
    %346 = arith.addf %345, %280 : vector<16x32xf32>
    %347 = arith.mulf %316, %280 : vector<16x32xf32>
    %348 = arith.subf %346, %347 : vector<16x32xf32>
    %349 = arith.mulf %316, %280 : vector<16x32xf32>
    %350 = arith.addf %349, %284 : vector<16x32xf32>
    %351 = arith.mulf %320, %284 : vector<16x32xf32>
    %352 = arith.subf %350, %351 : vector<16x32xf32>
    %353 = arith.mulf %320, %284 : vector<16x32xf32>
    %354 = arith.addf %353, %288 : vector<16x32xf32>
    %355 = arith.mulf %324, %288 : vector<16x32xf32>
    %356 = arith.subf %354, %355 : vector<16x32xf32>
    %357 = arith.mulf %324, %288 : vector<16x32xf32>
    %358 = arith.addf %357, %292 : vector<16x32xf32>
    %359 = arith.mulf %328, %292 : vector<16x32xf32>
    %360 = arith.subf %358, %359 : vector<16x32xf32>
    %361 = arith.mulf %328, %292 : vector<16x32xf32>
    %362 = arith.addf %361, %296 : vector<16x32xf32>
    %363 = arith.mulf %332, %296 : vector<16x32xf32>
    %364 = arith.subf %362, %363 : vector<16x32xf32>
    %365 = arith.mulf %332, %296 : vector<16x32xf32>
    %366 = arith.addf %365, %300 : vector<16x32xf32>
    %367 = arith.mulf %336, %300 : vector<16x32xf32>
    %368 = arith.subf %366, %367 : vector<16x32xf32>
    %369 = arith.truncf %63 : vector<16x32xf32> to vector<16x32xbf16>
    %370 = arith.truncf %340 : vector<16x32xf32> to vector<16x32xbf16>
    %371 = arith.truncf %344 : vector<16x32xf32> to vector<16x32xbf16>
    %372 = arith.truncf %348 : vector<16x32xf32> to vector<16x32xbf16>
    %373 = arith.truncf %352 : vector<16x32xf32> to vector<16x32xbf16>
    %374 = arith.truncf %356 : vector<16x32xf32> to vector<16x32xbf16>
    %375 = arith.truncf %360 : vector<16x32xf32> to vector<16x32xbf16>
    %376 = arith.truncf %364 : vector<16x32xf32> to vector<16x32xbf16>
    %377 = arith.truncf %368 : vector<16x32xf32> to vector<16x32xbf16>
    %378 = tpu.concatenate %369, %370, %371, %372, %373, %374, %375, %376, %377 in 1 : vector<16x32xbf16>, vector<16x32xbf16>, vector<16x32xbf16>, vector<16x32xbf16>, vector<16x32xbf16>, vector<16x32xbf16>, vector<16x32xbf16>, vector<16x32xbf16>, vector<16x32xbf16> -> vector<16x288xbf16>
    %c0_106 = arith.constant 0 : index
    %c0_107 = arith.constant 0 : index
    %c0_108 = arith.constant 0 : index
    %379 = vector.load %arg6[%c0_106, %c0_107, %c0_108] : memref<3x288x32xbf16, #tpu.memory_space<vmem>>, vector<1x288x32xbf16>
    %380 = vector.shape_cast %379 : vector<1x288x32xbf16> to vector<288x32xbf16>
    %cst_109 = arith.constant dense<0.000000e+00> : vector<16x32xf32>
    %381 = tpu.matmul %378, %380, %cst_109 {dimension_numbers = #tpu.dot_dimension_numbers<[1], [0], [0], [1], [0, 0, 1, 1], [], []>} : vector<16x288xbf16>, vector<288x32xbf16>, vector<16x32xf32> -> vector<16x32xf32>
    %382 = arith.addf %32, %381 : vector<16x32xf32>
    %383 = vector.extract_strided_slice %31 {offsets = [16, 0], sizes = [16, 32], strides = [1, 1]} : vector<48x32xf32> to vector<16x32xf32>
    %384 = vector.extract_strided_slice %1 {offsets = [16, 0], sizes = [16, 32], strides = [1, 1]} : vector<48x32xf32> to vector<16x32xf32>
    %385 = arith.addf %383, %384 : vector<16x32xf32>
    %cst_110 = arith.constant dense<0.000000e+00> : vector<16xf32>
    %386 = vector.multi_reduction <add>, %385, %cst_110 [1] : vector<16x32xf32> to vector<16xf32>
    %387 = vector.shape_cast %386 : vector<16xf32> to vector<16x1xf32>
    %cst_111 = arith.constant 3.200000e+01 : f32
    %388 = vector.broadcast %cst_111 : f32 to vector<16x1xf32>
    %389 = arith.divf %387, %388 : vector<16x1xf32>
    %390 = vector.broadcast %389 : vector<16x1xf32> to vector<16x32xf32>
    %391 = arith.subf %385, %390 : vector<16x32xf32>
    %392 = arith.mulf %391, %391 : vector<16x32xf32>
    %cst_112 = arith.constant dense<0.000000e+00> : vector<16xf32>
    %393 = vector.multi_reduction <add>, %392, %cst_112 [1] : vector<16x32xf32> to vector<16xf32>
    %394 = vector.shape_cast %393 : vector<16xf32> to vector<16x1xf32>
    %cst_113 = arith.constant 3.200000e+01 : f32
    %395 = vector.broadcast %cst_113 : f32 to vector<16x1xf32>
    %396 = arith.divf %394, %395 : vector<16x1xf32>
    %cst_114 = arith.constant 9.99999974E-6 : f32
    %397 = vector.broadcast %cst_114 : f32 to vector<16x1xf32>
    %398 = arith.addf %396, %397 : vector<16x1xf32>
    %399 = math.rsqrt %398 : vector<16x1xf32>
    %400 = vector.broadcast %399 : vector<16x1xf32> to vector<16x32xf32>
    %401 = arith.mulf %391, %400 : vector<16x32xf32>
    %c1 = arith.constant 1 : index
    %c0_115 = arith.constant 0 : index
    %402 = vector.load %arg4[%c1, %c0_115] : memref<3x32xf32, #tpu.memory_space<vmem>>, vector<1x32xf32>
    %403 = vector.broadcast %402 : vector<1x32xf32> to vector<16x32xf32>
    %404 = arith.mulf %401, %403 : vector<16x32xf32>
    %c1_116 = arith.constant 1 : index
    %c0_117 = arith.constant 0 : index
    %405 = vector.load %arg5[%c1_116, %c0_117] : memref<3x32xf32, #tpu.memory_space<vmem>>, vector<1x32xf32>
    %406 = vector.broadcast %405 : vector<1x32xf32> to vector<16x32xf32>
    %407 = arith.addf %404, %406 : vector<16x32xf32>
    %cst_118 = arith.constant 0.000000e+00 : f32
    %408 = vector.broadcast %cst_118 : f32 to vector<16x32xf32>
    %409 = arith.subf %408, %407 : vector<16x32xf32>
    %410 = math.exp %409 : vector<16x32xf32>
    %cst_119 = arith.constant 1.000000e+00 : f32
    %411 = vector.broadcast %cst_119 : f32 to vector<16x32xf32>
    %412 = arith.addf %411, %410 : vector<16x32xf32>
    %413 = arith.divf %407, %412 : vector<16x32xf32>
    %cst_120 = arith.constant -2.200000e+00 : f32
    %414 = vector.broadcast %cst_120 : f32 to vector<16x32xf32>
    %415 = arith.cmpf oge, %407, %414 : vector<16x32xf32>
    %cst_121 = arith.constant -1.800000e+00 : f32
    %416 = vector.broadcast %cst_121 : f32 to vector<16x32xf32>
    %417 = arith.cmpf olt, %407, %416 : vector<16x32xf32>
    %418 = arith.andi %415, %417 : vector<16x32xi1>
    %419 = arith.extui %418 : vector<16x32xi1> to vector<16x32xi32>
    %420 = arith.sitofp %419 : vector<16x32xi32> to vector<16x32xf32>
    %cst_122 = arith.constant -1.800000e+00 : f32
    %421 = vector.broadcast %cst_122 : f32 to vector<16x32xf32>
    %422 = arith.cmpf oge, %407, %421 : vector<16x32xf32>
    %cst_123 = arith.constant -1.400000e+00 : f32
    %423 = vector.broadcast %cst_123 : f32 to vector<16x32xf32>
    %424 = arith.cmpf olt, %407, %423 : vector<16x32xf32>
    %425 = arith.andi %422, %424 : vector<16x32xi1>
    %426 = arith.extui %425 : vector<16x32xi1> to vector<16x32xi32>
    %427 = arith.sitofp %426 : vector<16x32xi32> to vector<16x32xf32>
    %cst_124 = arith.constant -1.400000e+00 : f32
    %428 = vector.broadcast %cst_124 : f32 to vector<16x32xf32>
    %429 = arith.cmpf oge, %407, %428 : vector<16x32xf32>
    %cst_125 = arith.constant -1.000000e+00 : f32
    %430 = vector.broadcast %cst_125 : f32 to vector<16x32xf32>
    %431 = arith.cmpf olt, %407, %430 : vector<16x32xf32>
    %432 = arith.andi %429, %431 : vector<16x32xi1>
    %433 = arith.extui %432 : vector<16x32xi1> to vector<16x32xi32>
    %434 = arith.sitofp %433 : vector<16x32xi32> to vector<16x32xf32>
    %cst_126 = arith.constant -1.000000e+00 : f32
    %435 = vector.broadcast %cst_126 : f32 to vector<16x32xf32>
    %436 = arith.cmpf oge, %407, %435 : vector<16x32xf32>
    %cst_127 = arith.constant -6.000000e-01 : f32
    %437 = vector.broadcast %cst_127 : f32 to vector<16x32xf32>
    %438 = arith.cmpf olt, %407, %437 : vector<16x32xf32>
    %439 = arith.andi %436, %438 : vector<16x32xi1>
    %440 = arith.extui %439 : vector<16x32xi1> to vector<16x32xi32>
    %441 = arith.sitofp %440 : vector<16x32xi32> to vector<16x32xf32>
    %cst_128 = arith.constant -6.000000e-01 : f32
    %442 = vector.broadcast %cst_128 : f32 to vector<16x32xf32>
    %443 = arith.cmpf oge, %407, %442 : vector<16x32xf32>
    %cst_129 = arith.constant -2.000000e-01 : f32
    %444 = vector.broadcast %cst_129 : f32 to vector<16x32xf32>
    %445 = arith.cmpf olt, %407, %444 : vector<16x32xf32>
    %446 = arith.andi %443, %445 : vector<16x32xi1>
    %447 = arith.extui %446 : vector<16x32xi1> to vector<16x32xi32>
    %448 = arith.sitofp %447 : vector<16x32xi32> to vector<16x32xf32>
    %cst_130 = arith.constant -2.000000e-01 : f32
    %449 = vector.broadcast %cst_130 : f32 to vector<16x32xf32>
    %450 = arith.cmpf oge, %407, %449 : vector<16x32xf32>
    %cst_131 = arith.constant 2.000000e-01 : f32
    %451 = vector.broadcast %cst_131 : f32 to vector<16x32xf32>
    %452 = arith.cmpf olt, %407, %451 : vector<16x32xf32>
    %453 = arith.andi %450, %452 : vector<16x32xi1>
    %454 = arith.extui %453 : vector<16x32xi1> to vector<16x32xi32>
    %455 = arith.sitofp %454 : vector<16x32xi32> to vector<16x32xf32>
    %cst_132 = arith.constant 2.000000e-01 : f32
    %456 = vector.broadcast %cst_132 : f32 to vector<16x32xf32>
    %457 = arith.cmpf oge, %407, %456 : vector<16x32xf32>
    %cst_133 = arith.constant 6.000000e-01 : f32
    %458 = vector.broadcast %cst_133 : f32 to vector<16x32xf32>
    %459 = arith.cmpf olt, %407, %458 : vector<16x32xf32>
    %460 = arith.andi %457, %459 : vector<16x32xi1>
    %461 = arith.extui %460 : vector<16x32xi1> to vector<16x32xi32>
    %462 = arith.sitofp %461 : vector<16x32xi32> to vector<16x32xf32>
    %cst_134 = arith.constant 6.000000e-01 : f32
    %463 = vector.broadcast %cst_134 : f32 to vector<16x32xf32>
    %464 = arith.cmpf oge, %407, %463 : vector<16x32xf32>
    %cst_135 = arith.constant 1.000000e+00 : f32
    %465 = vector.broadcast %cst_135 : f32 to vector<16x32xf32>
    %466 = arith.cmpf olt, %407, %465 : vector<16x32xf32>
    %467 = arith.andi %464, %466 : vector<16x32xi1>
    %468 = arith.extui %467 : vector<16x32xi1> to vector<16x32xi32>
    %469 = arith.sitofp %468 : vector<16x32xi32> to vector<16x32xf32>
    %cst_136 = arith.constant 1.000000e+00 : f32
    %470 = vector.broadcast %cst_136 : f32 to vector<16x32xf32>
    %471 = arith.cmpf oge, %407, %470 : vector<16x32xf32>
    %cst_137 = arith.constant 1.400000e+00 : f32
    %472 = vector.broadcast %cst_137 : f32 to vector<16x32xf32>
    %473 = arith.cmpf olt, %407, %472 : vector<16x32xf32>
    %474 = arith.andi %471, %473 : vector<16x32xi1>
    %475 = arith.extui %474 : vector<16x32xi1> to vector<16x32xi32>
    %476 = arith.sitofp %475 : vector<16x32xi32> to vector<16x32xf32>
    %cst_138 = arith.constant 1.400000e+00 : f32
    %477 = vector.broadcast %cst_138 : f32 to vector<16x32xf32>
    %478 = arith.cmpf oge, %407, %477 : vector<16x32xf32>
    %cst_139 = arith.constant 1.800000e+00 : f32
    %479 = vector.broadcast %cst_139 : f32 to vector<16x32xf32>
    %480 = arith.cmpf olt, %407, %479 : vector<16x32xf32>
    %481 = arith.andi %478, %480 : vector<16x32xi1>
    %482 = arith.extui %481 : vector<16x32xi1> to vector<16x32xi32>
    %483 = arith.sitofp %482 : vector<16x32xi32> to vector<16x32xf32>
    %cst_140 = arith.constant 1.800000e+00 : f32
    %484 = vector.broadcast %cst_140 : f32 to vector<16x32xf32>
    %485 = arith.cmpf oge, %407, %484 : vector<16x32xf32>
    %cst_141 = arith.constant 2.200000e+00 : f32
    %486 = vector.broadcast %cst_141 : f32 to vector<16x32xf32>
    %487 = arith.cmpf olt, %407, %486 : vector<16x32xf32>
    %488 = arith.andi %485, %487 : vector<16x32xi1>
    %489 = arith.extui %488 : vector<16x32xi1> to vector<16x32xi32>
    %490 = arith.sitofp %489 : vector<16x32xi32> to vector<16x32xf32>
    %cst_142 = arith.constant -2.200000e+00 : f32
    %491 = vector.broadcast %cst_142 : f32 to vector<16x32xf32>
    %492 = arith.subf %407, %491 : vector<16x32xf32>
    %cst_143 = arith.constant 2.500000e+00 : f32
    %493 = vector.broadcast %cst_143 : f32 to vector<16x32xf32>
    %494 = arith.mulf %492, %493 : vector<16x32xf32>
    %cst_144 = arith.constant -1.800000e+00 : f32
    %495 = vector.broadcast %cst_144 : f32 to vector<16x32xf32>
    %496 = arith.subf %407, %495 : vector<16x32xf32>
    %cst_145 = arith.constant 2.500000e+00 : f32
    %497 = vector.broadcast %cst_145 : f32 to vector<16x32xf32>
    %498 = arith.mulf %496, %497 : vector<16x32xf32>
    %cst_146 = arith.constant -1.400000e+00 : f32
    %499 = vector.broadcast %cst_146 : f32 to vector<16x32xf32>
    %500 = arith.subf %407, %499 : vector<16x32xf32>
    %cst_147 = arith.constant 2.500000e+00 : f32
    %501 = vector.broadcast %cst_147 : f32 to vector<16x32xf32>
    %502 = arith.mulf %500, %501 : vector<16x32xf32>
    %cst_148 = arith.constant -1.000000e+00 : f32
    %503 = vector.broadcast %cst_148 : f32 to vector<16x32xf32>
    %504 = arith.subf %407, %503 : vector<16x32xf32>
    %cst_149 = arith.constant 2.500000e+00 : f32
    %505 = vector.broadcast %cst_149 : f32 to vector<16x32xf32>
    %506 = arith.mulf %504, %505 : vector<16x32xf32>
    %cst_150 = arith.constant -6.000000e-01 : f32
    %507 = vector.broadcast %cst_150 : f32 to vector<16x32xf32>
    %508 = arith.subf %407, %507 : vector<16x32xf32>
    %cst_151 = arith.constant 2.500000e+00 : f32
    %509 = vector.broadcast %cst_151 : f32 to vector<16x32xf32>
    %510 = arith.mulf %508, %509 : vector<16x32xf32>
    %cst_152 = arith.constant -2.000000e-01 : f32
    %511 = vector.broadcast %cst_152 : f32 to vector<16x32xf32>
    %512 = arith.subf %407, %511 : vector<16x32xf32>
    %cst_153 = arith.constant 2.500000e+00 : f32
    %513 = vector.broadcast %cst_153 : f32 to vector<16x32xf32>
    %514 = arith.mulf %512, %513 : vector<16x32xf32>
    %cst_154 = arith.constant 2.000000e-01 : f32
    %515 = vector.broadcast %cst_154 : f32 to vector<16x32xf32>
    %516 = arith.subf %407, %515 : vector<16x32xf32>
    %cst_155 = arith.constant 2.500000e+00 : f32
    %517 = vector.broadcast %cst_155 : f32 to vector<16x32xf32>
    %518 = arith.mulf %516, %517 : vector<16x32xf32>
    %cst_156 = arith.constant 6.000000e-01 : f32
    %519 = vector.broadcast %cst_156 : f32 to vector<16x32xf32>
    %520 = arith.subf %407, %519 : vector<16x32xf32>
    %cst_157 = arith.constant 2.500000e+00 : f32
    %521 = vector.broadcast %cst_157 : f32 to vector<16x32xf32>
    %522 = arith.mulf %520, %521 : vector<16x32xf32>
    %cst_158 = arith.constant 1.000000e+00 : f32
    %523 = vector.broadcast %cst_158 : f32 to vector<16x32xf32>
    %524 = arith.subf %407, %523 : vector<16x32xf32>
    %cst_159 = arith.constant 2.500000e+00 : f32
    %525 = vector.broadcast %cst_159 : f32 to vector<16x32xf32>
    %526 = arith.mulf %524, %525 : vector<16x32xf32>
    %cst_160 = arith.constant 1.400000e+00 : f32
    %527 = vector.broadcast %cst_160 : f32 to vector<16x32xf32>
    %528 = arith.subf %407, %527 : vector<16x32xf32>
    %cst_161 = arith.constant 2.500000e+00 : f32
    %529 = vector.broadcast %cst_161 : f32 to vector<16x32xf32>
    %530 = arith.mulf %528, %529 : vector<16x32xf32>
    %cst_162 = arith.constant 1.800000e+00 : f32
    %531 = vector.broadcast %cst_162 : f32 to vector<16x32xf32>
    %532 = arith.subf %407, %531 : vector<16x32xf32>
    %cst_163 = arith.constant 2.500000e+00 : f32
    %533 = vector.broadcast %cst_163 : f32 to vector<16x32xf32>
    %534 = arith.mulf %532, %533 : vector<16x32xf32>
    %535 = arith.mulf %494, %420 : vector<16x32xf32>
    %536 = arith.addf %535, %427 : vector<16x32xf32>
    %537 = arith.mulf %498, %427 : vector<16x32xf32>
    %538 = arith.subf %536, %537 : vector<16x32xf32>
    %539 = arith.mulf %498, %427 : vector<16x32xf32>
    %540 = arith.addf %539, %434 : vector<16x32xf32>
    %541 = arith.mulf %502, %434 : vector<16x32xf32>
    %542 = arith.subf %540, %541 : vector<16x32xf32>
    %543 = arith.mulf %502, %434 : vector<16x32xf32>
    %544 = arith.addf %543, %441 : vector<16x32xf32>
    %545 = arith.mulf %506, %441 : vector<16x32xf32>
    %546 = arith.subf %544, %545 : vector<16x32xf32>
    %547 = arith.mulf %506, %441 : vector<16x32xf32>
    %548 = arith.addf %547, %448 : vector<16x32xf32>
    %549 = arith.mulf %510, %448 : vector<16x32xf32>
    %550 = arith.subf %548, %549 : vector<16x32xf32>
    %551 = arith.mulf %510, %448 : vector<16x32xf32>
    %552 = arith.addf %551, %455 : vector<16x32xf32>
    %553 = arith.mulf %514, %455 : vector<16x32xf32>
    %554 = arith.subf %552, %553 : vector<16x32xf32>
    %555 = arith.mulf %514, %455 : vector<16x32xf32>
    %556 = arith.addf %555, %462 : vector<16x32xf32>
    %557 = arith.mulf %518, %462 : vector<16x32xf32>
    %558 = arith.subf %556, %557 : vector<16x32xf32>
    %559 = arith.mulf %518, %462 : vector<16x32xf32>
    %560 = arith.addf %559, %469 : vector<16x32xf32>
    %561 = arith.mulf %522, %469 : vector<16x32xf32>
    %562 = arith.subf %560, %561 : vector<16x32xf32>
    %563 = arith.mulf %522, %469 : vector<16x32xf32>
    %564 = arith.addf %563, %476 : vector<16x32xf32>
    %565 = arith.mulf %526, %476 : vector<16x32xf32>
    %566 = arith.subf %564, %565 : vector<16x32xf32>
    %567 = arith.mulf %526, %476 : vector<16x32xf32>
    %568 = arith.addf %567, %483 : vector<16x32xf32>
    %569 = arith.mulf %530, %483 : vector<16x32xf32>
    %570 = arith.subf %568, %569 : vector<16x32xf32>
    %571 = arith.mulf %530, %483 : vector<16x32xf32>
    %572 = arith.addf %571, %490 : vector<16x32xf32>
    %573 = arith.mulf %534, %490 : vector<16x32xf32>
    %574 = arith.subf %572, %573 : vector<16x32xf32>
    %cst_164 = arith.constant -2.200000e+00 : f32
    %575 = vector.broadcast %cst_164 : f32 to vector<16x32xf32>
    %576 = arith.subf %407, %575 : vector<16x32xf32>
    %cst_165 = arith.constant 1.250000e+00 : f32
    %577 = vector.broadcast %cst_165 : f32 to vector<16x32xf32>
    %578 = arith.mulf %576, %577 : vector<16x32xf32>
    %cst_166 = arith.constant -1.800000e+00 : f32
    %579 = vector.broadcast %cst_166 : f32 to vector<16x32xf32>
    %580 = arith.subf %407, %579 : vector<16x32xf32>
    %cst_167 = arith.constant 1.250000e+00 : f32
    %581 = vector.broadcast %cst_167 : f32 to vector<16x32xf32>
    %582 = arith.mulf %580, %581 : vector<16x32xf32>
    %cst_168 = arith.constant -1.400000e+00 : f32
    %583 = vector.broadcast %cst_168 : f32 to vector<16x32xf32>
    %584 = arith.subf %407, %583 : vector<16x32xf32>
    %cst_169 = arith.constant 1.250000e+00 : f32
    %585 = vector.broadcast %cst_169 : f32 to vector<16x32xf32>
    %586 = arith.mulf %584, %585 : vector<16x32xf32>
    %cst_170 = arith.constant -1.000000e+00 : f32
    %587 = vector.broadcast %cst_170 : f32 to vector<16x32xf32>
    %588 = arith.subf %407, %587 : vector<16x32xf32>
    %cst_171 = arith.constant 1.250000e+00 : f32
    %589 = vector.broadcast %cst_171 : f32 to vector<16x32xf32>
    %590 = arith.mulf %588, %589 : vector<16x32xf32>
    %cst_172 = arith.constant -6.000000e-01 : f32
    %591 = vector.broadcast %cst_172 : f32 to vector<16x32xf32>
    %592 = arith.subf %407, %591 : vector<16x32xf32>
    %cst_173 = arith.constant 1.250000e+00 : f32
    %593 = vector.broadcast %cst_173 : f32 to vector<16x32xf32>
    %594 = arith.mulf %592, %593 : vector<16x32xf32>
    %cst_174 = arith.constant -2.000000e-01 : f32
    %595 = vector.broadcast %cst_174 : f32 to vector<16x32xf32>
    %596 = arith.subf %407, %595 : vector<16x32xf32>
    %cst_175 = arith.constant 1.250000e+00 : f32
    %597 = vector.broadcast %cst_175 : f32 to vector<16x32xf32>
    %598 = arith.mulf %596, %597 : vector<16x32xf32>
    %cst_176 = arith.constant 2.000000e-01 : f32
    %599 = vector.broadcast %cst_176 : f32 to vector<16x32xf32>
    %600 = arith.subf %407, %599 : vector<16x32xf32>
    %cst_177 = arith.constant 1.250000e+00 : f32
    %601 = vector.broadcast %cst_177 : f32 to vector<16x32xf32>
    %602 = arith.mulf %600, %601 : vector<16x32xf32>
    %cst_178 = arith.constant 6.000000e-01 : f32
    %603 = vector.broadcast %cst_178 : f32 to vector<16x32xf32>
    %604 = arith.subf %407, %603 : vector<16x32xf32>
    %cst_179 = arith.constant 1.250000e+00 : f32
    %605 = vector.broadcast %cst_179 : f32 to vector<16x32xf32>
    %606 = arith.mulf %604, %605 : vector<16x32xf32>
    %cst_180 = arith.constant 1.000000e+00 : f32
    %607 = vector.broadcast %cst_180 : f32 to vector<16x32xf32>
    %608 = arith.subf %407, %607 : vector<16x32xf32>
    %cst_181 = arith.constant 1.250000e+00 : f32
    %609 = vector.broadcast %cst_181 : f32 to vector<16x32xf32>
    %610 = arith.mulf %608, %609 : vector<16x32xf32>
    %cst_182 = arith.constant 1.400000e+00 : f32
    %611 = vector.broadcast %cst_182 : f32 to vector<16x32xf32>
    %612 = arith.subf %407, %611 : vector<16x32xf32>
    %cst_183 = arith.constant 1.250000e+00 : f32
    %613 = vector.broadcast %cst_183 : f32 to vector<16x32xf32>
    %614 = arith.mulf %612, %613 : vector<16x32xf32>
    %615 = arith.mulf %578, %538 : vector<16x32xf32>
    %616 = arith.addf %615, %542 : vector<16x32xf32>
    %617 = arith.mulf %582, %542 : vector<16x32xf32>
    %618 = arith.subf %616, %617 : vector<16x32xf32>
    %619 = arith.mulf %582, %542 : vector<16x32xf32>
    %620 = arith.addf %619, %546 : vector<16x32xf32>
    %621 = arith.mulf %586, %546 : vector<16x32xf32>
    %622 = arith.subf %620, %621 : vector<16x32xf32>
    %623 = arith.mulf %586, %546 : vector<16x32xf32>
    %624 = arith.addf %623, %550 : vector<16x32xf32>
    %625 = arith.mulf %590, %550 : vector<16x32xf32>
    %626 = arith.subf %624, %625 : vector<16x32xf32>
    %627 = arith.mulf %590, %550 : vector<16x32xf32>
    %628 = arith.addf %627, %554 : vector<16x32xf32>
    %629 = arith.mulf %594, %554 : vector<16x32xf32>
    %630 = arith.subf %628, %629 : vector<16x32xf32>
    %631 = arith.mulf %594, %554 : vector<16x32xf32>
    %632 = arith.addf %631, %558 : vector<16x32xf32>
    %633 = arith.mulf %598, %558 : vector<16x32xf32>
    %634 = arith.subf %632, %633 : vector<16x32xf32>
    %635 = arith.mulf %598, %558 : vector<16x32xf32>
    %636 = arith.addf %635, %562 : vector<16x32xf32>
    %637 = arith.mulf %602, %562 : vector<16x32xf32>
    %638 = arith.subf %636, %637 : vector<16x32xf32>
    %639 = arith.mulf %602, %562 : vector<16x32xf32>
    %640 = arith.addf %639, %566 : vector<16x32xf32>
    %641 = arith.mulf %606, %566 : vector<16x32xf32>
    %642 = arith.subf %640, %641 : vector<16x32xf32>
    %643 = arith.mulf %606, %566 : vector<16x32xf32>
    %644 = arith.addf %643, %570 : vector<16x32xf32>
    %645 = arith.mulf %610, %570 : vector<16x32xf32>
    %646 = arith.subf %644, %645 : vector<16x32xf32>
    %647 = arith.mulf %610, %570 : vector<16x32xf32>
    %648 = arith.addf %647, %574 : vector<16x32xf32>
    %649 = arith.mulf %614, %574 : vector<16x32xf32>
    %650 = arith.subf %648, %649 : vector<16x32xf32>
    %cst_184 = arith.constant -2.200000e+00 : f32
    %651 = vector.broadcast %cst_184 : f32 to vector<16x32xf32>
    %652 = arith.subf %407, %651 : vector<16x32xf32>
    %cst_185 = arith.constant 0.833333313 : f32
    %653 = vector.broadcast %cst_185 : f32 to vector<16x32xf32>
    %654 = arith.mulf %652, %653 : vector<16x32xf32>
    %cst_186 = arith.constant -1.800000e+00 : f32
    %655 = vector.broadcast %cst_186 : f32 to vector<16x32xf32>
    %656 = arith.subf %407, %655 : vector<16x32xf32>
    %cst_187 = arith.constant 0.833333313 : f32
    %657 = vector.broadcast %cst_187 : f32 to vector<16x32xf32>
    %658 = arith.mulf %656, %657 : vector<16x32xf32>
    %cst_188 = arith.constant -1.400000e+00 : f32
    %659 = vector.broadcast %cst_188 : f32 to vector<16x32xf32>
    %660 = arith.subf %407, %659 : vector<16x32xf32>
    %cst_189 = arith.constant 0.833333313 : f32
    %661 = vector.broadcast %cst_189 : f32 to vector<16x32xf32>
    %662 = arith.mulf %660, %661 : vector<16x32xf32>
    %cst_190 = arith.constant -1.000000e+00 : f32
    %663 = vector.broadcast %cst_190 : f32 to vector<16x32xf32>
    %664 = arith.subf %407, %663 : vector<16x32xf32>
    %cst_191 = arith.constant 0.833333313 : f32
    %665 = vector.broadcast %cst_191 : f32 to vector<16x32xf32>
    %666 = arith.mulf %664, %665 : vector<16x32xf32>
    %cst_192 = arith.constant -6.000000e-01 : f32
    %667 = vector.broadcast %cst_192 : f32 to vector<16x32xf32>
    %668 = arith.subf %407, %667 : vector<16x32xf32>
    %cst_193 = arith.constant 0.833333313 : f32
    %669 = vector.broadcast %cst_193 : f32 to vector<16x32xf32>
    %670 = arith.mulf %668, %669 : vector<16x32xf32>
    %cst_194 = arith.constant -2.000000e-01 : f32
    %671 = vector.broadcast %cst_194 : f32 to vector<16x32xf32>
    %672 = arith.subf %407, %671 : vector<16x32xf32>
    %cst_195 = arith.constant 0.833333313 : f32
    %673 = vector.broadcast %cst_195 : f32 to vector<16x32xf32>
    %674 = arith.mulf %672, %673 : vector<16x32xf32>
    %cst_196 = arith.constant 2.000000e-01 : f32
    %675 = vector.broadcast %cst_196 : f32 to vector<16x32xf32>
    %676 = arith.subf %407, %675 : vector<16x32xf32>
    %cst_197 = arith.constant 0.833333313 : f32
    %677 = vector.broadcast %cst_197 : f32 to vector<16x32xf32>
    %678 = arith.mulf %676, %677 : vector<16x32xf32>
    %cst_198 = arith.constant 6.000000e-01 : f32
    %679 = vector.broadcast %cst_198 : f32 to vector<16x32xf32>
    %680 = arith.subf %407, %679 : vector<16x32xf32>
    %cst_199 = arith.constant 0.833333313 : f32
    %681 = vector.broadcast %cst_199 : f32 to vector<16x32xf32>
    %682 = arith.mulf %680, %681 : vector<16x32xf32>
    %cst_200 = arith.constant 1.000000e+00 : f32
    %683 = vector.broadcast %cst_200 : f32 to vector<16x32xf32>
    %684 = arith.subf %407, %683 : vector<16x32xf32>
    %cst_201 = arith.constant 0.833333313 : f32
    %685 = vector.broadcast %cst_201 : f32 to vector<16x32xf32>
    %686 = arith.mulf %684, %685 : vector<16x32xf32>
    %687 = arith.mulf %654, %618 : vector<16x32xf32>
    %688 = arith.addf %687, %622 : vector<16x32xf32>
    %689 = arith.mulf %658, %622 : vector<16x32xf32>
    %690 = arith.subf %688, %689 : vector<16x32xf32>
    %691 = arith.mulf %658, %622 : vector<16x32xf32>
    %692 = arith.addf %691, %626 : vector<16x32xf32>
    %693 = arith.mulf %662, %626 : vector<16x32xf32>
    %694 = arith.subf %692, %693 : vector<16x32xf32>
    %695 = arith.mulf %662, %626 : vector<16x32xf32>
    %696 = arith.addf %695, %630 : vector<16x32xf32>
    %697 = arith.mulf %666, %630 : vector<16x32xf32>
    %698 = arith.subf %696, %697 : vector<16x32xf32>
    %699 = arith.mulf %666, %630 : vector<16x32xf32>
    %700 = arith.addf %699, %634 : vector<16x32xf32>
    %701 = arith.mulf %670, %634 : vector<16x32xf32>
    %702 = arith.subf %700, %701 : vector<16x32xf32>
    %703 = arith.mulf %670, %634 : vector<16x32xf32>
    %704 = arith.addf %703, %638 : vector<16x32xf32>
    %705 = arith.mulf %674, %638 : vector<16x32xf32>
    %706 = arith.subf %704, %705 : vector<16x32xf32>
    %707 = arith.mulf %674, %638 : vector<16x32xf32>
    %708 = arith.addf %707, %642 : vector<16x32xf32>
    %709 = arith.mulf %678, %642 : vector<16x32xf32>
    %710 = arith.subf %708, %709 : vector<16x32xf32>
    %711 = arith.mulf %678, %642 : vector<16x32xf32>
    %712 = arith.addf %711, %646 : vector<16x32xf32>
    %713 = arith.mulf %682, %646 : vector<16x32xf32>
    %714 = arith.subf %712, %713 : vector<16x32xf32>
    %715 = arith.mulf %682, %646 : vector<16x32xf32>
    %716 = arith.addf %715, %650 : vector<16x32xf32>
    %717 = arith.mulf %686, %650 : vector<16x32xf32>
    %718 = arith.subf %716, %717 : vector<16x32xf32>
    %719 = arith.truncf %413 : vector<16x32xf32> to vector<16x32xbf16>
    %720 = arith.truncf %690 : vector<16x32xf32> to vector<16x32xbf16>
    %721 = arith.truncf %694 : vector<16x32xf32> to vector<16x32xbf16>
    %722 = arith.truncf %698 : vector<16x32xf32> to vector<16x32xbf16>
    %723 = arith.truncf %702 : vector<16x32xf32> to vector<16x32xbf16>
    %724 = arith.truncf %706 : vector<16x32xf32> to vector<16x32xbf16>
    %725 = arith.truncf %710 : vector<16x32xf32> to vector<16x32xbf16>
    %726 = arith.truncf %714 : vector<16x32xf32> to vector<16x32xbf16>
    %727 = arith.truncf %718 : vector<16x32xf32> to vector<16x32xbf16>
    %728 = tpu.concatenate %719, %720, %721, %722, %723, %724, %725, %726, %727 in 1 : vector<16x32xbf16>, vector<16x32xbf16>, vector<16x32xbf16>, vector<16x32xbf16>, vector<16x32xbf16>, vector<16x32xbf16>, vector<16x32xbf16>, vector<16x32xbf16>, vector<16x32xbf16> -> vector<16x288xbf16>
    %c1_202 = arith.constant 1 : index
    %c0_203 = arith.constant 0 : index
    %c0_204 = arith.constant 0 : index
    %729 = vector.load %arg6[%c1_202, %c0_203, %c0_204] : memref<3x288x32xbf16, #tpu.memory_space<vmem>>, vector<1x288x32xbf16>
    %730 = vector.shape_cast %729 : vector<1x288x32xbf16> to vector<288x32xbf16>
    %cst_205 = arith.constant dense<0.000000e+00> : vector<16x32xf32>
    %731 = tpu.matmul %728, %730, %cst_205 {dimension_numbers = #tpu.dot_dimension_numbers<[1], [0], [0], [1], [0, 0, 1, 1], [], []>} : vector<16x288xbf16>, vector<288x32xbf16>, vector<16x32xf32> -> vector<16x32xf32>
    %732 = arith.addf %382, %731 : vector<16x32xf32>
    %733 = vector.extract_strided_slice %31 {offsets = [32, 0], sizes = [16, 32], strides = [1, 1]} : vector<48x32xf32> to vector<16x32xf32>
    %734 = vector.extract_strided_slice %1 {offsets = [32, 0], sizes = [16, 32], strides = [1, 1]} : vector<48x32xf32> to vector<16x32xf32>
    %735 = arith.addf %733, %734 : vector<16x32xf32>
    %cst_206 = arith.constant dense<0.000000e+00> : vector<16xf32>
    %736 = vector.multi_reduction <add>, %735, %cst_206 [1] : vector<16x32xf32> to vector<16xf32>
    %737 = vector.shape_cast %736 : vector<16xf32> to vector<16x1xf32>
    %cst_207 = arith.constant 3.200000e+01 : f32
    %738 = vector.broadcast %cst_207 : f32 to vector<16x1xf32>
    %739 = arith.divf %737, %738 : vector<16x1xf32>
    %740 = vector.broadcast %739 : vector<16x1xf32> to vector<16x32xf32>
    %741 = arith.subf %735, %740 : vector<16x32xf32>
    %742 = arith.mulf %741, %741 : vector<16x32xf32>
    %cst_208 = arith.constant dense<0.000000e+00> : vector<16xf32>
    %743 = vector.multi_reduction <add>, %742, %cst_208 [1] : vector<16x32xf32> to vector<16xf32>
    %744 = vector.shape_cast %743 : vector<16xf32> to vector<16x1xf32>
    %cst_209 = arith.constant 3.200000e+01 : f32
    %745 = vector.broadcast %cst_209 : f32 to vector<16x1xf32>
    %746 = arith.divf %744, %745 : vector<16x1xf32>
    %cst_210 = arith.constant 9.99999974E-6 : f32
    %747 = vector.broadcast %cst_210 : f32 to vector<16x1xf32>
    %748 = arith.addf %746, %747 : vector<16x1xf32>
    %749 = math.rsqrt %748 : vector<16x1xf32>
    %750 = vector.broadcast %749 : vector<16x1xf32> to vector<16x32xf32>
    %751 = arith.mulf %741, %750 : vector<16x32xf32>
    %c2 = arith.constant 2 : index
    %c0_211 = arith.constant 0 : index
    %752 = vector.load %arg4[%c2, %c0_211] : memref<3x32xf32, #tpu.memory_space<vmem>>, vector<1x32xf32>
    %753 = vector.broadcast %752 : vector<1x32xf32> to vector<16x32xf32>
    %754 = arith.mulf %751, %753 : vector<16x32xf32>
    %c2_212 = arith.constant 2 : index
    %c0_213 = arith.constant 0 : index
    %755 = vector.load %arg5[%c2_212, %c0_213] : memref<3x32xf32, #tpu.memory_space<vmem>>, vector<1x32xf32>
    %756 = vector.broadcast %755 : vector<1x32xf32> to vector<16x32xf32>
    %757 = arith.addf %754, %756 : vector<16x32xf32>
    %cst_214 = arith.constant 0.000000e+00 : f32
    %758 = vector.broadcast %cst_214 : f32 to vector<16x32xf32>
    %759 = arith.subf %758, %757 : vector<16x32xf32>
    %760 = math.exp %759 : vector<16x32xf32>
    %cst_215 = arith.constant 1.000000e+00 : f32
    %761 = vector.broadcast %cst_215 : f32 to vector<16x32xf32>
    %762 = arith.addf %761, %760 : vector<16x32xf32>
    %763 = arith.divf %757, %762 : vector<16x32xf32>
    %cst_216 = arith.constant -2.200000e+00 : f32
    %764 = vector.broadcast %cst_216 : f32 to vector<16x32xf32>
    %765 = arith.cmpf oge, %757, %764 : vector<16x32xf32>
    %cst_217 = arith.constant -1.800000e+00 : f32
    %766 = vector.broadcast %cst_217 : f32 to vector<16x32xf32>
    %767 = arith.cmpf olt, %757, %766 : vector<16x32xf32>
    %768 = arith.andi %765, %767 : vector<16x32xi1>
    %769 = arith.extui %768 : vector<16x32xi1> to vector<16x32xi32>
    %770 = arith.sitofp %769 : vector<16x32xi32> to vector<16x32xf32>
    %cst_218 = arith.constant -1.800000e+00 : f32
    %771 = vector.broadcast %cst_218 : f32 to vector<16x32xf32>
    %772 = arith.cmpf oge, %757, %771 : vector<16x32xf32>
    %cst_219 = arith.constant -1.400000e+00 : f32
    %773 = vector.broadcast %cst_219 : f32 to vector<16x32xf32>
    %774 = arith.cmpf olt, %757, %773 : vector<16x32xf32>
    %775 = arith.andi %772, %774 : vector<16x32xi1>
    %776 = arith.extui %775 : vector<16x32xi1> to vector<16x32xi32>
    %777 = arith.sitofp %776 : vector<16x32xi32> to vector<16x32xf32>
    %cst_220 = arith.constant -1.400000e+00 : f32
    %778 = vector.broadcast %cst_220 : f32 to vector<16x32xf32>
    %779 = arith.cmpf oge, %757, %778 : vector<16x32xf32>
    %cst_221 = arith.constant -1.000000e+00 : f32
    %780 = vector.broadcast %cst_221 : f32 to vector<16x32xf32>
    %781 = arith.cmpf olt, %757, %780 : vector<16x32xf32>
    %782 = arith.andi %779, %781 : vector<16x32xi1>
    %783 = arith.extui %782 : vector<16x32xi1> to vector<16x32xi32>
    %784 = arith.sitofp %783 : vector<16x32xi32> to vector<16x32xf32>
    %cst_222 = arith.constant -1.000000e+00 : f32
    %785 = vector.broadcast %cst_222 : f32 to vector<16x32xf32>
    %786 = arith.cmpf oge, %757, %785 : vector<16x32xf32>
    %cst_223 = arith.constant -6.000000e-01 : f32
    %787 = vector.broadcast %cst_223 : f32 to vector<16x32xf32>
    %788 = arith.cmpf olt, %757, %787 : vector<16x32xf32>
    %789 = arith.andi %786, %788 : vector<16x32xi1>
    %790 = arith.extui %789 : vector<16x32xi1> to vector<16x32xi32>
    %791 = arith.sitofp %790 : vector<16x32xi32> to vector<16x32xf32>
    %cst_224 = arith.constant -6.000000e-01 : f32
    %792 = vector.broadcast %cst_224 : f32 to vector<16x32xf32>
    %793 = arith.cmpf oge, %757, %792 : vector<16x32xf32>
    %cst_225 = arith.constant -2.000000e-01 : f32
    %794 = vector.broadcast %cst_225 : f32 to vector<16x32xf32>
    %795 = arith.cmpf olt, %757, %794 : vector<16x32xf32>
    %796 = arith.andi %793, %795 : vector<16x32xi1>
    %797 = arith.extui %796 : vector<16x32xi1> to vector<16x32xi32>
    %798 = arith.sitofp %797 : vector<16x32xi32> to vector<16x32xf32>
    %cst_226 = arith.constant -2.000000e-01 : f32
    %799 = vector.broadcast %cst_226 : f32 to vector<16x32xf32>
    %800 = arith.cmpf oge, %757, %799 : vector<16x32xf32>
    %cst_227 = arith.constant 2.000000e-01 : f32
    %801 = vector.broadcast %cst_227 : f32 to vector<16x32xf32>
    %802 = arith.cmpf olt, %757, %801 : vector<16x32xf32>
    %803 = arith.andi %800, %802 : vector<16x32xi1>
    %804 = arith.extui %803 : vector<16x32xi1> to vector<16x32xi32>
    %805 = arith.sitofp %804 : vector<16x32xi32> to vector<16x32xf32>
    %cst_228 = arith.constant 2.000000e-01 : f32
    %806 = vector.broadcast %cst_228 : f32 to vector<16x32xf32>
    %807 = arith.cmpf oge, %757, %806 : vector<16x32xf32>
    %cst_229 = arith.constant 6.000000e-01 : f32
    %808 = vector.broadcast %cst_229 : f32 to vector<16x32xf32>
    %809 = arith.cmpf olt, %757, %808 : vector<16x32xf32>
    %810 = arith.andi %807, %809 : vector<16x32xi1>
    %811 = arith.extui %810 : vector<16x32xi1> to vector<16x32xi32>
    %812 = arith.sitofp %811 : vector<16x32xi32> to vector<16x32xf32>
    %cst_230 = arith.constant 6.000000e-01 : f32
    %813 = vector.broadcast %cst_230 : f32 to vector<16x32xf32>
    %814 = arith.cmpf oge, %757, %813 : vector<16x32xf32>
    %cst_231 = arith.constant 1.000000e+00 : f32
    %815 = vector.broadcast %cst_231 : f32 to vector<16x32xf32>
    %816 = arith.cmpf olt, %757, %815 : vector<16x32xf32>
    %817 = arith.andi %814, %816 : vector<16x32xi1>
    %818 = arith.extui %817 : vector<16x32xi1> to vector<16x32xi32>
    %819 = arith.sitofp %818 : vector<16x32xi32> to vector<16x32xf32>
    %cst_232 = arith.constant 1.000000e+00 : f32
    %820 = vector.broadcast %cst_232 : f32 to vector<16x32xf32>
    %821 = arith.cmpf oge, %757, %820 : vector<16x32xf32>
    %cst_233 = arith.constant 1.400000e+00 : f32
    %822 = vector.broadcast %cst_233 : f32 to vector<16x32xf32>
    %823 = arith.cmpf olt, %757, %822 : vector<16x32xf32>
    %824 = arith.andi %821, %823 : vector<16x32xi1>
    %825 = arith.extui %824 : vector<16x32xi1> to vector<16x32xi32>
    %826 = arith.sitofp %825 : vector<16x32xi32> to vector<16x32xf32>
    %cst_234 = arith.constant 1.400000e+00 : f32
    %827 = vector.broadcast %cst_234 : f32 to vector<16x32xf32>
    %828 = arith.cmpf oge, %757, %827 : vector<16x32xf32>
    %cst_235 = arith.constant 1.800000e+00 : f32
    %829 = vector.broadcast %cst_235 : f32 to vector<16x32xf32>
    %830 = arith.cmpf olt, %757, %829 : vector<16x32xf32>
    %831 = arith.andi %828, %830 : vector<16x32xi1>
    %832 = arith.extui %831 : vector<16x32xi1> to vector<16x32xi32>
    %833 = arith.sitofp %832 : vector<16x32xi32> to vector<16x32xf32>
    %cst_236 = arith.constant 1.800000e+00 : f32
    %834 = vector.broadcast %cst_236 : f32 to vector<16x32xf32>
    %835 = arith.cmpf oge, %757, %834 : vector<16x32xf32>
    %cst_237 = arith.constant 2.200000e+00 : f32
    %836 = vector.broadcast %cst_237 : f32 to vector<16x32xf32>
    %837 = arith.cmpf olt, %757, %836 : vector<16x32xf32>
    %838 = arith.andi %835, %837 : vector<16x32xi1>
    %839 = arith.extui %838 : vector<16x32xi1> to vector<16x32xi32>
    %840 = arith.sitofp %839 : vector<16x32xi32> to vector<16x32xf32>
    %cst_238 = arith.constant -2.200000e+00 : f32
    %841 = vector.broadcast %cst_238 : f32 to vector<16x32xf32>
    %842 = arith.subf %757, %841 : vector<16x32xf32>
    %cst_239 = arith.constant 2.500000e+00 : f32
    %843 = vector.broadcast %cst_239 : f32 to vector<16x32xf32>
    %844 = arith.mulf %842, %843 : vector<16x32xf32>
    %cst_240 = arith.constant -1.800000e+00 : f32
    %845 = vector.broadcast %cst_240 : f32 to vector<16x32xf32>
    %846 = arith.subf %757, %845 : vector<16x32xf32>
    %cst_241 = arith.constant 2.500000e+00 : f32
    %847 = vector.broadcast %cst_241 : f32 to vector<16x32xf32>
    %848 = arith.mulf %846, %847 : vector<16x32xf32>
    %cst_242 = arith.constant -1.400000e+00 : f32
    %849 = vector.broadcast %cst_242 : f32 to vector<16x32xf32>
    %850 = arith.subf %757, %849 : vector<16x32xf32>
    %cst_243 = arith.constant 2.500000e+00 : f32
    %851 = vector.broadcast %cst_243 : f32 to vector<16x32xf32>
    %852 = arith.mulf %850, %851 : vector<16x32xf32>
    %cst_244 = arith.constant -1.000000e+00 : f32
    %853 = vector.broadcast %cst_244 : f32 to vector<16x32xf32>
    %854 = arith.subf %757, %853 : vector<16x32xf32>
    %cst_245 = arith.constant 2.500000e+00 : f32
    %855 = vector.broadcast %cst_245 : f32 to vector<16x32xf32>
    %856 = arith.mulf %854, %855 : vector<16x32xf32>
    %cst_246 = arith.constant -6.000000e-01 : f32
    %857 = vector.broadcast %cst_246 : f32 to vector<16x32xf32>
    %858 = arith.subf %757, %857 : vector<16x32xf32>
    %cst_247 = arith.constant 2.500000e+00 : f32
    %859 = vector.broadcast %cst_247 : f32 to vector<16x32xf32>
    %860 = arith.mulf %858, %859 : vector<16x32xf32>
    %cst_248 = arith.constant -2.000000e-01 : f32
    %861 = vector.broadcast %cst_248 : f32 to vector<16x32xf32>
    %862 = arith.subf %757, %861 : vector<16x32xf32>
    %cst_249 = arith.constant 2.500000e+00 : f32
    %863 = vector.broadcast %cst_249 : f32 to vector<16x32xf32>
    %864 = arith.mulf %862, %863 : vector<16x32xf32>
    %cst_250 = arith.constant 2.000000e-01 : f32
    %865 = vector.broadcast %cst_250 : f32 to vector<16x32xf32>
    %866 = arith.subf %757, %865 : vector<16x32xf32>
    %cst_251 = arith.constant 2.500000e+00 : f32
    %867 = vector.broadcast %cst_251 : f32 to vector<16x32xf32>
    %868 = arith.mulf %866, %867 : vector<16x32xf32>
    %cst_252 = arith.constant 6.000000e-01 : f32
    %869 = vector.broadcast %cst_252 : f32 to vector<16x32xf32>
    %870 = arith.subf %757, %869 : vector<16x32xf32>
    %cst_253 = arith.constant 2.500000e+00 : f32
    %871 = vector.broadcast %cst_253 : f32 to vector<16x32xf32>
    %872 = arith.mulf %870, %871 : vector<16x32xf32>
    %cst_254 = arith.constant 1.000000e+00 : f32
    %873 = vector.broadcast %cst_254 : f32 to vector<16x32xf32>
    %874 = arith.subf %757, %873 : vector<16x32xf32>
    %cst_255 = arith.constant 2.500000e+00 : f32
    %875 = vector.broadcast %cst_255 : f32 to vector<16x32xf32>
    %876 = arith.mulf %874, %875 : vector<16x32xf32>
    %cst_256 = arith.constant 1.400000e+00 : f32
    %877 = vector.broadcast %cst_256 : f32 to vector<16x32xf32>
    %878 = arith.subf %757, %877 : vector<16x32xf32>
    %cst_257 = arith.constant 2.500000e+00 : f32
    %879 = vector.broadcast %cst_257 : f32 to vector<16x32xf32>
    %880 = arith.mulf %878, %879 : vector<16x32xf32>
    %cst_258 = arith.constant 1.800000e+00 : f32
    %881 = vector.broadcast %cst_258 : f32 to vector<16x32xf32>
    %882 = arith.subf %757, %881 : vector<16x32xf32>
    %cst_259 = arith.constant 2.500000e+00 : f32
    %883 = vector.broadcast %cst_259 : f32 to vector<16x32xf32>
    %884 = arith.mulf %882, %883 : vector<16x32xf32>
    %885 = arith.mulf %844, %770 : vector<16x32xf32>
    %886 = arith.addf %885, %777 : vector<16x32xf32>
    %887 = arith.mulf %848, %777 : vector<16x32xf32>
    %888 = arith.subf %886, %887 : vector<16x32xf32>
    %889 = arith.mulf %848, %777 : vector<16x32xf32>
    %890 = arith.addf %889, %784 : vector<16x32xf32>
    %891 = arith.mulf %852, %784 : vector<16x32xf32>
    %892 = arith.subf %890, %891 : vector<16x32xf32>
    %893 = arith.mulf %852, %784 : vector<16x32xf32>
    %894 = arith.addf %893, %791 : vector<16x32xf32>
    %895 = arith.mulf %856, %791 : vector<16x32xf32>
    %896 = arith.subf %894, %895 : vector<16x32xf32>
    %897 = arith.mulf %856, %791 : vector<16x32xf32>
    %898 = arith.addf %897, %798 : vector<16x32xf32>
    %899 = arith.mulf %860, %798 : vector<16x32xf32>
    %900 = arith.subf %898, %899 : vector<16x32xf32>
    %901 = arith.mulf %860, %798 : vector<16x32xf32>
    %902 = arith.addf %901, %805 : vector<16x32xf32>
    %903 = arith.mulf %864, %805 : vector<16x32xf32>
    %904 = arith.subf %902, %903 : vector<16x32xf32>
    %905 = arith.mulf %864, %805 : vector<16x32xf32>
    %906 = arith.addf %905, %812 : vector<16x32xf32>
    %907 = arith.mulf %868, %812 : vector<16x32xf32>
    %908 = arith.subf %906, %907 : vector<16x32xf32>
    %909 = arith.mulf %868, %812 : vector<16x32xf32>
    %910 = arith.addf %909, %819 : vector<16x32xf32>
    %911 = arith.mulf %872, %819 : vector<16x32xf32>
    %912 = arith.subf %910, %911 : vector<16x32xf32>
    %913 = arith.mulf %872, %819 : vector<16x32xf32>
    %914 = arith.addf %913, %826 : vector<16x32xf32>
    %915 = arith.mulf %876, %826 : vector<16x32xf32>
    %916 = arith.subf %914, %915 : vector<16x32xf32>
    %917 = arith.mulf %876, %826 : vector<16x32xf32>
    %918 = arith.addf %917, %833 : vector<16x32xf32>
    %919 = arith.mulf %880, %833 : vector<16x32xf32>
    %920 = arith.subf %918, %919 : vector<16x32xf32>
    %921 = arith.mulf %880, %833 : vector<16x32xf32>
    %922 = arith.addf %921, %840 : vector<16x32xf32>
    %923 = arith.mulf %884, %840 : vector<16x32xf32>
    %924 = arith.subf %922, %923 : vector<16x32xf32>
    %cst_260 = arith.constant -2.200000e+00 : f32
    %925 = vector.broadcast %cst_260 : f32 to vector<16x32xf32>
    %926 = arith.subf %757, %925 : vector<16x32xf32>
    %cst_261 = arith.constant 1.250000e+00 : f32
    %927 = vector.broadcast %cst_261 : f32 to vector<16x32xf32>
    %928 = arith.mulf %926, %927 : vector<16x32xf32>
    %cst_262 = arith.constant -1.800000e+00 : f32
    %929 = vector.broadcast %cst_262 : f32 to vector<16x32xf32>
    %930 = arith.subf %757, %929 : vector<16x32xf32>
    %cst_263 = arith.constant 1.250000e+00 : f32
    %931 = vector.broadcast %cst_263 : f32 to vector<16x32xf32>
    %932 = arith.mulf %930, %931 : vector<16x32xf32>
    %cst_264 = arith.constant -1.400000e+00 : f32
    %933 = vector.broadcast %cst_264 : f32 to vector<16x32xf32>
    %934 = arith.subf %757, %933 : vector<16x32xf32>
    %cst_265 = arith.constant 1.250000e+00 : f32
    %935 = vector.broadcast %cst_265 : f32 to vector<16x32xf32>
    %936 = arith.mulf %934, %935 : vector<16x32xf32>
    %cst_266 = arith.constant -1.000000e+00 : f32
    %937 = vector.broadcast %cst_266 : f32 to vector<16x32xf32>
    %938 = arith.subf %757, %937 : vector<16x32xf32>
    %cst_267 = arith.constant 1.250000e+00 : f32
    %939 = vector.broadcast %cst_267 : f32 to vector<16x32xf32>
    %940 = arith.mulf %938, %939 : vector<16x32xf32>
    %cst_268 = arith.constant -6.000000e-01 : f32
    %941 = vector.broadcast %cst_268 : f32 to vector<16x32xf32>
    %942 = arith.subf %757, %941 : vector<16x32xf32>
    %cst_269 = arith.constant 1.250000e+00 : f32
    %943 = vector.broadcast %cst_269 : f32 to vector<16x32xf32>
    %944 = arith.mulf %942, %943 : vector<16x32xf32>
    %cst_270 = arith.constant -2.000000e-01 : f32
    %945 = vector.broadcast %cst_270 : f32 to vector<16x32xf32>
    %946 = arith.subf %757, %945 : vector<16x32xf32>
    %cst_271 = arith.constant 1.250000e+00 : f32
    %947 = vector.broadcast %cst_271 : f32 to vector<16x32xf32>
    %948 = arith.mulf %946, %947 : vector<16x32xf32>
    %cst_272 = arith.constant 2.000000e-01 : f32
    %949 = vector.broadcast %cst_272 : f32 to vector<16x32xf32>
    %950 = arith.subf %757, %949 : vector<16x32xf32>
    %cst_273 = arith.constant 1.250000e+00 : f32
    %951 = vector.broadcast %cst_273 : f32 to vector<16x32xf32>
    %952 = arith.mulf %950, %951 : vector<16x32xf32>
    %cst_274 = arith.constant 6.000000e-01 : f32
    %953 = vector.broadcast %cst_274 : f32 to vector<16x32xf32>
    %954 = arith.subf %757, %953 : vector<16x32xf32>
    %cst_275 = arith.constant 1.250000e+00 : f32
    %955 = vector.broadcast %cst_275 : f32 to vector<16x32xf32>
    %956 = arith.mulf %954, %955 : vector<16x32xf32>
    %cst_276 = arith.constant 1.000000e+00 : f32
    %957 = vector.broadcast %cst_276 : f32 to vector<16x32xf32>
    %958 = arith.subf %757, %957 : vector<16x32xf32>
    %cst_277 = arith.constant 1.250000e+00 : f32
    %959 = vector.broadcast %cst_277 : f32 to vector<16x32xf32>
    %960 = arith.mulf %958, %959 : vector<16x32xf32>
    %cst_278 = arith.constant 1.400000e+00 : f32
    %961 = vector.broadcast %cst_278 : f32 to vector<16x32xf32>
    %962 = arith.subf %757, %961 : vector<16x32xf32>
    %cst_279 = arith.constant 1.250000e+00 : f32
    %963 = vector.broadcast %cst_279 : f32 to vector<16x32xf32>
    %964 = arith.mulf %962, %963 : vector<16x32xf32>
    %965 = arith.mulf %928, %888 : vector<16x32xf32>
    %966 = arith.addf %965, %892 : vector<16x32xf32>
    %967 = arith.mulf %932, %892 : vector<16x32xf32>
    %968 = arith.subf %966, %967 : vector<16x32xf32>
    %969 = arith.mulf %932, %892 : vector<16x32xf32>
    %970 = arith.addf %969, %896 : vector<16x32xf32>
    %971 = arith.mulf %936, %896 : vector<16x32xf32>
    %972 = arith.subf %970, %971 : vector<16x32xf32>
    %973 = arith.mulf %936, %896 : vector<16x32xf32>
    %974 = arith.addf %973, %900 : vector<16x32xf32>
    %975 = arith.mulf %940, %900 : vector<16x32xf32>
    %976 = arith.subf %974, %975 : vector<16x32xf32>
    %977 = arith.mulf %940, %900 : vector<16x32xf32>
    %978 = arith.addf %977, %904 : vector<16x32xf32>
    %979 = arith.mulf %944, %904 : vector<16x32xf32>
    %980 = arith.subf %978, %979 : vector<16x32xf32>
    %981 = arith.mulf %944, %904 : vector<16x32xf32>
    %982 = arith.addf %981, %908 : vector<16x32xf32>
    %983 = arith.mulf %948, %908 : vector<16x32xf32>
    %984 = arith.subf %982, %983 : vector<16x32xf32>
    %985 = arith.mulf %948, %908 : vector<16x32xf32>
    %986 = arith.addf %985, %912 : vector<16x32xf32>
    %987 = arith.mulf %952, %912 : vector<16x32xf32>
    %988 = arith.subf %986, %987 : vector<16x32xf32>
    %989 = arith.mulf %952, %912 : vector<16x32xf32>
    %990 = arith.addf %989, %916 : vector<16x32xf32>
    %991 = arith.mulf %956, %916 : vector<16x32xf32>
    %992 = arith.subf %990, %991 : vector<16x32xf32>
    %993 = arith.mulf %956, %916 : vector<16x32xf32>
    %994 = arith.addf %993, %920 : vector<16x32xf32>
    %995 = arith.mulf %960, %920 : vector<16x32xf32>
    %996 = arith.subf %994, %995 : vector<16x32xf32>
    %997 = arith.mulf %960, %920 : vector<16x32xf32>
    %998 = arith.addf %997, %924 : vector<16x32xf32>
    %999 = arith.mulf %964, %924 : vector<16x32xf32>
    %1000 = arith.subf %998, %999 : vector<16x32xf32>
    %cst_280 = arith.constant -2.200000e+00 : f32
    %1001 = vector.broadcast %cst_280 : f32 to vector<16x32xf32>
    %1002 = arith.subf %757, %1001 : vector<16x32xf32>
    %cst_281 = arith.constant 0.833333313 : f32
    %1003 = vector.broadcast %cst_281 : f32 to vector<16x32xf32>
    %1004 = arith.mulf %1002, %1003 : vector<16x32xf32>
    %cst_282 = arith.constant -1.800000e+00 : f32
    %1005 = vector.broadcast %cst_282 : f32 to vector<16x32xf32>
    %1006 = arith.subf %757, %1005 : vector<16x32xf32>
    %cst_283 = arith.constant 0.833333313 : f32
    %1007 = vector.broadcast %cst_283 : f32 to vector<16x32xf32>
    %1008 = arith.mulf %1006, %1007 : vector<16x32xf32>
    %cst_284 = arith.constant -1.400000e+00 : f32
    %1009 = vector.broadcast %cst_284 : f32 to vector<16x32xf32>
    %1010 = arith.subf %757, %1009 : vector<16x32xf32>
    %cst_285 = arith.constant 0.833333313 : f32
    %1011 = vector.broadcast %cst_285 : f32 to vector<16x32xf32>
    %1012 = arith.mulf %1010, %1011 : vector<16x32xf32>
    %cst_286 = arith.constant -1.000000e+00 : f32
    %1013 = vector.broadcast %cst_286 : f32 to vector<16x32xf32>
    %1014 = arith.subf %757, %1013 : vector<16x32xf32>
    %cst_287 = arith.constant 0.833333313 : f32
    %1015 = vector.broadcast %cst_287 : f32 to vector<16x32xf32>
    %1016 = arith.mulf %1014, %1015 : vector<16x32xf32>
    %cst_288 = arith.constant -6.000000e-01 : f32
    %1017 = vector.broadcast %cst_288 : f32 to vector<16x32xf32>
    %1018 = arith.subf %757, %1017 : vector<16x32xf32>
    %cst_289 = arith.constant 0.833333313 : f32
    %1019 = vector.broadcast %cst_289 : f32 to vector<16x32xf32>
    %1020 = arith.mulf %1018, %1019 : vector<16x32xf32>
    %cst_290 = arith.constant -2.000000e-01 : f32
    %1021 = vector.broadcast %cst_290 : f32 to vector<16x32xf32>
    %1022 = arith.subf %757, %1021 : vector<16x32xf32>
    %cst_291 = arith.constant 0.833333313 : f32
    %1023 = vector.broadcast %cst_291 : f32 to vector<16x32xf32>
    %1024 = arith.mulf %1022, %1023 : vector<16x32xf32>
    %cst_292 = arith.constant 2.000000e-01 : f32
    %1025 = vector.broadcast %cst_292 : f32 to vector<16x32xf32>
    %1026 = arith.subf %757, %1025 : vector<16x32xf32>
    %cst_293 = arith.constant 0.833333313 : f32
    %1027 = vector.broadcast %cst_293 : f32 to vector<16x32xf32>
    %1028 = arith.mulf %1026, %1027 : vector<16x32xf32>
    %cst_294 = arith.constant 6.000000e-01 : f32
    %1029 = vector.broadcast %cst_294 : f32 to vector<16x32xf32>
    %1030 = arith.subf %757, %1029 : vector<16x32xf32>
    %cst_295 = arith.constant 0.833333313 : f32
    %1031 = vector.broadcast %cst_295 : f32 to vector<16x32xf32>
    %1032 = arith.mulf %1030, %1031 : vector<16x32xf32>
    %cst_296 = arith.constant 1.000000e+00 : f32
    %1033 = vector.broadcast %cst_296 : f32 to vector<16x32xf32>
    %1034 = arith.subf %757, %1033 : vector<16x32xf32>
    %cst_297 = arith.constant 0.833333313 : f32
    %1035 = vector.broadcast %cst_297 : f32 to vector<16x32xf32>
    %1036 = arith.mulf %1034, %1035 : vector<16x32xf32>
    %1037 = arith.mulf %1004, %968 : vector<16x32xf32>
    %1038 = arith.addf %1037, %972 : vector<16x32xf32>
    %1039 = arith.mulf %1008, %972 : vector<16x32xf32>
    %1040 = arith.subf %1038, %1039 : vector<16x32xf32>
    %1041 = arith.mulf %1008, %972 : vector<16x32xf32>
    %1042 = arith.addf %1041, %976 : vector<16x32xf32>
    %1043 = arith.mulf %1012, %976 : vector<16x32xf32>
    %1044 = arith.subf %1042, %1043 : vector<16x32xf32>
    %1045 = arith.mulf %1012, %976 : vector<16x32xf32>
    %1046 = arith.addf %1045, %980 : vector<16x32xf32>
    %1047 = arith.mulf %1016, %980 : vector<16x32xf32>
    %1048 = arith.subf %1046, %1047 : vector<16x32xf32>
    %1049 = arith.mulf %1016, %980 : vector<16x32xf32>
    %1050 = arith.addf %1049, %984 : vector<16x32xf32>
    %1051 = arith.mulf %1020, %984 : vector<16x32xf32>
    %1052 = arith.subf %1050, %1051 : vector<16x32xf32>
    %1053 = arith.mulf %1020, %984 : vector<16x32xf32>
    %1054 = arith.addf %1053, %988 : vector<16x32xf32>
    %1055 = arith.mulf %1024, %988 : vector<16x32xf32>
    %1056 = arith.subf %1054, %1055 : vector<16x32xf32>
    %1057 = arith.mulf %1024, %988 : vector<16x32xf32>
    %1058 = arith.addf %1057, %992 : vector<16x32xf32>
    %1059 = arith.mulf %1028, %992 : vector<16x32xf32>
    %1060 = arith.subf %1058, %1059 : vector<16x32xf32>
    %1061 = arith.mulf %1028, %992 : vector<16x32xf32>
    %1062 = arith.addf %1061, %996 : vector<16x32xf32>
    %1063 = arith.mulf %1032, %996 : vector<16x32xf32>
    %1064 = arith.subf %1062, %1063 : vector<16x32xf32>
    %1065 = arith.mulf %1032, %996 : vector<16x32xf32>
    %1066 = arith.addf %1065, %1000 : vector<16x32xf32>
    %1067 = arith.mulf %1036, %1000 : vector<16x32xf32>
    %1068 = arith.subf %1066, %1067 : vector<16x32xf32>
    %1069 = arith.truncf %763 : vector<16x32xf32> to vector<16x32xbf16>
    %1070 = arith.truncf %1040 : vector<16x32xf32> to vector<16x32xbf16>
    %1071 = arith.truncf %1044 : vector<16x32xf32> to vector<16x32xbf16>
    %1072 = arith.truncf %1048 : vector<16x32xf32> to vector<16x32xbf16>
    %1073 = arith.truncf %1052 : vector<16x32xf32> to vector<16x32xbf16>
    %1074 = arith.truncf %1056 : vector<16x32xf32> to vector<16x32xbf16>
    %1075 = arith.truncf %1060 : vector<16x32xf32> to vector<16x32xbf16>
    %1076 = arith.truncf %1064 : vector<16x32xf32> to vector<16x32xbf16>
    %1077 = arith.truncf %1068 : vector<16x32xf32> to vector<16x32xbf16>
    %1078 = tpu.concatenate %1069, %1070, %1071, %1072, %1073, %1074, %1075, %1076, %1077 in 1 : vector<16x32xbf16>, vector<16x32xbf16>, vector<16x32xbf16>, vector<16x32xbf16>, vector<16x32xbf16>, vector<16x32xbf16>, vector<16x32xbf16>, vector<16x32xbf16>, vector<16x32xbf16> -> vector<16x288xbf16>
    %c2_298 = arith.constant 2 : index
    %c0_299 = arith.constant 0 : index
    %c0_300 = arith.constant 0 : index
    %1079 = vector.load %arg6[%c2_298, %c0_299, %c0_300] : memref<3x288x32xbf16, #tpu.memory_space<vmem>>, vector<1x288x32xbf16>
    %1080 = vector.shape_cast %1079 : vector<1x288x32xbf16> to vector<288x32xbf16>
    %cst_301 = arith.constant dense<0.000000e+00> : vector<16x32xf32>
    %1081 = tpu.matmul %1078, %1080, %cst_301 {dimension_numbers = #tpu.dot_dimension_numbers<[1], [0], [0], [1], [0, 0, 1, 1], [], []>} : vector<16x288xbf16>, vector<288x32xbf16>, vector<16x32xf32> -> vector<16x32xf32>
    %1082 = arith.addf %732, %1081 : vector<16x32xf32>
    %1083 = vector.shape_cast %1082 : vector<16x32xf32> to vector<2x8x32xf32>
    %c0_302 = arith.constant 0 : index
    %c0_303 = arith.constant 0 : index
    %c0_304 = arith.constant 0 : index
    %1084 = vector.load %arg7[%c0_302, %c0_303, %c0_304] : memref<2x8x32xf32, #tpu.memory_space<vmem>>, vector<2x8x32xf32>
    tpu.vector_store %arg7[%c0_302, %c0_303, %c0_304], %1083 {strides = array<i32>} : memref<2x8x32xf32, #tpu.memory_space<vmem>>, vector<2x8x32xf32>,
    return
  }
  func.func @transform_0(%arg0: i32) -> (i32, i32, i32, i32) {
    %c0_i32 = arith.constant 0 : i32
    %c0_i32_0 = arith.constant 0 : i32
    %c0_i32_1 = arith.constant 0 : i32
    %c0_i32_2 = arith.constant 0 : i32
    return %c0_i32, %arg0, %c0_i32_0, %c0_i32_1 : i32, i32, i32, i32
  }
  func.func @transform_1(%arg0: i32) -> (i32, i32) {
    %c0_i32 = arith.constant 0 : i32
    %c0_i32_0 = arith.constant 0 : i32
    %c0_i32_1 = arith.constant 0 : i32
    return %c0_i32, %c0_i32_0 : i32, i32
  }
  func.func @transform_2(%arg0: i32) -> (i32, i32) {
    %c0_i32 = arith.constant 0 : i32
    %c0_i32_0 = arith.constant 0 : i32
    %c0_i32_1 = arith.constant 0 : i32
    return %c0_i32, %c0_i32_0 : i32, i32
  }
  func.func @transform_3(%arg0: i32) -> (i32, i32) {
    %c0_i32 = arith.constant 0 : i32
    %c0_i32_0 = arith.constant 0 : i32
    %c0_i32_1 = arith.constant 0 : i32
    return %c0_i32, %c0_i32_0 : i32, i32
  }
  func.func @transform_4(%arg0: i32) -> (i32, i32) {
    %c0_i32 = arith.constant 0 : i32
    %c0_i32_0 = arith.constant 0 : i32
    %c0_i32_1 = arith.constant 0 : i32
    return %c0_i32, %c0_i32_0 : i32, i32
  }
  func.func @transform_5(%arg0: i32) -> (i32, i32, i32) {
    %c0_i32 = arith.constant 0 : i32
    %c0_i32_0 = arith.constant 0 : i32
    %c0_i32_1 = arith.constant 0 : i32
    %c0_i32_2 = arith.constant 0 : i32
    return %c0_i32, %c0_i32_0, %c0_i32_1 : i32, i32, i32
  }
  func.func @transform_6(%arg0: i32) -> (i32, i32, i32) {
    %c0_i32 = arith.constant 0 : i32
    %c0_i32_0 = arith.constant 0 : i32
    %c0_i32_1 = arith.constant 0 : i32
    return %arg0, %c0_i32, %c0_i32_0 : i32, i32, i32
  }
}

</mosaic_0001>

<llo_original>
// kernel: tpu_custom_call.1
$region0: #{tpu_custom_call.1}
  #allocation0 [shape = 'u32[]', space=smem, size = 0x4, offset = 0x4, fixed_abs, tag = 'smem constant byte address 0x4 - core index']
  #allocation1 [shape = 'u32[72,128]{1,0:T(1,128)}', space=vmem, size = 0x9000, scoped, tag = 'internal scratch']
  %s0 = inlined_call_operand.vmem [shape: f32[3,2,8,32], index: 0, kind: input, shape index: {}]
  %s1 = inlined_call_operand.vmem [shape: bf16[32,96], index: 1, kind: input, shape index: {}]
  %s2 = inlined_call_operand.vmem [shape: f32[1,96], index: 2, kind: input, shape index: {}]
  %s3 = inlined_call_operand.vmem [shape: f32[3,32], index: 3, kind: input, shape index: {}]
  %s4 = inlined_call_operand.vmem [shape: f32[3,32], index: 4, kind: input, shape index: {}]
  %s5 = inlined_call_operand.vmem [shape: bf16[3,288,32], index: 5, kind: input, shape index: {}]
  %s6 = inlined_call_operand.hbm [shape: f32[2,8,32], index: 6, kind: output, shape index: {}]
  %s7 = sld [smem:[#allocation0]]
  $region34: #{tpu_custom_call.1} parent=0
    _
  %s9 = ssub.s32 1, %s7
  %s10 = scalar_select 0, %s9, %s7
  $region1: #{tpu_custom_call.1} parent=0
    #allocation2 [shape = 'u8[8192]{0}', space=vmem, size = 0x2000, scoped, tag = 'output window, operand 0, single buffered']
    #allocation3 [shape = 's32[1]{0}', space=sflag, size = 0x4, scoped, tag = 'scoped memory for tpu_custom_call.1']
    %11 = vsyncpa [#allocation3], 0
    // Predicated region
    $region2: #{tpu_custom_call.1} parent=1 // pred_check
      _
    $region3: #{tpu_custom_call.1} parent=1 // pred_check_branch
      %13 = sbr.rel (0) target = $region5
    $region4: #{tpu_custom_call.1} parent=1 // pred_region
      _
    $region5: #{tpu_custom_call.1} parent=1 // pred_fallthru
      _
    // Predicated region
    $region6: #{tpu_custom_call.1} parent=1 // pred_check
      _
    $region7: #{tpu_custom_call.1} parent=1 // pred_check_branch
      %15 = sbr.rel (0) target = $region9
    $region8: #{tpu_custom_call.1} parent=1 // pred_region
      _
    $region9: #{tpu_custom_call.1} parent=1 // pred_fallthru
      _
    // Predicated region
    $region10: #{tpu_custom_call.1} parent=1 // pred_check
      _
    $region11: #{tpu_custom_call.1} parent=1 // pred_check_branch
      %17 = sbr.rel (0) target = $region13
    $region12: #{tpu_custom_call.1} parent=1 // pred_region
      _
    $region13: #{tpu_custom_call.1} parent=1 // pred_fallthru
      _
    // Predicated region
    $region14: #{tpu_custom_call.1} parent=1 // pred_check
      _
    $region15: #{tpu_custom_call.1} parent=1 // pred_check_branch
      %19 = sbr.rel (0) target = $region17
    $region16: #{tpu_custom_call.1} parent=1 // pred_region
      _
    $region17: #{tpu_custom_call.1} parent=1 // pred_fallthru
      _
    // Predicated region
    $region18: #{tpu_custom_call.1} parent=1 // pred_check
      _
    $region19: #{tpu_custom_call.1} parent=1 // pred_check_branch
      %21 = sbr.rel (0) target = $region21
    $region20: #{tpu_custom_call.1} parent=1 // pred_region
      _
    $region21: #{tpu_custom_call.1} parent=1 // pred_fallthru
      _
    // Predicated region
    $region22: #{tpu_custom_call.1} parent=1 // pred_check
      _
    $region23: #{tpu_custom_call.1} parent=1 // pred_check_branch
      %23 = sbr.rel (0) target = $region25
    $region24: #{tpu_custom_call.1} parent=1 // pred_region
      _
    $region25: #{tpu_custom_call.1} parent=1 // pred_fallthru
      _
    %v25 = vld [vmem:[%s0] sm:$0xff]
    %v26 = vld [vmem:[%s0 + $0x8] sm:$0xff]
    %v27 = vld [vmem:[%s0 + $0x10] sm:$0xff]
    %v28 = vld [vmem:[%s0 + $0x18] sm:$0xff]
    %v29 = vld [vmem:[%s0 + $0x20] sm:$0xff]
    %v30 = vld [vmem:[%s0 + $0x28] sm:$0xff]
    %v31 = vpack.c.bf16 %v26, %v25
    %v32 = vpack.c.bf16 %v28, %v27
    %v33 = vpack.c.bf16 %v30, %v29
    %v34 = vld [vmem:[%s1] sm:$0xf]
    %v35 = vld [vmem:[%s1 + $0x4] sm:$0xf]
    %v36 = vld [vmem:[%s1 + $0x8] sm:$0xf]
    %v37 = vld [vmem:[%s1 + $0xc] sm:$0xf]
    %v38 = vld [vmem:[%s2] sm:$0x1]
    %v40 = vperm.slane %v38, 0
    %v46 = vunpack.c.l.b16 %v34
    %v47 = vunpack.c.l.b16 %v35
    %v48 = vunpack.c.l.b16 %v36
    %v49 = vunpack.c.l.b16 %v37
    %v50 = vpack.c.b16 %v47, %v46
    %v51 = vpack.c.b16 %v49, %v48
    %vm54 = vcmask 261120
    %v56 = vsel %vm54, %v31, 0
    %v59 = vsel %vm54, %v32, 0
    %v62 = vsel %vm54, %v33, 0
    %64 = vmatpush.bf16.msra.mxu0 0
    %65 = vmatpush.bf16.msra.mxu0 0
    %66 = vmatpush.bf16.msra.mxu0 0
    %67 = vmatpush.bf16.msra.mxu0 0
    %68 = vmatpush.bf16.msra.mxu0 0
    %69 = vmatpush.bf16.msra.mxu0 0
    %70 = vmatpush.bf16.msra.mxu0 %v51
    %71 = vmatpush.bf16.msra.mxu0 %v50
    %72 = vmatmul.bf16.gmra.mxu0 %v56
    %v73 = vpop.f32.mrf.mxu0
    %v74 = vadd.f32 %v40, %v73
    %v75 = vpop.f32.mrf.mxu0
    %v76 = vadd.f32 %v40, %v75
    %77 = vmatmul.bf16.gmra.mxu0 %v59
    %v78 = vpop.f32.mrf.mxu0
    %v79 = vadd.f32 %v40, %v78
    %v80 = vpop.f32.mrf.mxu0
    %v81 = vadd.f32 %v40, %v80
    %82 = vmatmul.bf16.gmra.mxu0 %v62
    %v83 = vpop.f32.mrf.mxu0
    %v84 = vadd.f32 %v40, %v83
    %v85 = vpop.f32.mrf.mxu0
    %v86 = vadd.f32 %v40, %v85
    %87 = vdwg.mxu0
    %v88 = vpack.c.bf16 %v74, %v74
    %v89 = vpack.c.bf16 %v76, %v76
    %v90 = vpack.c.bf16 %v79, %v79
    %v91 = vpack.c.bf16 %v81, %v81
    %v92 = vpack.c.bf16 %v84, %v84
    %v93 = vpack.c.bf16 %v86, %v86
    %v95 = vunpack.c.l.b16 %v88
    %v96 = vpack.c.b16 %v95, %v95
    %97 = vrot.lane.b32.xlu0 %v96, 96
    %v98 = vpop.permute.xlu0 %97
    %v100 = vsel %vm54, %v88, 0
    %v103 = vsel %vm54, %v98, 0
    %105 = vmatpush.bf16.xpose.msra.mxu0 0
    %106 = vmatpush.bf16.xpose.msra.mxu0 0
    %107 = vmatpush.bf16.xpose.msra.mxu0 0
    %108 = vmatpush.bf16.xpose.msra.mxu0 0
    %109 = vmatpush.bf16.xpose.msra.mxu0 0
    %110 = vmatpush.bf16.xpose.msra.mxu0 0
    %111 = vmatpush.bf16.xpose.msra.mxu0 0
    %112 = vmatpush.bf16.xpose.msra.mxu0 %v103
    %113 = vmatmul.bf16.gmra.mxu0 %v100
    %v114 = vpop.f32.mrf.mxu0
    %v115 = vadd.f32 0.0, %v114
    %v116 = vpop.f32.mrf.mxu0
    %117 = vdwg.mxu0
    %v119 = vunpack.c.l.b16 %v89
    %v120 = vpack.c.b16 %v119, %v119
    %121 = vrot.lane.b32.xlu0 %v120, 96
    %v122 = vpop.permute.xlu0 %121
    %v124 = vsel %vm54, %v89, 0
    %v127 = vsel %vm54, %v122, 0
    %129 = vmatpush.bf16.xpose.msra.mxu0 0
    %130 = vmatpush.bf16.xpose.msra.mxu0 0
    %131 = vmatpush.bf16.xpose.msra.mxu0 0
    %132 = vmatpush.bf16.xpose.msra.mxu0 0
    %133 = vmatpush.bf16.xpose.msra.mxu0 0
    %134 = vmatpush.bf16.xpose.msra.mxu0 0
    %135 = vmatpush.bf16.xpose.msra.mxu0 0
    %136 = vmatpush.bf16.xpose.msra.mxu0 %v127
    %137 = vmatmul.bf16.gmra.mxu0 %v124
    %v138 = vpop.f32.mrf.mxu0
    %v139 = vadd.f32 0.0, %v138
    %v140 = vpop.f32.mrf.mxu0
    %141 = vdwg.mxu0
    %v143 = vunpack.c.l.b16 %v90
    %v144 = vpack.c.b16 %v143, %v143
    %145 = vrot.lane.b32.xlu0 %v144, 96
    %v146 = vpop.permute.xlu0 %145
    %v148 = vsel %vm54, %v90, 0
    %v151 = vsel %vm54, %v146, 0
    %153 = vmatpush.bf16.xpose.msra.mxu0 0
    %154 = vmatpush.bf16.xpose.msra.mxu0 0
    %155 = vmatpush.bf16.xpose.msra.mxu0 0
    %156 = vmatpush.bf16.xpose.msra.mxu0 0
    %157 = vmatpush.bf16.xpose.msra.mxu0 0
    %158 = vmatpush.bf16.xpose.msra.mxu0 0
    %159 = vmatpush.bf16.xpose.msra.mxu0 0
    %160 = vmatpush.bf16.xpose.msra.mxu0 %v151
    %161 = vmatmul.bf16.gmra.mxu0 %v148
    %v162 = vpop.f32.mrf.mxu0
    %v163 = vadd.f32 0.0, %v162
    %v164 = vpop.f32.mrf.mxu0
    %165 = vdwg.mxu0
    %v167 = vunpack.c.l.b16 %v91
    %v168 = vpack.c.b16 %v167, %v167
    %169 = vrot.lane.b32.xlu0 %v168, 96
    %v170 = vpop.permute.xlu0 %169
    %v172 = vsel %vm54, %v91, 0
    %v175 = vsel %vm54, %v170, 0
    %177 = vmatpush.bf16.xpose.msra.mxu0 0
    %178 = vmatpush.bf16.xpose.msra.mxu0 0
    %179 = vmatpush.bf16.xpose.msra.mxu0 0
    %180 = vmatpush.bf16.xpose.msra.mxu0 0
    %181 = vmatpush.bf16.xpose.msra.mxu0 0
    %182 = vmatpush.bf16.xpose.msra.mxu0 0
    %183 = vmatpush.bf16.xpose.msra.mxu0 0
    %184 = vmatpush.bf16.xpose.msra.mxu0 %v175
    %185 = vmatmul.bf16.gmra.mxu0 %v172
    %v186 = vpop.f32.mrf.mxu0
    %v187 = vadd.f32 0.0, %v186
    %v188 = vpop.f32.mrf.mxu0
    %189 = vdwg.mxu0
    %v191 = vunpack.c.l.b16 %v92
    %v192 = vpack.c.b16 %v191, %v191
    %193 = vrot.lane.b32.xlu0 %v192, 96
    %v194 = vpop.permute.xlu0 %193
    %v196 = vsel %vm54, %v92, 0
    %v199 = vsel %vm54, %v194, 0
    %201 = vmatpush.bf16.xpose.msra.mxu0 0
    %202 = vmatpush.bf16.xpose.msra.mxu0 0
    %203 = vmatpush.bf16.xpose.msra.mxu0 0
    %204 = vmatpush.bf16.xpose.msra.mxu0 0
    %205 = vmatpush.bf16.xpose.msra.mxu0 0
    %206 = vmatpush.bf16.xpose.msra.mxu0 0
    %207 = vmatpush.bf16.xpose.msra.mxu0 0
    %208 = vmatpush.bf16.xpose.msra.mxu0 %v199
    %209 = vmatmul.bf16.gmra.mxu0 %v196
    %v210 = vpop.f32.mrf.mxu0
    %v211 = vadd.f32 0.0, %v210
    %v212 = vpop.f32.mrf.mxu0
    %213 = vdwg.mxu0
    %v215 = vunpack.c.l.b16 %v93
    %v216 = vpack.c.b16 %v215, %v215
    %217 = vrot.lane.b32.xlu0 %v216, 96
    %v218 = vpop.permute.xlu0 %217
    %v220 = vsel %vm54, %v93, 0
    %v223 = vsel %vm54, %v218, 0
    %225 = vmatpush.bf16.xpose.msra.mxu0 0
    %226 = vmatpush.bf16.xpose.msra.mxu0 0
    %227 = vmatpush.bf16.xpose.msra.mxu0 0
    %228 = vmatpush.bf16.xpose.msra.mxu0 0
    %229 = vmatpush.bf16.xpose.msra.mxu0 0
    %230 = vmatpush.bf16.xpose.msra.mxu0 0
    %231 = vmatpush.bf16.xpose.msra.mxu0 0
    %232 = vmatpush.bf16.xpose.msra.mxu0 %v223
    %233 = vmatmul.bf16.gmra.mxu0 %v220
    %v234 = vpop.f32.mrf.mxu0
    %v235 = vadd.f32 0.0, %v234
    %v236 = vpop.f32.mrf.mxu0
    %237 = vdwg.mxu0
    %v238 = vmul.f32 %v115, 0.17677669
    %v239 = vmul.f32 %v139, 0.17677669
    %v240 = vmul.f32 %v163, 0.17677669
    %v241 = vmul.f32 %v187, 0.17677669
    %v242 = vmul.f32 %v211, 0.17677669
    %v243 = vmul.f32 %v235, 0.17677669
    %vm244 = vcmask 64512
    %v245 = vsel %vm244, %v238, -inf
    %246 = vmax.xlane.f32.xlu0 %v245
    %v247 = vpop.xlane.xlu0 %246
    %v248 = vsel %vm244, %v239, -inf
    %249 = vmax.xlane.f32.xlu0 %v248
    %v250 = vpop.xlane.xlu0 %249
    %v251 = vsel %vm244, %v240, -inf
    %252 = vmax.xlane.f32.xlu0 %v251
    %v253 = vpop.xlane.xlu0 %252
    %v254 = vsel %vm244, %v241, -inf
    %255 = vmax.xlane.f32.xlu0 %v254
    %v256 = vpop.xlane.xlu0 %255
    %v257 = vsel %vm244, %v242, -inf
    %258 = vmax.xlane.f32.xlu0 %v257
    %v259 = vpop.xlane.xlu0 %258
    %v260 = vsel %vm244, %v243, -inf
    %261 = vmax.xlane.f32.xlu0 %v260
    %v262 = vpop.xlane.xlu0 %261
    %v263 = vsub.f32 %v238, %v247
    %v264 = vsub.f32 %v239, %v250
    %v265 = vsub.f32 %v240, %v253
    %v266 = vsub.f32 %v241, %v256
    %v267 = vsub.f32 %v242, %v259
    %v268 = vsub.f32 %v243, %v262
    %v269 = vmul.f32 %v263, 1.442695
    %v270 = vpow.pop %v269
    %v271 = vmul.f32 %v264, 1.442695
    %v272 = vpow.pop %v271
    %v273 = vmul.f32 %v265, 1.442695
    %v274 = vpow.pop %v273
    %v275 = vmul.f32 %v266, 1.442695
    %v276 = vpow.pop %v275
    %v277 = vmul.f32 %v267, 1.442695
    %v278 = vpow.pop %v277
    %v279 = vmul.f32 %v268, 1.442695
    %v280 = vpow.pop %v279
    %v281 = vsel %vm244, %v270, 0.0
    %282 = vadd.xlane.f32.xlu0 %v281
    %v283 = vpop.xlane.xlu0 %282
    %v284 = vsel %vm244, %v272, 0.0
    %285 = vadd.xlane.f32.xlu0 %v284
    %v286 = vpop.xlane.xlu0 %285
    %v287 = vsel %vm244, %v274, 0.0
    %288 = vadd.xlane.f32.xlu0 %v287
    %v289 = vpop.xlane.xlu0 %288
    %v290 = vsel %vm244, %v276, 0.0
    %291 = vadd.xlane.f32.xlu0 %v290
    %v292 = vpop.xlane.xlu0 %291
    %v293 = vsel %vm244, %v278, 0.0
    %294 = vadd.xlane.f32.xlu0 %v293
    %v295 = vpop.xlane.xlu0 %294
    %v296 = vsel %vm244, %v280, 0.0
    %297 = vadd.xlane.f32.xlu0 %v296
    %v298 = vpop.xlane.xlu0 %297
    %v299 = vrcp.pop %v283
    %v300 = vmul.f32 %v283, %v299
    %v301 = vsub.f32 1.0, %v300
    %v302 = vmul.f32 %v299, %v301
    %v303 = vadd.f32 %v299, %v302
    %vm304 = vweird.f32 %v283
    %vm305 = vweird.f32 %v299
    %vm306 = vmor %vm304, %vm305
    %v307 = vsel %vm306, %v299, %v303
    %v308 = vand.u32 2147483647, %v283
    %vm309 = vcmp.eq.f32.partialorder %v308, 8.507059e+37
    %v310 = vand.u32 %v283, 2147483648
    %v311 = vor.u32 1.1754944e-38, %v310
    %v312 = vsel %vm309, %v311, %v307
    %v313 = vmul.f32 %v270, %v312
    %v314 = vrcp.pop %v286
    %v315 = vmul.f32 %v286, %v314
    %v316 = vsub.f32 1.0, %v315
    %v317 = vmul.f32 %v314, %v316
    %v318 = vadd.f32 %v314, %v317
    %vm319 = vweird.f32 %v286
    %vm320 = vweird.f32 %v314
    %vm321 = vmor %vm319, %vm320
    %v322 = vsel %vm321, %v314, %v318
    %v323 = vand.u32 2147483647, %v286
    %vm324 = vcmp.eq.f32.partialorder %v323, 8.507059e+37
    %v325 = vand.u32 %v286, 2147483648
    %v326 = vor.u32 1.1754944e-38, %v325
    %v327 = vsel %vm324, %v326, %v322
    %v328 = vmul.f32 %v272, %v327
    %v329 = vrcp.pop %v289
    %v330 = vmul.f32 %v289, %v329
    %v331 = vsub.f32 1.0, %v330
    %v332 = vmul.f32 %v329, %v331
    %v333 = vadd.f32 %v329, %v332
    %vm334 = vweird.f32 %v289
    %vm335 = vweird.f32 %v329
    %vm336 = vmor %vm334, %vm335
    %v337 = vsel %vm336, %v329, %v333
    %v338 = vand.u32 2147483647, %v289
    %vm339 = vcmp.eq.f32.partialorder %v338, 8.507059e+37
    %v340 = vand.u32 %v289, 2147483648
    %v341 = vor.u32 1.1754944e-38, %v340
    %v342 = vsel %vm339, %v341, %v337
    %v343 = vmul.f32 %v274, %v342
    %v344 = vrcp.pop %v292
    %v345 = vmul.f32 %v292, %v344
    %v346 = vsub.f32 1.0, %v345
    %v347 = vmul.f32 %v344, %v346
    %v348 = vadd.f32 %v344, %v347
    %vm349 = vweird.f32 %v292
    %vm350 = vweird.f32 %v344
    %vm351 = vmor %vm349, %vm350
    %v352 = vsel %vm351, %v344, %v348
    %v353 = vand.u32 2147483647, %v292
    %vm354 = vcmp.eq.f32.partialorder %v353, 8.507059e+37
    %v355 = vand.u32 %v292, 2147483648
    %v356 = vor.u32 1.1754944e-38, %v355
    %v357 = vsel %vm354, %v356, %v352
    %v358 = vmul.f32 %v276, %v357
    %v359 = vrcp.pop %v295
    %v360 = vmul.f32 %v295, %v359
    %v361 = vsub.f32 1.0, %v360
    %v362 = vmul.f32 %v359, %v361
    %v363 = vadd.f32 %v359, %v362
    %vm364 = vweird.f32 %v295
    %vm365 = vweird.f32 %v359
    %vm366 = vmor %vm364, %vm365
    %v367 = vsel %vm366, %v359, %v363
    %v368 = vand.u32 2147483647, %v295
    %vm369 = vcmp.eq.f32.partialorder %v368, 8.507059e+37
    %v370 = vand.u32 %v295, 2147483648
    %v371 = vor.u32 1.1754944e-38, %v370
    %v372 = vsel %vm369, %v371, %v367
    %v373 = vmul.f32 %v278, %v372
    %v374 = vrcp.pop %v298
    %v375 = vmul.f32 %v298, %v374
    %v376 = vsub.f32 1.0, %v375
    %v377 = vmul.f32 %v374, %v376
    %v378 = vadd.f32 %v374, %v377
    %vm379 = vweird.f32 %v298
    %vm380 = vweird.f32 %v374
    %vm381 = vmor %vm379, %vm380
    %v382 = vsel %vm381, %v374, %v378
    %v383 = vand.u32 2147483647, %v298
    %vm384 = vcmp.eq.f32.partialorder %v383, 8.507059e+37
    %v385 = vand.u32 %v298, 2147483648
    %v386 = vor.u32 1.1754944e-38, %v385
    %v387 = vsel %vm384, %v386, %v382
    %v388 = vmul.f32 %v280, %v387
    %v389 = vpack.c.bf16 %v313, %v313
    %v390 = vpack.c.bf16 %v328, %v328
    %v391 = vpack.c.bf16 %v343, %v343
    %v392 = vpack.c.bf16 %v358, %v358
    %v393 = vpack.c.bf16 %v373, %v373
    %v394 = vpack.c.bf16 %v388, %v388
    %395 = vrot.lane.b32.xlu0 %v96, 64
    %v396 = vpop.permute.xlu0 %395
    %v398 = vsel %vm244, %v389, 0
    %vm400 = vcmask 1043456
    %v402 = vsel %vm400, %v396, 0
    %404 = vmatpush.bf16.msra.mxu0 0
    %405 = vmatpush.bf16.msra.mxu0 0
    %406 = vmatpush.bf16.msra.mxu0 0
    %407 = vmatpush.bf16.msra.mxu0 0
    %408 = vmatpush.bf16.msra.mxu0 0
    %409 = vmatpush.bf16.msra.mxu0 0
    %410 = vmatpush.bf16.msra.mxu0 0
    %411 = vmatpush.bf16.msra.mxu0 %v402
    %412 = vmatmul.bf16.gmra.mxu0 %v398
    %v413 = vpop.f32.mrf.mxu0
    %v414 = vadd.f32 0.0, %v413
    %v415 = vpop.f32.mrf.mxu0
    %416 = vdwg.mxu0
    %417 = vrot.lane.b32.xlu0 %v120, 64
    %v418 = vpop.permute.xlu0 %417
    %v420 = vsel %vm244, %v390, 0
    %v423 = vsel %vm400, %v418, 0
    %425 = vmatpush.bf16.msra.mxu0 0
    %426 = vmatpush.bf16.msra.mxu0 0
    %427 = vmatpush.bf16.msra.mxu0 0
    %428 = vmatpush.bf16.msra.mxu0 0
    %429 = vmatpush.bf16.msra.mxu0 0
    %430 = vmatpush.bf16.msra.mxu0 0
    %431 = vmatpush.bf16.msra.mxu0 0
    %432 = vmatpush.bf16.msra.mxu0 %v423
    %433 = vmatmul.bf16.gmra.mxu0 %v420
    %v434 = vpop.f32.mrf.mxu0
    %v435 = vadd.f32 0.0, %v434
    %v436 = vpop.f32.mrf.mxu0
    %437 = vdwg.mxu0
    %438 = vrot.lane.b32.xlu0 %v144, 64
    %v439 = vpop.permute.xlu0 %438
    %v441 = vsel %vm244, %v391, 0
    %v444 = vsel %vm400, %v439, 0
    %446 = vmatpush.bf16.msra.mxu0 0
    %447 = vmatpush.bf16.msra.mxu0 0
    %448 = vmatpush.bf16.msra.mxu0 0
    %449 = vmatpush.bf16.msra.mxu0 0
    %450 = vmatpush.bf16.msra.mxu0 0
    %451 = vmatpush.bf16.msra.mxu0 0
    %452 = vmatpush.bf16.msra.mxu0 0
    %453 = vmatpush.bf16.msra.mxu0 %v444
    %454 = vmatmul.bf16.gmra.mxu0 %v441
    %v455 = vpop.f32.mrf.mxu0
    %v456 = vadd.f32 0.0, %v455
    %v457 = vpop.f32.mrf.mxu0
    %458 = vdwg.mxu0
    %459 = vrot.lane.b32.xlu0 %v168, 64
    %v460 = vpop.permute.xlu0 %459
    %v462 = vsel %vm244, %v392, 0
    %v465 = vsel %vm400, %v460, 0
    %467 = vmatpush.bf16.msra.mxu0 0
    %468 = vmatpush.bf16.msra.mxu0 0
    %469 = vmatpush.bf16.msra.mxu0 0
    %470 = vmatpush.bf16.msra.mxu0 0
    %471 = vmatpush.bf16.msra.mxu0 0
    %472 = vmatpush.bf16.msra.mxu0 0
    %473 = vmatpush.bf16.msra.mxu0 0
    %474 = vmatpush.bf16.msra.mxu0 %v465
    %475 = vmatmul.bf16.gmra.mxu0 %v462
    %v476 = vpop.f32.mrf.mxu0
    %v477 = vadd.f32 0.0, %v476
    %v478 = vpop.f32.mrf.mxu0
    %479 = vdwg.mxu0
    %480 = vrot.lane.b32.xlu0 %v192, 64
    %v481 = vpop.permute.xlu0 %480
    %v483 = vsel %vm244, %v393, 0
    %v486 = vsel %vm400, %v481, 0
    %488 = vmatpush.bf16.msra.mxu0 0
    %489 = vmatpush.bf16.msra.mxu0 0
    %490 = vmatpush.bf16.msra.mxu0 0
    %491 = vmatpush.bf16.msra.mxu0 0
    %492 = vmatpush.bf16.msra.mxu0 0
    %493 = vmatpush.bf16.msra.mxu0 0
    %494 = vmatpush.bf16.msra.mxu0 0
    %495 = vmatpush.bf16.msra.mxu0 %v486
    %496 = vmatmul.bf16.gmra.mxu0 %v483
    %v497 = vpop.f32.mrf.mxu0
    %v498 = vadd.f32 0.0, %v497
    %v499 = vpop.f32.mrf.mxu0
    %500 = vdwg.mxu0
    %501 = vrot.lane.b32.xlu0 %v216, 64
    %v502 = vpop.permute.xlu0 %501
    %v504 = vsel %vm244, %v394, 0
    %v507 = vsel %vm400, %v502, 0
    %509 = vmatpush.bf16.msra.mxu0 0
    %510 = vmatpush.bf16.msra.mxu0 0
    %511 = vmatpush.bf16.msra.mxu0 0
    %512 = vmatpush.bf16.msra.mxu0 0
    %513 = vmatpush.bf16.msra.mxu0 0
    %514 = vmatpush.bf16.msra.mxu0 0
    %515 = vmatpush.bf16.msra.mxu0 0
    %516 = vmatpush.bf16.msra.mxu0 %v507
    %517 = vmatmul.bf16.gmra.mxu0 %v504
    %v518 = vpop.f32.mrf.mxu0
    %v519 = vadd.f32 0.0, %v518
    %v520 = vpop.f32.mrf.mxu0
    %521 = vdwg.mxu0
    %v522 = vadd.f32 %v414, %v25
    %v523 = vadd.f32 %v435, %v26
    %v524 = vsel %vm54, %v522, 0.0
    %525 = vadd.xlane.f32.xlu0 %v524
    %v526 = vpop.xlane.xlu0 %525
    %v527 = vsel %vm54, %v523, 0.0
    %528 = vadd.xlane.f32.xlu0 %v527
    %v529 = vpop.xlane.xlu0 %528
    %v530 = vrcp.pop 32.0
    %v531 = vmul.f32 32.0, %v530
    %v532 = vsub.f32 1.0, %v531
    %v533 = vmul.f32 %v530, %v532
    %v534 = vadd.f32 %v530, %v533
    %vm535 = vweird.f32 %v530
    %v536 = vsel %vm535, %v530, %v534
    %v537 = vmul.f32 %v526, %v536
    %v538 = vmul.f32 %v529, %v536
    %v539 = vsub.f32 %v522, %v537
    %v540 = vsub.f32 %v523, %v538
    %v541 = vmul.f32 %v539, %v539
    %v542 = vmul.f32 %v540, %v540
    %v543 = vsel %vm54, %v541, 0.0
    %544 = vadd.xlane.f32.xlu0 %v543
    %v545 = vpop.xlane.xlu0 %544
    %v546 = vsel %vm54, %v542, 0.0
    %547 = vadd.xlane.f32.xlu0 %v546
    %v548 = vpop.xlane.xlu0 %547
    %v549 = vmul.f32 %v545, %v536
    %v550 = vmul.f32 %v548, %v536
    %v551 = vadd.f32 %v549, 1e-05
    %v552 = vadd.f32 %v550, 1e-05
    %v553 = vrsqrt.pop %v551
    %v554 = vmul.f32 %v553, %v551
    %v555 = vmul.f32 %v554, %v553
    %v556 = vmul.f32 0.5, %v555
    %v557 = vsub.f32 1.5, %v556
    %v558 = vmul.f32 %v553, %v557
    %vm559 = vweird.f32 %v551
    %vm560 = vweird.f32 %v553
    %vm561 = vmor %vm559, %vm560
    %v562 = vsel %vm561, %v553, %v558
    %v563 = vrsqrt.pop %v552
    %v564 = vmul.f32 %v563, %v552
    %v565 = vmul.f32 %v564, %v563
    %v566 = vmul.f32 0.5, %v565
    %v567 = vsub.f32 1.5, %v566
    %v568 = vmul.f32 %v563, %v567
    %vm569 = vweird.f32 %v552
    %vm570 = vweird.f32 %v563
    %vm571 = vmor %vm569, %vm570
    %v572 = vsel %vm571, %v563, %v568
    %v573 = vmul.f32 %v539, %v562
    %v574 = vmul.f32 %v540, %v572
    %v575 = vld [vmem:[%s3] sm:$0x1]
    %v576 = vperm.slane %v575, 0
    %v577 = vmul.f32 %v573, %v576
    %v578 = vmul.f32 %v574, %v576
    %v579 = vld [vmem:[%s4] sm:$0x1]
    %v580 = vperm.slane %v579, 0
    %v581 = vadd.f32 %v577, %v580
    %v582 = vadd.f32 %v578, %v580
    %v583 = vsub.f32 0.0, %v581
    %v584 = vsub.f32 0.0, %v582
    %v585 = vmul.f32 %v583, 1.442695
    %v586 = vpow.pop %v585
    %v587 = vmul.f32 %v584, 1.442695
    %v588 = vpow.pop %v587
    %v589 = vadd.f32 %v586, 1.0
    %v590 = vadd.f32 %v588, 1.0
    %v591 = vrcp.pop %v589
    %v592 = vmul.f32 %v589, %v591
    %v593 = vsub.f32 1.0, %v592
    %v594 = vmul.f32 %v591, %v593
    %v595 = vadd.f32 %v591, %v594
    %vm596 = vweird.f32 %v589
    %vm597 = vweird.f32 %v591
    %vm598 = vmor %vm596, %vm597
    %v599 = vsel %vm598, %v591, %v595
    %v600 = vand.u32 2147483647, %v589
    %vm601 = vcmp.eq.f32.partialorder %v600, 8.507059e+37
    %v602 = vand.u32 %v589, 2147483648
    %v603 = vor.u32 1.1754944e-38, %v602
    %v604 = vsel %vm601, %v603, %v599
    %v605 = vmul.f32 %v581, %v604
    %v606 = vrcp.pop %v590
    %v607 = vmul.f32 %v590, %v606
    %v608 = vsub.f32 1.0, %v607
    %v609 = vmul.f32 %v606, %v608
    %v610 = vadd.f32 %v606, %v609
    %vm611 = vweird.f32 %v590
    %vm612 = vweird.f32 %v606
    %vm613 = vmor %vm611, %vm612
    %v614 = vsel %vm613, %v606, %v610
    %v615 = vand.u32 2147483647, %v590
    %vm616 = vcmp.eq.f32.partialorder %v615, 8.507059e+37
    %v617 = vand.u32 %v590, 2147483648
    %v618 = vor.u32 1.1754944e-38, %v617
    %v619 = vsel %vm616, %v618, %v614
    %v620 = vmul.f32 %v582, %v619
    %vm621 = vcmp.ge.f32.partialorder %v581, -2.2
    %vm622 = vcmp.ge.f32.partialorder %v582, -2.2
    %vm623 = vcmp.lt.f32.partialorder %v581, -1.8
    %vm624 = vcmp.lt.f32.partialorder %v582, -1.8
    %vm625 = vmand %vm621, %vm623
    %vm626 = vmand %vm622, %vm624
    %v627 = vsel %vm625, 1, 0
    %v628 = vsel %vm626, 1, 0
    %v629 = vcvt.s32.f32 %v627
    %v630 = vcvt.s32.f32 %v628
    %vm631 = vcmp.ge.f32.partialorder %v581, -1.8
    %vm632 = vcmp.ge.f32.partialorder %v582, -1.8
    %vm633 = vcmp.lt.f32.partialorder %v581, -1.4
    %vm634 = vcmp.lt.f32.partialorder %v582, -1.4
    %vm635 = vmand %vm631, %vm633
    %vm636 = vmand %vm632, %vm634
    %v637 = vsel %vm635, 1, 0
    %v638 = vsel %vm636, 1, 0
    %v639 = vcvt.s32.f32 %v637
    %v640 = vcvt.s32.f32 %v638
    %vm641 = vcmp.ge.f32.partialorder %v581, -1.4
    %vm642 = vcmp.ge.f32.partialorder %v582, -1.4
    %vm643 = vcmp.lt.f32.partialorder %v581, -1.0
    %vm644 = vcmp.lt.f32.partialorder %v582, -1.0
    %vm645 = vmand %vm641, %vm643
    %vm646 = vmand %vm642, %vm644
    %v647 = vsel %vm645, 1, 0
    %v648 = vsel %vm646, 1, 0
    %v649 = vcvt.s32.f32 %v647
    %v650 = vcvt.s32.f32 %v648
    %vm651 = vcmp.ge.f32.partialorder %v581, -1.0
    %vm652 = vcmp.ge.f32.partialorder %v582, -1.0
    %vm653 = vcmp.lt.f32.partialorder %v581, -0.6
    %vm654 = vcmp.lt.f32.partialorder %v582, -0.6
    %vm655 = vmand %vm651, %vm653
    %vm656 = vmand %vm652, %vm654
    %v657 = vsel %vm655, 1, 0
    %v658 = vsel %vm656, 1, 0
    %v659 = vcvt.s32.f32 %v657
    %v660 = vcvt.s32.f32 %v658
    %vm661 = vcmp.ge.f32.partialorder %v581, -0.6
    %vm662 = vcmp.ge.f32.partialorder %v582, -0.6
    %vm663 = vcmp.lt.f32.partialorder %v581, -0.2
    %vm664 = vcmp.lt.f32.partialorder %v582, -0.2
    %vm665 = vmand %vm661, %vm663
    %vm666 = vmand %vm662, %vm664
    %v667 = vsel %vm665, 1, 0
    %v668 = vsel %vm666, 1, 0
    %v669 = vcvt.s32.f32 %v667
    %v670 = vcvt.s32.f32 %v668
    %vm671 = vcmp.ge.f32.partialorder %v581, -0.2
    %vm672 = vcmp.ge.f32.partialorder %v582, -0.2
    %vm673 = vcmp.lt.f32.partialorder %v581, 0.2
    %vm674 = vcmp.lt.f32.partialorder %v582, 0.2
    %vm675 = vmand %vm671, %vm673
    %vm676 = vmand %vm672, %vm674
    %v677 = vsel %vm675, 1, 0
    %v678 = vsel %vm676, 1, 0
    %v679 = vcvt.s32.f32 %v677
    %v680 = vcvt.s32.f32 %v678
    %vm681 = vcmp.ge.f32.partialorder %v581, 0.2
    %vm682 = vcmp.ge.f32.partialorder %v582, 0.2
    %vm683 = vcmp.lt.f32.partialorder %v581, 0.6
    %vm684 = vcmp.lt.f32.partialorder %v582, 0.6
    %vm685 = vmand %vm681, %vm683
    %vm686 = vmand %vm682, %vm684
    %v687 = vsel %vm685, 1, 0
    %v688 = vsel %vm686, 1, 0
    %v689 = vcvt.s32.f32 %v687
    %v690 = vcvt.s32.f32 %v688
    %vm691 = vcmp.ge.f32.partialorder %v581, 0.6
    %vm692 = vcmp.ge.f32.partialorder %v582, 0.6
    %vm693 = vcmp.lt.f32.partialorder %v581, 1.0
    %vm694 = vcmp.lt.f32.partialorder %v582, 1.0
    %vm695 = vmand %vm691, %vm693
    %vm696 = vmand %vm692, %vm694
    %v697 = vsel %vm695, 1, 0
    %v698 = vsel %vm696, 1, 0
    %v699 = vcvt.s32.f32 %v697
    %v700 = vcvt.s32.f32 %v698
    %vm701 = vcmp.ge.f32.partialorder %v581, 1.0
    %vm702 = vcmp.ge.f32.partialorder %v582, 1.0
    %vm703 = vcmp.lt.f32.partialorder %v581, 1.4
    %vm704 = vcmp.lt.f32.partialorder %v582, 1.4
    %vm705 = vmand %vm701, %vm703
    %vm706 = vmand %vm702, %vm704
    %v707 = vsel %vm705, 1, 0
    %v708 = vsel %vm706, 1, 0
    %v709 = vcvt.s32.f32 %v707
    %v710 = vcvt.s32.f32 %v708
    %vm711 = vcmp.ge.f32.partialorder %v581, 1.4
    %vm712 = vcmp.ge.f32.partialorder %v582, 1.4
    %vm713 = vcmp.lt.f32.partialorder %v581, 1.8
    %vm714 = vcmp.lt.f32.partialorder %v582, 1.8
    %vm715 = vmand %vm711, %vm713
    %vm716 = vmand %vm712, %vm714
    %v717 = vsel %vm715, 1, 0
    %v718 = vsel %vm716, 1, 0
    %v719 = vcvt.s32.f32 %v717
    %v720 = vcvt.s32.f32 %v718
    %vm721 = vcmp.ge.f32.partialorder %v581, 1.8
    %vm722 = vcmp.ge.f32.partialorder %v582, 1.8
    %vm723 = vcmp.lt.f32.partialorder %v581, 2.2
    %vm724 = vcmp.lt.f32.partialorder %v582, 2.2
    %vm725 = vmand %vm721, %vm723
    %vm726 = vmand %vm722, %vm724
    %v727 = vsel %vm725, 1, 0
    %v728 = vsel %vm726, 1, 0
    %v729 = vcvt.s32.f32 %v727
    %v730 = vcvt.s32.f32 %v728
    %v731 = vsub.f32 %v581, -2.2
    %v732 = vsub.f32 %v582, -2.2
    %v733 = vmul.f32 %v731, 2.5
    %v734 = vmul.f32 %v732, 2.5
    %v735 = vsub.f32 %v581, -1.8
    %v736 = vsub.f32 %v582, -1.8
    %v737 = vmul.f32 %v735, 2.5
    %v738 = vmul.f32 %v736, 2.5
    %v739 = vsub.f32 %v581, -1.4
    %v740 = vsub.f32 %v582, -1.4
    %v741 = vmul.f32 %v739, 2.5
    %v742 = vmul.f32 %v740, 2.5
    %v743 = vsub.f32 %v581, -1.0
    %v744 = vsub.f32 %v582, -1.0
    %v745 = vmul.f32 %v743, 2.5
    %v746 = vmul.f32 %v744, 2.5
    %v747 = vsub.f32 %v581, -0.6
    %v748 = vsub.f32 %v582, -0.6
    %v749 = vmul.f32 %v747, 2.5
    %v750 = vmul.f32 %v748, 2.5
    %v751 = vsub.f32 %v581, -0.2
    %v752 = vsub.f32 %v582, -0.2
    %v753 = vmul.f32 %v751, 2.5
    %v754 = vmul.f32 %v752, 2.5
    %v755 = vsub.f32 %v581, 0.2
    %v756 = vsub.f32 %v582, 0.2
    %v757 = vmul.f32 %v755, 2.5
    %v758 = vmul.f32 %v756, 2.5
    %v759 = vsub.f32 %v581, 0.6
    %v760 = vsub.f32 %v582, 0.6
    %v761 = vmul.f32 %v759, 2.5
    %v762 = vmul.f32 %v760, 2.5
    %v763 = vsub.f32 %v581, 1.0
    %v764 = vsub.f32 %v582, 1.0
    %v765 = vmul.f32 %v763, 2.5
    %v766 = vmul.f32 %v764, 2.5
    %v767 = vsub.f32 %v581, 1.4
    %v768 = vsub.f32 %v582, 1.4
    %v769 = vmul.f32 %v767, 2.5
    %v770 = vmul.f32 %v768, 2.5
    %v771 = vsub.f32 %v581, 1.8
    %v772 = vsub.f32 %v582, 1.8
    %v773 = vmul.f32 %v771, 2.5
    %v774 = vmul.f32 %v772, 2.5
    %v775 = vmul.f32 %v733, %v629
    %v776 = vmul.f32 %v734, %v630
    %v777 = vadd.f32 %v775, %v639
    %v778 = vadd.f32 %v776, %v640
    %v779 = vmul.f32 %v737, %v639
    %v780 = vmul.f32 %v738, %v640
    %v781 = vsub.f32 %v777, %v779
    %v782 = vsub.f32 %v778, %v780
    %v783 = vadd.f32 %v779, %v649
    %v784 = vadd.f32 %v780, %v650
    %v785 = vmul.f32 %v741, %v649
    %v786 = vmul.f32 %v742, %v650
    %v787 = vsub.f32 %v783, %v785
    %v788 = vsub.f32 %v784, %v786
    %v789 = vadd.f32 %v785, %v659
    %v790 = vadd.f32 %v786, %v660
    %v791 = vmul.f32 %v745, %v659
    %v792 = vmul.f32 %v746, %v660
    %v793 = vsub.f32 %v789, %v791
    %v794 = vsub.f32 %v790, %v792
    %v795 = vadd.f32 %v791, %v669
    %v796 = vadd.f32 %v792, %v670
    %v797 = vmul.f32 %v749, %v669
    %v798 = vmul.f32 %v750, %v670
    %v799 = vsub.f32 %v795, %v797
    %v800 = vsub.f32 %v796, %v798
    %v801 = vadd.f32 %v797, %v679
    %v802 = vadd.f32 %v798, %v680
    %v803 = vmul.f32 %v753, %v679
    %v804 = vmul.f32 %v754, %v680
    %v805 = vsub.f32 %v801, %v803
    %v806 = vsub.f32 %v802, %v804
    %v807 = vadd.f32 %v803, %v689
    %v808 = vadd.f32 %v804, %v690
    %v809 = vmul.f32 %v757, %v689
    %v810 = vmul.f32 %v758, %v690
    %v811 = vsub.f32 %v807, %v809
    %v812 = vsub.f32 %v808, %v810
    %v813 = vadd.f32 %v809, %v699
    %v814 = vadd.f32 %v810, %v700
    %v815 = vmul.f32 %v761, %v699
    %v816 = vmul.f32 %v762, %v700
    %v817 = vsub.f32 %v813, %v815
    %v818 = vsub.f32 %v814, %v816
    %v819 = vadd.f32 %v815, %v709
    %v820 = vadd.f32 %v816, %v710
    %v821 = vmul.f32 %v765, %v709
    %v822 = vmul.f32 %v766, %v710
    %v823 = vsub.f32 %v819, %v821
    %v824 = vsub.f32 %v820, %v822
    %v825 = vadd.f32 %v821, %v719
    %v826 = vadd.f32 %v822, %v720
    %v827 = vmul.f32 %v769, %v719
    %v828 = vmul.f32 %v770, %v720
    %v829 = vsub.f32 %v825, %v827
    %v830 = vsub.f32 %v826, %v828
    %v831 = vadd.f32 %v827, %v729
    %v832 = vadd.f32 %v828, %v730
    %v833 = vmul.f32 %v773, %v729
    %v834 = vmul.f32 %v774, %v730
    %v835 = vsub.f32 %v831, %v833
    %v836 = vsub.f32 %v832, %v834
    %v837 = vmul.f32 %v731, 1.25
    %v838 = vmul.f32 %v732, 1.25
    %v839 = vmul.f32 %v735, 1.25
    %v840 = vmul.f32 %v736, 1.25
    %v841 = vmul.f32 %v739, 1.25
    %v842 = vmul.f32 %v740, 1.25
    %v843 = vmul.f32 %v743, 1.25
    %v844 = vmul.f32 %v744, 1.25
    %v845 = vmul.f32 %v747, 1.25
    %v846 = vmul.f32 %v748, 1.25
    %v847 = vmul.f32 %v751, 1.25
    %v848 = vmul.f32 %v752, 1.25
    %v849 = vmul.f32 %v755, 1.25
    %v850 = vmul.f32 %v756, 1.25
    %v851 = vmul.f32 %v759, 1.25
    %v852 = vmul.f32 %v760, 1.25
    %v853 = vmul.f32 %v763, 1.25
    %v854 = vmul.f32 %v764, 1.25
    %v855 = vmul.f32 %v767, 1.25
    %v856 = vmul.f32 %v768, 1.25
    %v857 = vmul.f32 %v837, %v781
    %v858 = vmul.f32 %v838, %v782
    %v859 = vadd.f32 %v857, %v787
    %v860 = vadd.f32 %v858, %v788
    %v861 = vmul.f32 %v839, %v787
    %v862 = vmul.f32 %v840, %v788
    %v863 = vsub.f32 %v859, %v861
    %v864 = vsub.f32 %v860, %v862
    %v865 = vadd.f32 %v861, %v793
    %v866 = vadd.f32 %v862, %v794
    %v867 = vmul.f32 %v841, %v793
    %v868 = vmul.f32 %v842, %v794
    %v869 = vsub.f32 %v865, %v867
    %v870 = vsub.f32 %v866, %v868
    %v871 = vadd.f32 %v867, %v799
    %v872 = vadd.f32 %v868, %v800
    %v873 = vmul.f32 %v843, %v799
    %v874 = vmul.f32 %v844, %v800
    %v875 = vsub.f32 %v871, %v873
    %v876 = vsub.f32 %v872, %v874
    %v877 = vadd.f32 %v873, %v805
    %v878 = vadd.f32 %v874, %v806
    %v879 = vmul.f32 %v845, %v805
    %v880 = vmul.f32 %v846, %v806
    %v881 = vsub.f32 %v877, %v879
    %v882 = vsub.f32 %v878, %v880
    %v883 = vadd.f32 %v879, %v811
    %v884 = vadd.f32 %v880, %v812
    %v885 = vmul.f32 %v847, %v811
    %v886 = vmul.f32 %v848, %v812
    %v887 = vsub.f32 %v883, %v885
    %v888 = vsub.f32 %v884, %v886
    %v889 = vadd.f32 %v885, %v817
    %v890 = vadd.f32 %v886, %v818
    %v891 = vmul.f32 %v849, %v817
    %v892 = vmul.f32 %v850, %v818
    %v893 = vsub.f32 %v889, %v891
    %v894 = vsub.f32 %v890, %v892
    %v895 = vadd.f32 %v891, %v823
    %v896 = vadd.f32 %v892, %v824
    %v897 = vmul.f32 %v851, %v823
    %v898 = vmul.f32 %v852, %v824
    %v899 = vsub.f32 %v895, %v897
    %v900 = vsub.f32 %v896, %v898
    %v901 = vadd.f32 %v897, %v829
    %v902 = vadd.f32 %v898, %v830
    %v903 = vmul.f32 %v853, %v829
    %v904 = vmul.f32 %v854, %v830
    %v905 = vsub.f32 %v901, %v903
    %v906 = vsub.f32 %v902, %v904
    %v907 = vadd.f32 %v903, %v835
    %v908 = vadd.f32 %v904, %v836
    %v909 = vmul.f32 %v855, %v835
    %v910 = vmul.f32 %v856, %v836
    %v911 = vsub.f32 %v907, %v909
    %v912 = vsub.f32 %v908, %v910
    %v913 = vmul.f32 %v731, 0.8333333
    %v914 = vmul.f32 %v732, 0.8333333
    %v915 = vmul.f32 %v735, 0.8333333
    %v916 = vmul.f32 %v736, 0.8333333
    %v917 = vmul.f32 %v739, 0.8333333
    %v918 = vmul.f32 %v740, 0.8333333
    %v919 = vmul.f32 %v743, 0.8333333
    %v920 = vmul.f32 %v744, 0.8333333
    %v921 = vmul.f32 %v747, 0.8333333
    %v922 = vmul.f32 %v748, 0.8333333
    %v923 = vmul.f32 %v751, 0.8333333
    %v924 = vmul.f32 %v752, 0.8333333
    %v925 = vmul.f32 %v755, 0.8333333
    %v926 = vmul.f32 %v756, 0.8333333
    %v927 = vmul.f32 %v759, 0.8333333
    %v928 = vmul.f32 %v760, 0.8333333
    %v929 = vmul.f32 %v763, 0.8333333
    %v930 = vmul.f32 %v764, 0.8333333
    %v931 = vmul.f32 %v913, %v863
    %v932 = vmul.f32 %v914, %v864
    %v933 = vadd.f32 %v931, %v869
    %v934 = vadd.f32 %v932, %v870
    %v935 = vmul.f32 %v915, %v869
    %v936 = vmul.f32 %v916, %v870
    %v937 = vsub.f32 %v933, %v935
    %v938 = vsub.f32 %v934, %v936
    %v939 = vadd.f32 %v935, %v875
    %v940 = vadd.f32 %v936, %v876
    %v941 = vmul.f32 %v917, %v875
    %v942 = vmul.f32 %v918, %v876
    %v943 = vsub.f32 %v939, %v941
    %v944 = vsub.f32 %v940, %v942
    %v945 = vadd.f32 %v941, %v881
    %v946 = vadd.f32 %v942, %v882
    %v947 = vmul.f32 %v919, %v881
    %v948 = vmul.f32 %v920, %v882
    %v949 = vsub.f32 %v945, %v947
    %v950 = vsub.f32 %v946, %v948
    %v951 = vadd.f32 %v947, %v887
    %v952 = vadd.f32 %v948, %v888
    %v953 = vmul.f32 %v921, %v887
    %v954 = vmul.f32 %v922, %v888
    %v955 = vsub.f32 %v951, %v953
    %v956 = vsub.f32 %v952, %v954
    %v957 = vadd.f32 %v953, %v893
    %v958 = vadd.f32 %v954, %v894
    %v959 = vmul.f32 %v923, %v893
    %v960 = vmul.f32 %v924, %v894
    %v961 = vsub.f32 %v957, %v959
    %v962 = vsub.f32 %v958, %v960
    %v963 = vadd.f32 %v959, %v899
    %v964 = vadd.f32 %v960, %v900
    %v965 = vmul.f32 %v925, %v899
    %v966 = vmul.f32 %v926, %v900
    %v967 = vsub.f32 %v963, %v965
    %v968 = vsub.f32 %v964, %v966
    %v969 = vadd.f32 %v965, %v905
    %v970 = vadd.f32 %v966, %v906
    %v971 = vmul.f32 %v927, %v905
    %v972 = vmul.f32 %v928, %v906
    %v973 = vsub.f32 %v969, %v971
    %v974 = vsub.f32 %v970, %v972
    %v975 = vadd.f32 %v971, %v911
    %v976 = vadd.f32 %v972, %v912
    %v977 = vmul.f32 %v929, %v911
    %v978 = vmul.f32 %v930, %v912
    %v979 = vsub.f32 %v975, %v977
    %v980 = vsub.f32 %v976, %v978
    %v981 = vpack.c.bf16 %v605, %v605
    %v982 = vpack.c.bf16 %v620, %v620
    %v983 = vpack.c.bf16 %v937, %v937
    %v984 = vpack.c.bf16 %v938, %v938
    %v985 = vpack.c.bf16 %v943, %v943
    %v986 = vpack.c.bf16 %v944, %v944
    %v987 = vpack.c.bf16 %v949, %v949
    %v988 = vpack.c.bf16 %v950, %v950
    %v989 = vpack.c.bf16 %v955, %v955
    %v990 = vpack.c.bf16 %v956, %v956
    %v991 = vpack.c.bf16 %v961, %v961
    %v992 = vpack.c.bf16 %v962, %v962
    %v993 = vpack.c.bf16 %v967, %v967
    %v994 = vpack.c.bf16 %v968, %v968
    %v995 = vpack.c.bf16 %v973, %v973
    %v996 = vpack.c.bf16 %v974, %v974
    %v997 = vpack.c.bf16 %v979, %v979
    %v998 = vpack.c.bf16 %v980, %v980
    %v1001 = vunpack.c.l.b16 %v981
    %v1002 = vunpack.c.l.b16 %v982
    %v1003 = vpack.c.b16 %v1002, %v1001
    %v1006 = vunpack.c.l.b16 %v983
    %v1007 = vunpack.c.l.b16 %v984
    %v1008 = vpack.c.b16 %v1007, %v1006
    %1009 = vrot.lane.b32.xlu0 %v1008, 32
    %v1010 = vpop.permute.xlu0 %1009
    %v1013 = vunpack.c.l.b16 %v985
    %v1014 = vunpack.c.l.b16 %v986
    %v1015 = vpack.c.b16 %v1014, %v1013
    %1016 = vrot.lane.b32.xlu0 %v1015, 64
    %v1017 = vpop.permute.xlu0 %1016
    %v1020 = vunpack.c.l.b16 %v987
    %v1021 = vunpack.c.l.b16 %v988
    %v1022 = vpack.c.b16 %v1021, %v1020
    %1023 = vrot.lane.b32.xlu0 %v1022, 96
    %v1024 = vpop.permute.xlu0 %1023
    %v1027 = vunpack.c.l.b16 %v989
    %v1028 = vunpack.c.l.b16 %v990
    %v1029 = vpack.c.b16 %v1028, %v1027
    %v1032 = vunpack.c.l.b16 %v991
    %v1033 = vunpack.c.l.b16 %v992
    %v1034 = vpack.c.b16 %v1033, %v1032
    %1035 = vrot.lane.b32.xlu0 %v1034, 32
    %v1036 = vpop.permute.xlu0 %1035
    %v1039 = vunpack.c.l.b16 %v993
    %v1040 = vunpack.c.l.b16 %v994
    %v1041 = vpack.c.b16 %v1040, %v1039
    %1042 = vrot.lane.b32.xlu0 %v1041, 64
    %v1043 = vpop.permute.xlu0 %1042
    %v1046 = vunpack.c.l.b16 %v995
    %v1047 = vunpack.c.l.b16 %v996
    %v1048 = vpack.c.b16 %v1047, %v1046
    %1049 = vrot.lane.b32.xlu0 %v1048, 96
    %v1050 = vpop.permute.xlu0 %1049
    %v1053 = vunpack.c.l.b16 %v997
    %v1054 = vunpack.c.l.b16 %v998
    %v1055 = vpack.c.b16 %v1054, %v1053
    %v1058 = vsel %vm54, %v1003, %v1010
    %vm1059 = vcmask 523264
    %v1061 = vsel %vm1059, %v1058, %v1017
    %vm1062 = vcmask 785408
    %v1064 = vsel %vm1062, %v1061, %v1024
    %v1068 = vsel %vm54, %v1029, %v1036
    %v1070 = vsel %vm1059, %v1068, %v1043
    %v1072 = vsel %vm1062, %v1070, %v1050
    %v1074 = vld [vmem:[%s5] sm:$0xf]
    %v1075 = vld [vmem:[%s5 + $0x4] sm:$0xf]
    %v1076 = vld [vmem:[%s5 + $0x8] sm:$0xf]
    %v1077 = vld [vmem:[%s5 + $0xc] sm:$0xf]
    %v1078 = vld [vmem:[%s5 + $0x10] sm:$0xf]
    %v1079 = vld [vmem:[%s5 + $0x14] sm:$0xf]
    %v1080 = vld [vmem:[%s5 + $0x18] sm:$0xf]
    %v1081 = vld [vmem:[%s5 + $0x1c] sm:$0xf]
    %v1082 = vld [vmem:[%s5 + $0x20] sm:$0xf]
    %v1083 = vld [vmem:[%s5 + $0x24] sm:$0xf]
    %v1084 = vld [vmem:[%s5 + $0x28] sm:$0xf]
    %v1085 = vld [vmem:[%s5 + $0x2c] sm:$0xf]
    %v1086 = vld [vmem:[%s5 + $0x30] sm:$0xf]
    %v1087 = vld [vmem:[%s5 + $0x34] sm:$0xf]
    %v1088 = vld [vmem:[%s5 + $0x38] sm:$0xf]
    %v1089 = vld [vmem:[%s5 + $0x3c] sm:$0xf]
    %v1090 = vld [vmem:[%s5 + $0x40] sm:$0xf]
    %v1091 = vld [vmem:[%s5 + $0x44] sm:$0xf]
    %v1092 = vld [vmem:[%s5 + $0x48] sm:$0xf]
    %v1093 = vld [vmem:[%s5 + $0x4c] sm:$0xf]
    %v1094 = vld [vmem:[%s5 + $0x50] sm:$0xf]
    %v1095 = vld [vmem:[%s5 + $0x54] sm:$0xf]
    %v1096 = vld [vmem:[%s5 + $0x58] sm:$0xf]
    %v1097 = vld [vmem:[%s5 + $0x5c] sm:$0xf]
    %v1098 = vld [vmem:[%s5 + $0x60] sm:$0xf]
    %v1099 = vld [vmem:[%s5 + $0x64] sm:$0xf]
    %v1100 = vld [vmem:[%s5 + $0x68] sm:$0xf]
    %v1101 = vld [vmem:[%s5 + $0x6c] sm:$0xf]
    %v1102 = vld [vmem:[%s5 + $0x70] sm:$0xf]
    %v1103 = vld [vmem:[%s5 + $0x74] sm:$0xf]
    %v1104 = vld [vmem:[%s5 + $0x78] sm:$0xf]
    %v1105 = vld [vmem:[%s5 + $0x7c] sm:$0xf]
    %v1106 = vld [vmem:[%s5 + $0x80] sm:$0xf]
    %v1107 = vld [vmem:[%s5 + $0x84] sm:$0xf]
    %v1108 = vld [vmem:[%s5 + $0x88] sm:$0xf]
    %v1109 = vld [vmem:[%s5 + $0x8c] sm:$0xf]
    %v1110 = vadd.f32 %v456, %v27
    %v1111 = vadd.f32 %v477, %v28
    %v1112 = vsel %vm54, %v1110, 0.0
    %1113 = vadd.xlane.f32.xlu0 %v1112
    %v1114 = vpop.xlane.xlu0 %1113
    %v1115 = vsel %vm54, %v1111, 0.0
    %1116 = vadd.xlane.f32.xlu0 %v1115
    %v1117 = vpop.xlane.xlu0 %1116
    %v1118 = vmul.f32 %v1114, %v536
    %v1119 = vmul.f32 %v1117, %v536
    %v1120 = vsub.f32 %v1110, %v1118
    %v1121 = vsub.f32 %v1111, %v1119
    %v1122 = vmul.f32 %v1120, %v1120
    %v1123 = vmul.f32 %v1121, %v1121
    %v1124 = vsel %vm54, %v1122, 0.0
    %1125 = vadd.xlane.f32.xlu0 %v1124
    %v1126 = vpop.xlane.xlu0 %1125
    %v1127 = vsel %vm54, %v1123, 0.0
    %1128 = vadd.xlane.f32.xlu0 %v1127
    %v1129 = vpop.xlane.xlu0 %1128
    %v1130 = vmul.f32 %v1126, %v536
    %v1131 = vmul.f32 %v1129, %v536
    %v1132 = vadd.f32 %v1130, 1e-05
    %v1133 = vadd.f32 %v1131, 1e-05
    %v1134 = vrsqrt.pop %v1132
    %v1135 = vmul.f32 %v1134, %v1132
    %v1136 = vmul.f32 %v1135, %v1134
    %v1137 = vmul.f32 0.5, %v1136
    %v1138 = vsub.f32 1.5, %v1137
    %v1139 = vmul.f32 %v1134, %v1138
    %vm1140 = vweird.f32 %v1132
    %vm1141 = vweird.f32 %v1134
    %vm1142 = vmor %vm1140, %vm1141
    %v1143 = vsel %vm1142, %v1134, %v1139
    %v1144 = vrsqrt.pop %v1133
    %v1145 = vmul.f32 %v1144, %v1133
    %v1146 = vmul.f32 %v1145, %v1144
    %v1147 = vmul.f32 0.5, %v1146
    %v1148 = vsub.f32 1.5, %v1147
    %v1149 = vmul.f32 %v1144, %v1148
    %vm1150 = vweird.f32 %v1133
    %vm1151 = vweird.f32 %v1144
    %vm1152 = vmor %vm1150, %vm1151
    %v1153 = vsel %vm1152, %v1144, %v1149
    %v1154 = vmul.f32 %v1120, %v1143
    %v1155 = vmul.f32 %v1121, %v1153
    %v1156 = vld [vmem:[%s3 + $0x1] sm:$0x1]
    %v1157 = vperm.slane %v1156, 0
    %v1158 = vmul.f32 %v1154, %v1157
    %v1159 = vmul.f32 %v1155, %v1157
    %v1160 = vld [vmem:[%s4 + $0x1] sm:$0x1]
    %v1161 = vperm.slane %v1160, 0
    %v1162 = vadd.f32 %v1158, %v1161
    %v1163 = vadd.f32 %v1159, %v1161
    %v1164 = vsub.f32 0.0, %v1162
    %v1165 = vsub.f32 0.0, %v1163
    %v1166 = vmul.f32 %v1164, 1.442695
    %v1167 = vpow.pop %v1166
    %v1168 = vmul.f32 %v1165, 1.442695
    %v1169 = vpow.pop %v1168
    %v1170 = vadd.f32 %v1167, 1.0
    %v1171 = vadd.f32 %v1169, 1.0
    %v1172 = vrcp.pop %v1170
    %v1173 = vmul.f32 %v1170, %v1172
    %v1174 = vsub.f32 1.0, %v1173
    %v1175 = vmul.f32 %v1172, %v1174
    %v1176 = vadd.f32 %v1172, %v1175
    %vm1177 = vweird.f32 %v1170
    %vm1178 = vweird.f32 %v1172
    %vm1179 = vmor %vm1177, %vm1178
    %v1180 = vsel %vm1179, %v1172, %v1176
    %v1181 = vand.u32 2147483647, %v1170
    %vm1182 = vcmp.eq.f32.partialorder %v1181, 8.507059e+37
    %v1183 = vand.u32 %v1170, 2147483648
    %v1184 = vor.u32 1.1754944e-38, %v1183
    %v1185 = vsel %vm1182, %v1184, %v1180
    %v1186 = vmul.f32 %v1162, %v1185
    %v1187 = vrcp.pop %v1171
    %v1188 = vmul.f32 %v1171, %v1187
    %v1189 = vsub.f32 1.0, %v1188
    %v1190 = vmul.f32 %v1187, %v1189
    %v1191 = vadd.f32 %v1187, %v1190
    %vm1192 = vweird.f32 %v1171
    %vm1193 = vweird.f32 %v1187
    %vm1194 = vmor %vm1192, %vm1193
    %v1195 = vsel %vm1194, %v1187, %v1191
    %v1196 = vand.u32 2147483647, %v1171
    %vm1197 = vcmp.eq.f32.partialorder %v1196, 8.507059e+37
    %v1198 = vand.u32 %v1171, 2147483648
    %v1199 = vor.u32 1.1754944e-38, %v1198
    %v1200 = vsel %vm1197, %v1199, %v1195
    %v1201 = vmul.f32 %v1163, %v1200
    %vm1202 = vcmp.ge.f32.partialorder %v1162, -2.2
    %vm1203 = vcmp.ge.f32.partialorder %v1163, -2.2
    %vm1204 = vcmp.lt.f32.partialorder %v1162, -1.8
    %vm1205 = vcmp.lt.f32.partialorder %v1163, -1.8
    %vm1206 = vmand %vm1202, %vm1204
    %vm1207 = vmand %vm1203, %vm1205
    %v1208 = vsel %vm1206, 1, 0
    %v1209 = vsel %vm1207, 1, 0
    %v1210 = vcvt.s32.f32 %v1208
    %v1211 = vcvt.s32.f32 %v1209
    %vm1212 = vcmp.ge.f32.partialorder %v1162, -1.8
    %vm1213 = vcmp.ge.f32.partialorder %v1163, -1.8
    %vm1214 = vcmp.lt.f32.partialorder %v1162, -1.4
    %vm1215 = vcmp.lt.f32.partialorder %v1163, -1.4
    %vm1216 = vmand %vm1212, %vm1214
    %vm1217 = vmand %vm1213, %vm1215
    %v1218 = vsel %vm1216, 1, 0
    %v1219 = vsel %vm1217, 1, 0
    %v1220 = vcvt.s32.f32 %v1218
    %v1221 = vcvt.s32.f32 %v1219
    %vm1222 = vcmp.ge.f32.partialorder %v1162, -1.4
    %vm1223 = vcmp.ge.f32.partialorder %v1163, -1.4
    %vm1224 = vcmp.lt.f32.partialorder %v1162, -1.0
    %vm1225 = vcmp.lt.f32.partialorder %v1163, -1.0
    %vm1226 = vmand %vm1222, %vm1224
    %vm1227 = vmand %vm1223, %vm1225
    %v1228 = vsel %vm1226, 1, 0
    %v1229 = vsel %vm1227, 1, 0
    %v1230 = vcvt.s32.f32 %v1228
    %v1231 = vcvt.s32.f32 %v1229
    %vm1232 = vcmp.ge.f32.partialorder %v1162, -1.0
    %vm1233 = vcmp.ge.f32.partialorder %v1163, -1.0
    %vm1234 = vcmp.lt.f32.partialorder %v1162, -0.6
    %vm1235 = vcmp.lt.f32.partialorder %v1163, -0.6
    %vm1236 = vmand %vm1232, %vm1234
    %vm1237 = vmand %vm1233, %vm1235
    %v1238 = vsel %vm1236, 1, 0
    %v1239 = vsel %vm1237, 1, 0
    %v1240 = vcvt.s32.f32 %v1238
    %v1241 = vcvt.s32.f32 %v1239
    %vm1242 = vcmp.ge.f32.partialorder %v1162, -0.6
    %vm1243 = vcmp.ge.f32.partialorder %v1163, -0.6
    %vm1244 = vcmp.lt.f32.partialorder %v1162, -0.2
    %vm1245 = vcmp.lt.f32.partialorder %v1163, -0.2
    %vm1246 = vmand %vm1242, %vm1244
    %vm1247 = vmand %vm1243, %vm1245
    %v1248 = vsel %vm1246, 1, 0
    %v1249 = vsel %vm1247, 1, 0
    %v1250 = vcvt.s32.f32 %v1248
    %v1251 = vcvt.s32.f32 %v1249
    %vm1252 = vcmp.ge.f32.partialorder %v1162, -0.2
    %vm1253 = vcmp.ge.f32.partialorder %v1163, -0.2
    %vm1254 = vcmp.lt.f32.partialorder %v1162, 0.2
    %vm1255 = vcmp.lt.f32.partialorder %v1163, 0.2
    %vm1256 = vmand %vm1252, %vm1254
    %vm1257 = vmand %vm1253, %vm1255
    %v1258 = vsel %vm1256, 1, 0
    %v1259 = vsel %vm1257, 1, 0
    %v1260 = vcvt.s32.f32 %v1258
    %v1261 = vcvt.s32.f32 %v1259
    %vm1262 = vcmp.ge.f32.partialorder %v1162, 0.2
    %vm1263 = vcmp.ge.f32.partialorder %v1163, 0.2
    %vm1264 = vcmp.lt.f32.partialorder %v1162, 0.6
    %vm1265 = vcmp.lt.f32.partialorder %v1163, 0.6
    %vm1266 = vmand %vm1262, %vm1264
    %vm1267 = vmand %vm1263, %vm1265
    %v1268 = vsel %vm1266, 1, 0
    %v1269 = vsel %vm1267, 1, 0
    %v1270 = vcvt.s32.f32 %v1268
    %v1271 = vcvt.s32.f32 %v1269
    %vm1272 = vcmp.ge.f32.partialorder %v1162, 0.6
    %vm1273 = vcmp.ge.f32.partialorder %v1163, 0.6
    %vm1274 = vcmp.lt.f32.partialorder %v1162, 1.0
    %vm1275 = vcmp.lt.f32.partialorder %v1163, 1.0
    %vm1276 = vmand %vm1272, %vm1274
    %vm1277 = vmand %vm1273, %vm1275
    %v1278 = vsel %vm1276, 1, 0
    %v1279 = vsel %vm1277, 1, 0
    %v1280 = vcvt.s32.f32 %v1278
    %v1281 = vcvt.s32.f32 %v1279
    %vm1282 = vcmp.ge.f32.partialorder %v1162, 1.0
    %vm1283 = vcmp.ge.f32.partialorder %v1163, 1.0
    %vm1284 = vcmp.lt.f32.partialorder %v1162, 1.4
    %vm1285 = vcmp.lt.f32.partialorder %v1163, 1.4
    %vm1286 = vmand %vm1282, %vm1284
    %vm1287 = vmand %vm1283, %vm1285
    %v1288 = vsel %vm1286, 1, 0
    %v1289 = vsel %vm1287, 1, 0
    %v1290 = vcvt.s32.f32 %v1288
    %v1291 = vcvt.s32.f32 %v1289
    %vm1292 = vcmp.ge.f32.partialorder %v1162, 1.4
    %vm1293 = vcmp.ge.f32.partialorder %v1163, 1.4
    %vm1294 = vcmp.lt.f32.partialorder %v1162, 1.8
    %vm1295 = vcmp.lt.f32.partialorder %v1163, 1.8
    %vm1296 = vmand %vm1292, %vm1294
    %vm1297 = vmand %vm1293, %vm1295
    %v1298 = vsel %vm1296, 1, 0
    %v1299 = vsel %vm1297, 1, 0
    %v1300 = vcvt.s32.f32 %v1298
    %v1301 = vcvt.s32.f32 %v1299
    %vm1302 = vcmp.ge.f32.partialorder %v1162, 1.8
    %vm1303 = vcmp.ge.f32.partialorder %v1163, 1.8
    %vm1304 = vcmp.lt.f32.partialorder %v1162, 2.2
    %vm1305 = vcmp.lt.f32.partialorder %v1163, 2.2
    %vm1306 = vmand %vm1302, %vm1304
    %vm1307 = vmand %vm1303, %vm1305
    %v1308 = vsel %vm1306, 1, 0
    %v1309 = vsel %vm1307, 1, 0
    %v1310 = vcvt.s32.f32 %v1308
    %v1311 = vcvt.s32.f32 %v1309
    %v1312 = vsub.f32 %v1162, -2.2
    %v1313 = vsub.f32 %v1163, -2.2
    %v1314 = vmul.f32 %v1312, 2.5
    %v1315 = vmul.f32 %v1313, 2.5
    %v1316 = vsub.f32 %v1162, -1.8
    %v1317 = vsub.f32 %v1163, -1.8
    %v1318 = vmul.f32 %v1316, 2.5
    %v1319 = vmul.f32 %v1317, 2.5
    %v1320 = vsub.f32 %v1162, -1.4
    %v1321 = vsub.f32 %v1163, -1.4
    %v1322 = vmul.f32 %v1320, 2.5
    %v1323 = vmul.f32 %v1321, 2.5
    %v1324 = vsub.f32 %v1162, -1.0
    %v1325 = vsub.f32 %v1163, -1.0
    %v1326 = vmul.f32 %v1324, 2.5
    %v1327 = vmul.f32 %v1325, 2.5
    %v1328 = vsub.f32 %v1162, -0.6
    %v1329 = vsub.f32 %v1163, -0.6
    %v1330 = vmul.f32 %v1328, 2.5
    %v1331 = vmul.f32 %v1329, 2.5
    %v1332 = vsub.f32 %v1162, -0.2
    %v1333 = vsub.f32 %v1163, -0.2
    %v1334 = vmul.f32 %v1332, 2.5
    %v1335 = vmul.f32 %v1333, 2.5
    %v1336 = vsub.f32 %v1162, 0.2
    %v1337 = vsub.f32 %v1163, 0.2
    %v1338 = vmul.f32 %v1336, 2.5
    %v1339 = vmul.f32 %v1337, 2.5
    %v1340 = vsub.f32 %v1162, 0.6
    %v1341 = vsub.f32 %v1163, 0.6
    %v1342 = vmul.f32 %v1340, 2.5
    %v1343 = vmul.f32 %v1341, 2.5
    %v1344 = vsub.f32 %v1162, 1.0
    %v1345 = vsub.f32 %v1163, 1.0
    %v1346 = vmul.f32 %v1344, 2.5
    %v1347 = vmul.f32 %v1345, 2.5
    %v1348 = vsub.f32 %v1162, 1.4
    %v1349 = vsub.f32 %v1163, 1.4
    %v1350 = vmul.f32 %v1348, 2.5
    %v1351 = vmul.f32 %v1349, 2.5
    %v1352 = vsub.f32 %v1162, 1.8
    %v1353 = vsub.f32 %v1163, 1.8
    %v1354 = vmul.f32 %v1352, 2.5
    %v1355 = vmul.f32 %v1353, 2.5
    %v1356 = vmul.f32 %v1314, %v1210
    %v1357 = vmul.f32 %v1315, %v1211
    %v1358 = vadd.f32 %v1356, %v1220
    %v1359 = vadd.f32 %v1357, %v1221
    %v1360 = vmul.f32 %v1318, %v1220
    %v1361 = vmul.f32 %v1319, %v1221
    %v1362 = vsub.f32 %v1358, %v1360
    %v1363 = vsub.f32 %v1359, %v1361
    %v1364 = vadd.f32 %v1360, %v1230
    %v1365 = vadd.f32 %v1361, %v1231
    %v1366 = vmul.f32 %v1322, %v1230
    %v1367 = vmul.f32 %v1323, %v1231
    %v1368 = vsub.f32 %v1364, %v1366
    %v1369 = vsub.f32 %v1365, %v1367
    %v1370 = vadd.f32 %v1366, %v1240
    %v1371 = vadd.f32 %v1367, %v1241
    %v1372 = vmul.f32 %v1326, %v1240
    %v1373 = vmul.f32 %v1327, %v1241
    %v1374 = vsub.f32 %v1370, %v1372
    %v1375 = vsub.f32 %v1371, %v1373
    %v1376 = vadd.f32 %v1372, %v1250
    %v1377 = vadd.f32 %v1373, %v1251
    %v1378 = vmul.f32 %v1330, %v1250
    %v1379 = vmul.f32 %v1331, %v1251
    %v1380 = vsub.f32 %v1376, %v1378
    %v1381 = vsub.f32 %v1377, %v1379
    %v1382 = vadd.f32 %v1378, %v1260
    %v1383 = vadd.f32 %v1379, %v1261
    %v1384 = vmul.f32 %v1334, %v1260
    %v1385 = vmul.f32 %v1335, %v1261
    %v1386 = vsub.f32 %v1382, %v1384
    %v1387 = vsub.f32 %v1383, %v1385
    %v1388 = vadd.f32 %v1384, %v1270
    %v1389 = vadd.f32 %v1385, %v1271
    %v1390 = vmul.f32 %v1338, %v1270
    %v1391 = vmul.f32 %v1339, %v1271
    %v1392 = vsub.f32 %v1388, %v1390
    %v1393 = vsub.f32 %v1389, %v1391
    %v1394 = vadd.f32 %v1390, %v1280
    %v1395 = vadd.f32 %v1391, %v1281
    %v1396 = vmul.f32 %v1342, %v1280
    %v1397 = vmul.f32 %v1343, %v1281
    %v1398 = vsub.f32 %v1394, %v1396
    %v1399 = vsub.f32 %v1395, %v1397
    %v1400 = vadd.f32 %v1396, %v1290
    %v1401 = vadd.f32 %v1397, %v1291
    %v1402 = vmul.f32 %v1346, %v1290
    %v1403 = vmul.f32 %v1347, %v1291
    %v1404 = vsub.f32 %v1400, %v1402
    %v1405 = vsub.f32 %v1401, %v1403
    %v1406 = vadd.f32 %v1402, %v1300
    %v1407 = vadd.f32 %v1403, %v1301
    %v1408 = vmul.f32 %v1350, %v1300
    %v1409 = vmul.f32 %v1351, %v1301
    %v1410 = vsub.f32 %v1406, %v1408
    %v1411 = vsub.f32 %v1407, %v1409
    %v1412 = vadd.f32 %v1408, %v1310
    %v1413 = vadd.f32 %v1409, %v1311
    %v1414 = vmul.f32 %v1354, %v1310
    %v1415 = vmul.f32 %v1355, %v1311
    %v1416 = vsub.f32 %v1412, %v1414
    %v1417 = vsub.f32 %v1413, %v1415
    %v1418 = vmul.f32 %v1312, 1.25
    %v1419 = vmul.f32 %v1313, 1.25
    %v1420 = vmul.f32 %v1316, 1.25
    %v1421 = vmul.f32 %v1317, 1.25
    %v1422 = vmul.f32 %v1320, 1.25
    %v1423 = vmul.f32 %v1321, 1.25
    %v1424 = vmul.f32 %v1324, 1.25
    %v1425 = vmul.f32 %v1325, 1.25
    %v1426 = vmul.f32 %v1328, 1.25
    %v1427 = vmul.f32 %v1329, 1.25
    %v1428 = vmul.f32 %v1332, 1.25
    %v1429 = vmul.f32 %v1333, 1.25
    %v1430 = vmul.f32 %v1336, 1.25
    %v1431 = vmul.f32 %v1337, 1.25
    %v1432 = vmul.f32 %v1340, 1.25
    %v1433 = vmul.f32 %v1341, 1.25
    %v1434 = vmul.f32 %v1344, 1.25
    %v1435 = vmul.f32 %v1345, 1.25
    %v1436 = vmul.f32 %v1348, 1.25
    %v1437 = vmul.f32 %v1349, 1.25
    %v1438 = vmul.f32 %v1418, %v1362
    %v1439 = vmul.f32 %v1419, %v1363
    %v1440 = vadd.f32 %v1438, %v1368
    %v1441 = vadd.f32 %v1439, %v1369
    %v1442 = vmul.f32 %v1420, %v1368
    %v1443 = vmul.f32 %v1421, %v1369
    %v1444 = vsub.f32 %v1440, %v1442
    %v1445 = vsub.f32 %v1441, %v1443
    %v1446 = vadd.f32 %v1442, %v1374
    %v1447 = vadd.f32 %v1443, %v1375
    %v1448 = vmul.f32 %v1422, %v1374
    %v1449 = vmul.f32 %v1423, %v1375
    %v1450 = vsub.f32 %v1446, %v1448
    %v1451 = vsub.f32 %v1447, %v1449
    %v1452 = vadd.f32 %v1448, %v1380
    %v1453 = vadd.f32 %v1449, %v1381
    %v1454 = vmul.f32 %v1424, %v1380
    %v1455 = vmul.f32 %v1425, %v1381
    %v1456 = vsub.f32 %v1452, %v1454
    %v1457 = vsub.f32 %v1453, %v1455
    %v1458 = vadd.f32 %v1454, %v1386
    %v1459 = vadd.f32 %v1455, %v1387
    %v1460 = vmul.f32 %v1426, %v1386
    %v1461 = vmul.f32 %v1427, %v1387
    %v1462 = vsub.f32 %v1458, %v1460
    %v1463 = vsub.f32 %v1459, %v1461
    %v1464 = vadd.f32 %v1460, %v1392
    %v1465 = vadd.f32 %v1461, %v1393
    %v1466 = vmul.f32 %v1428, %v1392
    %v1467 = vmul.f32 %v1429, %v1393
    %v1468 = vsub.f32 %v1464, %v1466
    %v1469 = vsub.f32 %v1465, %v1467
    %v1470 = vadd.f32 %v1466, %v1398
    %v1471 = vadd.f32 %v1467, %v1399
    %v1472 = vmul.f32 %v1430, %v1398
    %v1473 = vmul.f32 %v1431, %v1399
    %v1474 = vsub.f32 %v1470, %v1472
    %v1475 = vsub.f32 %v1471, %v1473
    %v1476 = vadd.f32 %v1472, %v1404
    %v1477 = vadd.f32 %v1473, %v1405
    %v1478 = vmul.f32 %v1432, %v1404
    %v1479 = vmul.f32 %v1433, %v1405
    %v1480 = vsub.f32 %v1476, %v1478
    %v1481 = vsub.f32 %v1477, %v1479
    %v1482 = vadd.f32 %v1478, %v1410
    %v1483 = vadd.f32 %v1479, %v1411
    %v1484 = vmul.f32 %v1434, %v1410
    %v1485 = vmul.f32 %v1435, %v1411
    %v1486 = vsub.f32 %v1482, %v1484
    %v1487 = vsub.f32 %v1483, %v1485
    %v1488 = vadd.f32 %v1484, %v1416
    %v1489 = vadd.f32 %v1485, %v1417
    %v1490 = vmul.f32 %v1436, %v1416
    %v1491 = vmul.f32 %v1437, %v1417
    %v1492 = vsub.f32 %v1488, %v1490
    %v1493 = vsub.f32 %v1489, %v1491
    %v1494 = vmul.f32 %v1312, 0.8333333
    %v1495 = vmul.f32 %v1313, 0.8333333
    %v1496 = vmul.f32 %v1316, 0.8333333
    %v1497 = vmul.f32 %v1317, 0.8333333
    %v1498 = vmul.f32 %v1320, 0.8333333
    %v1499 = vmul.f32 %v1321, 0.8333333
    %v1500 = vmul.f32 %v1324, 0.8333333
    %v1501 = vmul.f32 %v1325, 0.8333333
    %v1502 = vmul.f32 %v1328, 0.8333333
    %v1503 = vmul.f32 %v1329, 0.8333333
    %v1504 = vmul.f32 %v1332, 0.8333333
    %v1505 = vmul.f32 %v1333, 0.8333333
    %v1506 = vmul.f32 %v1336, 0.8333333
    %v1507 = vmul.f32 %v1337, 0.8333333
    %v1508 = vmul.f32 %v1340, 0.8333333
    %v1509 = vmul.f32 %v1341, 0.8333333
    %v1510 = vmul.f32 %v1344, 0.8333333
    %v1511 = vmul.f32 %v1345, 0.8333333
    %v1512 = vmul.f32 %v1494, %v1444
    %v1513 = vmul.f32 %v1495, %v1445
    %v1514 = vadd.f32 %v1512, %v1450
    %v1515 = vadd.f32 %v1513, %v1451
    %v1516 = vmul.f32 %v1496, %v1450
    %v1517 = vmul.f32 %v1497, %v1451
    %v1518 = vsub.f32 %v1514, %v1516
    %v1519 = vsub.f32 %v1515, %v1517
    %v1520 = vadd.f32 %v1516, %v1456
    %v1521 = vadd.f32 %v1517, %v1457
    %v1522 = vmul.f32 %v1498, %v1456
    %v1523 = vmul.f32 %v1499, %v1457
    %v1524 = vsub.f32 %v1520, %v1522
    %v1525 = vsub.f32 %v1521, %v1523
    %v1526 = vadd.f32 %v1522, %v1462
    %v1527 = vadd.f32 %v1523, %v1463
    %v1528 = vmul.f32 %v1500, %v1462
    %v1529 = vmul.f32 %v1501, %v1463
    %v1530 = vsub.f32 %v1526, %v1528
    %v1531 = vsub.f32 %v1527, %v1529
    %v1532 = vadd.f32 %v1528, %v1468
    %v1533 = vadd.f32 %v1529, %v1469
    %v1534 = vmul.f32 %v1502, %v1468
    %v1535 = vmul.f32 %v1503, %v1469
    %v1536 = vsub.f32 %v1532, %v1534
    %v1537 = vsub.f32 %v1533, %v1535
    %v1538 = vadd.f32 %v1534, %v1474
    %v1539 = vadd.f32 %v1535, %v1475
    %v1540 = vmul.f32 %v1504, %v1474
    %v1541 = vmul.f32 %v1505, %v1475
    %v1542 = vsub.f32 %v1538, %v1540
    %v1543 = vsub.f32 %v1539, %v1541
    %v1544 = vadd.f32 %v1540, %v1480
    %v1545 = vadd.f32 %v1541, %v1481
    %v1546 = vmul.f32 %v1506, %v1480
    %v1547 = vmul.f32 %v1507, %v1481
    %v1548 = vsub.f32 %v1544, %v1546
    %v1549 = vsub.f32 %v1545, %v1547
    %v1550 = vadd.f32 %v1546, %v1486
    %v1551 = vadd.f32 %v1547, %v1487
    %v1552 = vmul.f32 %v1508, %v1486
    %v1553 = vmul.f32 %v1509, %v1487
    %v1554 = vsub.f32 %v1550, %v1552
    %v1555 = vsub.f32 %v1551, %v1553
    %v1556 = vadd.f32 %v1552, %v1492
    %v1557 = vadd.f32 %v1553, %v1493
    %v1558 = vmul.f32 %v1510, %v1492
    %v1559 = vmul.f32 %v1511, %v1493
    %v1560 = vsub.f32 %v1556, %v1558
    %v1561 = vsub.f32 %v1557, %v1559
    %v1562 = vpack.c.bf16 %v1186, %v1186
    %v1563 = vpack.c.bf16 %v1201, %v1201
    %v1564 = vpack.c.bf16 %v1518, %v1518
    %v1565 = vpack.c.bf16 %v1519, %v1519
    %v1566 = vpack.c.bf16 %v1524, %v1524
    %v1567 = vpack.c.bf16 %v1525, %v1525
    %v1568 = vpack.c.bf16 %v1530, %v1530
    %v1569 = vpack.c.bf16 %v1531, %v1531
    %v1570 = vpack.c.bf16 %v1536, %v1536
    %v1571 = vpack.c.bf16 %v1537, %v1537
    %v1572 = vpack.c.bf16 %v1542, %v1542
    %v1573 = vpack.c.bf16 %v1543, %v1543
    %v1574 = vpack.c.bf16 %v1548, %v1548
    %v1575 = vpack.c.bf16 %v1549, %v1549
    %v1576 = vpack.c.bf16 %v1554, %v1554
    %v1577 = vpack.c.bf16 %v1555, %v1555
    %v1578 = vpack.c.bf16 %v1560, %v1560
    %v1579 = vpack.c.bf16 %v1561, %v1561
    %v1582 = vunpack.c.l.b16 %v1562
    %v1583 = vunpack.c.l.b16 %v1563
    %v1584 = vpack.c.b16 %v1583, %v1582
    %v1587 = vunpack.c.l.b16 %v1564
    %v1588 = vunpack.c.l.b16 %v1565
    %v1589 = vpack.c.b16 %v1588, %v1587
    %1590 = vrot.lane.b32.xlu0 %v1589, 32
    %v1591 = vpop.permute.xlu0 %1590
    %v1594 = vunpack.c.l.b16 %v1566
    %v1595 = vunpack.c.l.b16 %v1567
    %v1596 = vpack.c.b16 %v1595, %v1594
    %1597 = vrot.lane.b32.xlu0 %v1596, 64
    %v1598 = vpop.permute.xlu0 %1597
    %v1601 = vunpack.c.l.b16 %v1568
    %v1602 = vunpack.c.l.b16 %v1569
    %v1603 = vpack.c.b16 %v1602, %v1601
    %1604 = vrot.lane.b32.xlu0 %v1603, 96
    %v1605 = vpop.permute.xlu0 %1604
    %v1608 = vunpack.c.l.b16 %v1570
    %v1609 = vunpack.c.l.b16 %v1571
    %v1610 = vpack.c.b16 %v1609, %v1608
    %v1613 = vunpack.c.l.b16 %v1572
    %v1614 = vunpack.c.l.b16 %v1573
    %v1615 = vpack.c.b16 %v1614, %v1613
    %1616 = vrot.lane.b32.xlu0 %v1615, 32
    %v1617 = vpop.permute.xlu0 %1616
    %v1620 = vunpack.c.l.b16 %v1574
    %v1621 = vunpack.c.l.b16 %v1575
    %v1622 = vpack.c.b16 %v1621, %v1620
    %1623 = vrot.lane.b32.xlu0 %v1622, 64
    %v1624 = vpop.permute.xlu0 %1623
    %v1627 = vunpack.c.l.b16 %v1576
    %v1628 = vunpack.c.l.b16 %v1577
    %v1629 = vpack.c.b16 %v1628, %v1627
    %1630 = vrot.lane.b32.xlu0 %v1629, 96
    %v1631 = vpop.permute.xlu0 %1630
    %v1634 = vunpack.c.l.b16 %v1578
    %v1635 = vunpack.c.l.b16 %v1579
    %v1636 = vpack.c.b16 %v1635, %v1634
    %v1639 = vsel %vm54, %v1584, %v1591
    %v1641 = vsel %vm1059, %v1639, %v1598
    %v1643 = vsel %vm1062, %v1641, %v1605
    %v1647 = vsel %vm54, %v1610, %v1617
    %v1649 = vsel %vm1059, %v1647, %v1624
    %v1651 = vsel %vm1062, %v1649, %v1631
    %s1653 = scalar_lea.vmem %s5, 144
    %v1654 = vld [vmem:[%s1653] sm:$0xf]
    %v1655 = vld [vmem:[%s1653 + $0x4] sm:$0xf]
    %v1656 = vld [vmem:[%s1653 + $0x8] sm:$0xf]
    %v1657 = vld [vmem:[%s1653 + $0xc] sm:$0xf]
    %v1658 = vld [vmem:[%s1653 + $0x10] sm:$0xf]
    %v1659 = vld [vmem:[%s1653 + $0x14] sm:$0xf]
    %v1660 = vld [vmem:[%s1653 + $0x18] sm:$0xf]
    %v1661 = vld [vmem:[%s1653 + $0x1c] sm:$0xf]
    %v1662 = vld [vmem:[%s1653 + $0x20] sm:$0xf]
    %v1663 = vld [vmem:[%s1653 + $0x24] sm:$0xf]
    %v1664 = vld [vmem:[%s1653 + $0x28] sm:$0xf]
    %v1665 = vld [vmem:[%s1653 + $0x2c] sm:$0xf]
    %v1666 = vld [vmem:[%s1653 + $0x30] sm:$0xf]
    %v1667 = vld [vmem:[%s1653 + $0x34] sm:$0xf]
    %v1668 = vld [vmem:[%s1653 + $0x38] sm:$0xf]
    %v1669 = vld [vmem:[%s1653 + $0x3c] sm:$0xf]
    %v1670 = vld [vmem:[%s1653 + $0x40] sm:$0xf]
    %v1671 = vld [vmem:[%s1653 + $0x44] sm:$0xf]
    %v1672 = vld [vmem:[%s1653 + $0x48] sm:$0xf]
    %v1673 = vld [vmem:[%s1653 + $0x4c] sm:$0xf]
    %v1674 = vld [vmem:[%s1653 + $0x50] sm:$0xf]
    %v1675 = vld [vmem:[%s1653 + $0x54] sm:$0xf]
    %v1676 = vld [vmem:[%s1653 + $0x58] sm:$0xf]
    %v1677 = vld [vmem:[%s1653 + $0x5c] sm:$0xf]
    %v1678 = vld [vmem:[%s1653 + $0x60] sm:$0xf]
    %v1679 = vld [vmem:[%s1653 + $0x64] sm:$0xf]
    %v1680 = vld [vmem:[%s1653 + $0x68] sm:$0xf]
    %v1681 = vld [vmem:[%s1653 + $0x6c] sm:$0xf]
    %v1682 = vld [vmem:[%s1653 + $0x70] sm:$0xf]
    %v1683 = vld [vmem:[%s1653 + $0x74] sm:$0xf]
    %v1684 = vld [vmem:[%s1653 + $0x78] sm:$0xf]
    %v1685 = vld [vmem:[%s1653 + $0x7c] sm:$0xf]
    %v1686 = vld [vmem:[%s1653 + $0x80] sm:$0xf]
    %v1687 = vld [vmem:[%s1653 + $0x84] sm:$0xf]
    %v1688 = vld [vmem:[%s1653 + $0x88] sm:$0xf]
    %v1689 = vld [vmem:[%s1653 + $0x8c] sm:$0xf]
    %v1726 = vunpack.c.l.b16 %v1654
    %v1727 = vunpack.c.l.b16 %v1655
    %v1728 = vunpack.c.l.b16 %v1656
    %v1729 = vunpack.c.l.b16 %v1657
    %v1730 = vunpack.c.l.b16 %v1658
    %v1731 = vunpack.c.l.b16 %v1659
    %v1732 = vunpack.c.l.b16 %v1660
    %v1733 = vunpack.c.l.b16 %v1661
    %v1734 = vunpack.c.l.b16 %v1662
    %v1735 = vunpack.c.l.b16 %v1663
    %v1736 = vunpack.c.l.b16 %v1664
    %v1737 = vunpack.c.l.b16 %v1665
    %v1738 = vunpack.c.l.b16 %v1666
    %v1739 = vunpack.c.l.b16 %v1667
    %v1740 = vunpack.c.l.b16 %v1668
    %v1741 = vunpack.c.l.b16 %v1669
    %v1742 = vunpack.c.l.b16 %v1670
    %v1743 = vunpack.c.l.b16 %v1671
    %v1744 = vunpack.c.l.b16 %v1672
    %v1745 = vunpack.c.l.b16 %v1673
    %v1746 = vunpack.c.l.b16 %v1674
    %v1747 = vunpack.c.l.b16 %v1675
    %v1748 = vunpack.c.l.b16 %v1676
    %v1749 = vunpack.c.l.b16 %v1677
    %v1750 = vunpack.c.l.b16 %v1678
    %v1751 = vunpack.c.l.b16 %v1679
    %v1752 = vunpack.c.l.b16 %v1680
    %v1753 = vunpack.c.l.b16 %v1681
    %v1754 = vunpack.c.l.b16 %v1682
    %v1755 = vunpack.c.l.b16 %v1683
    %v1756 = vunpack.c.l.b16 %v1684
    %v1757 = vunpack.c.l.b16 %v1685
    %v1758 = vunpack.c.l.b16 %v1686
    %v1759 = vunpack.c.l.b16 %v1687
    %v1760 = vunpack.c.l.b16 %v1688
    %v1761 = vunpack.c.l.b16 %v1689
    %v1762 = vpack.c.b16 %v1727, %v1726
    %v1763 = vpack.c.b16 %v1729, %v1728
    %v1764 = vpack.c.b16 %v1731, %v1730
    %v1765 = vpack.c.b16 %v1733, %v1732
    %v1766 = vpack.c.b16 %v1735, %v1734
    %v1767 = vpack.c.b16 %v1737, %v1736
    %v1768 = vpack.c.b16 %v1739, %v1738
    %v1769 = vpack.c.b16 %v1741, %v1740
    %v1770 = vpack.c.b16 %v1743, %v1742
    %v1771 = vpack.c.b16 %v1745, %v1744
    %v1772 = vpack.c.b16 %v1747, %v1746
    %v1773 = vpack.c.b16 %v1749, %v1748
    %v1774 = vpack.c.b16 %v1751, %v1750
    %v1775 = vpack.c.b16 %v1753, %v1752
    %v1776 = vpack.c.b16 %v1755, %v1754
    %v1777 = vpack.c.b16 %v1757, %v1756
    %v1778 = vpack.c.b16 %v1759, %v1758
    %v1779 = vpack.c.b16 %v1761, %v1760
    %v1799 = vsel %vm54, %v1636, 0
    %1801 = vmatpush.bf16.msra.mxu0 %v1769
    %1802 = vmatpush.bf16.msra.mxu0 %v1768
    %1803 = vmatpush.bf16.msra.mxu0 %v1767
    %1804 = vmatpush.bf16.msra.mxu0 %v1766
    %1805 = vmatpush.bf16.msra.mxu0 %v1765
    %1806 = vmatpush.bf16.msra.mxu0 %v1764
    %1807 = vmatpush.bf16.msra.mxu0 %v1763
    %1808 = vmatpush.bf16.msra.mxu0 %v1762
    %1809 = vmatmul.bf16.gmra.mxu0 %v1643
    %v1810 = vpop.f32.mrf.mxu0
    %v1811 = vadd.f32 0.0, %v1810
    %v1812 = vpop.f32.mrf.mxu0
    %v1813 = vadd.f32 0.0, %v1812
    %1814 = vdwg.mxu0
    %1815 = vmatpush.bf16.msra.mxu0 %v1777
    %1816 = vmatpush.bf16.msra.mxu0 %v1776
    %1817 = vmatpush.bf16.msra.mxu0 %v1775
    %1818 = vmatpush.bf16.msra.mxu0 %v1774
    %1819 = vmatpush.bf16.msra.mxu0 %v1773
    %1820 = vmatpush.bf16.msra.mxu0 %v1772
    %1821 = vmatpush.bf16.msra.mxu0 %v1771
    %1822 = vmatpush.bf16.msra.mxu0 %v1770
    %1823 = vmatmul.bf16.gmra.mxu0 %v1651
    %v1824 = vpop.f32.mrf.mxu0
    %v1825 = vadd.f32 %v1811, %v1824
    %v1826 = vpop.f32.mrf.mxu0
    %v1827 = vadd.f32 %v1813, %v1826
    %1828 = vdwg.mxu0
    %1829 = vmatpush.bf16.msra.mxu0 0
    %1830 = vmatpush.bf16.msra.mxu0 0
    %1831 = vmatpush.bf16.msra.mxu0 0
    %1832 = vmatpush.bf16.msra.mxu0 0
    %1833 = vmatpush.bf16.msra.mxu0 0
    %1834 = vmatpush.bf16.msra.mxu0 0
    %1835 = vmatpush.bf16.msra.mxu0 %v1779
    %1836 = vmatpush.bf16.msra.mxu0 %v1778
    %1837 = vmatmul.bf16.gmra.mxu0 %v1799
    %v1838 = vpop.f32.mrf.mxu0
    %v1839 = vadd.f32 %v1825, %v1838
    %v1840 = vpop.f32.mrf.mxu0
    %v1841 = vadd.f32 %v1827, %v1840
    %1842 = vdwg.mxu0
    %v1879 = vunpack.c.l.b16 %v1074
    %v1880 = vunpack.c.l.b16 %v1075
    %v1881 = vunpack.c.l.b16 %v1076
    %v1882 = vunpack.c.l.b16 %v1077
    %v1883 = vunpack.c.l.b16 %v1078
    %v1884 = vunpack.c.l.b16 %v1079
    %v1885 = vunpack.c.l.b16 %v1080
    %v1886 = vunpack.c.l.b16 %v1081
    %v1887 = vunpack.c.l.b16 %v1082
    %v1888 = vunpack.c.l.b16 %v1083
    %v1889 = vunpack.c.l.b16 %v1084
    %v1890 = vunpack.c.l.b16 %v1085
    %v1891 = vunpack.c.l.b16 %v1086
    %v1892 = vunpack.c.l.b16 %v1087
    %v1893 = vunpack.c.l.b16 %v1088
    %v1894 = vunpack.c.l.b16 %v1089
    %v1895 = vunpack.c.l.b16 %v1090
    %v1896 = vunpack.c.l.b16 %v1091
    %v1897 = vunpack.c.l.b16 %v1092
    %v1898 = vunpack.c.l.b16 %v1093
    %v1899 = vunpack.c.l.b16 %v1094
    %v1900 = vunpack.c.l.b16 %v1095
    %v1901 = vunpack.c.l.b16 %v1096
    %v1902 = vunpack.c.l.b16 %v1097
    %v1903 = vunpack.c.l.b16 %v1098
    %v1904 = vunpack.c.l.b16 %v1099
    %v1905 = vunpack.c.l.b16 %v1100
    %v1906 = vunpack.c.l.b16 %v1101
    %v1907 = vunpack.c.l.b16 %v1102
    %v1908 = vunpack.c.l.b16 %v1103
    %v1909 = vunpack.c.l.b16 %v1104
    %v1910 = vunpack.c.l.b16 %v1105
    %v1911 = vunpack.c.l.b16 %v1106
    %v1912 = vunpack.c.l.b16 %v1107
    %v1913 = vunpack.c.l.b16 %v1108
    %v1914 = vunpack.c.l.b16 %v1109
    %v1915 = vpack.c.b16 %v1880, %v1879
    %v1916 = vpack.c.b16 %v1882, %v1881
    %v1917 = vpack.c.b16 %v1884, %v1883
    %v1918 = vpack.c.b16 %v1886, %v1885
    %v1919 = vpack.c.b16 %v1888, %v1887
    %v1920 = vpack.c.b16 %v1890, %v1889
    %v1921 = vpack.c.b16 %v1892, %v1891
    %v1922 = vpack.c.b16 %v1894, %v1893
    %v1923 = vpack.c.b16 %v1896, %v1895
    %v1924 = vpack.c.b16 %v1898, %v1897
    %v1925 = vpack.c.b16 %v1900, %v1899
    %v1926 = vpack.c.b16 %v1902, %v1901
    %v1927 = vpack.c.b16 %v1904, %v1903
    %v1928 = vpack.c.b16 %v1906, %v1905
    %v1929 = vpack.c.b16 %v1908, %v1907
    %v1930 = vpack.c.b16 %v1910, %v1909
    %v1931 = vpack.c.b16 %v1912, %v1911
    %v1932 = vpack.c.b16 %v1914, %v1913
    %v1952 = vsel %vm54, %v1055, 0
    %1954 = vmatpush.bf16.msra.mxu0 %v1922
    %1955 = vmatpush.bf16.msra.mxu0 %v1921
    %1956 = vmatpush.bf16.msra.mxu0 %v1920
    %1957 = vmatpush.bf16.msra.mxu0 %v1919
    %1958 = vmatpush.bf16.msra.mxu0 %v1918
    %1959 = vmatpush.bf16.msra.mxu0 %v1917
    %1960 = vmatpush.bf16.msra.mxu0 %v1916
    %1961 = vmatpush.bf16.msra.mxu0 %v1915
    %1962 = vmatmul.bf16.gmra.mxu0 %v1064
    %v1963 = vpop.f32.mrf.mxu0
    %v1964 = vadd.f32 %v1839, %v1963
    %v1965 = vpop.f32.mrf.mxu0
    %v1966 = vadd.f32 %v1841, %v1965
    %1967 = vdwg.mxu0
    %1968 = vmatpush.bf16.msra.mxu0 %v1930
    %1969 = vmatpush.bf16.msra.mxu0 %v1929
    %1970 = vmatpush.bf16.msra.mxu0 %v1928
    %1971 = vmatpush.bf16.msra.mxu0 %v1927
    %1972 = vmatpush.bf16.msra.mxu0 %v1926
    %1973 = vmatpush.bf16.msra.mxu0 %v1925
    %1974 = vmatpush.bf16.msra.mxu0 %v1924
    %1975 = vmatpush.bf16.msra.mxu0 %v1923
    %1976 = vmatmul.bf16.gmra.mxu0 %v1072
    %v1977 = vpop.f32.mrf.mxu0
    %v1978 = vadd.f32 %v1964, %v1977
    %v1979 = vpop.f32.mrf.mxu0
    %v1980 = vadd.f32 %v1966, %v1979
    %1981 = vdwg.mxu0
    %1982 = vmatpush.bf16.msra.mxu0 0
    %1983 = vmatpush.bf16.msra.mxu0 0
    %1984 = vmatpush.bf16.msra.mxu0 0
    %1985 = vmatpush.bf16.msra.mxu0 0
    %1986 = vmatpush.bf16.msra.mxu0 0
    %1987 = vmatpush.bf16.msra.mxu0 0
    %1988 = vmatpush.bf16.msra.mxu0 %v1932
    %1989 = vmatpush.bf16.msra.mxu0 %v1931
    %1990 = vmatmul.bf16.gmra.mxu0 %v1952
    %v1991 = vpop.f32.mrf.mxu0
    %v1992 = vadd.f32 %v1978, %v1991
    %v1993 = vpop.f32.mrf.mxu0
    %v1994 = vadd.f32 %v1980, %v1993
    %1995 = vdwg.mxu0
    %v1996 = vadd.f32 %v498, %v29
    %v1997 = vadd.f32 %v519, %v30
    %v1998 = vsel %vm54, %v1996, 0.0
    %1999 = vadd.xlane.f32.xlu0 %v1998
    %v2000 = vpop.xlane.xlu0 %1999
    %v2001 = vsel %vm54, %v1997, 0.0
    %2002 = vadd.xlane.f32.xlu0 %v2001
    %v2003 = vpop.xlane.xlu0 %2002
    %v2004 = vmul.f32 %v2000, %v536
    %v2005 = vmul.f32 %v2003, %v536
    %v2006 = vsub.f32 %v1996, %v2004
    %v2007 = vsub.f32 %v1997, %v2005
    %v2008 = vmul.f32 %v2006, %v2006
    %v2009 = vmul.f32 %v2007, %v2007
    %v2010 = vsel %vm54, %v2008, 0.0
    %2011 = vadd.xlane.f32.xlu0 %v2010
    %v2012 = vpop.xlane.xlu0 %2011
    %v2013 = vsel %vm54, %v2009, 0.0
    %2014 = vadd.xlane.f32.xlu0 %v2013
    %v2015 = vpop.xlane.xlu0 %2014
    %v2016 = vmul.f32 %v2012, %v536
    %v2017 = vmul.f32 %v2015, %v536
    %v2018 = vadd.f32 %v2016, 1e-05
    %v2019 = vadd.f32 %v2017, 1e-05
    %v2020 = vrsqrt.pop %v2018
    %v2021 = vmul.f32 %v2020, %v2018
    %v2022 = vmul.f32 %v2021, %v2020
    %v2023 = vmul.f32 0.5, %v2022
    %v2024 = vsub.f32 1.5, %v2023
    %v2025 = vmul.f32 %v2020, %v2024
    %vm2026 = vweird.f32 %v2018
    %vm2027 = vweird.f32 %v2020
    %vm2028 = vmor %vm2026, %vm2027
    %v2029 = vsel %vm2028, %v2020, %v2025
    %v2030 = vrsqrt.pop %v2019
    %v2031 = vmul.f32 %v2030, %v2019
    %v2032 = vmul.f32 %v2031, %v2030
    %v2033 = vmul.f32 0.5, %v2032
    %v2034 = vsub.f32 1.5, %v2033
    %v2035 = vmul.f32 %v2030, %v2034
    %vm2036 = vweird.f32 %v2019
    %vm2037 = vweird.f32 %v2030
    %vm2038 = vmor %vm2036, %vm2037
    %v2039 = vsel %vm2038, %v2030, %v2035
    %v2040 = vmul.f32 %v2006, %v2029
    %v2041 = vmul.f32 %v2007, %v2039
    %v2042 = vld [vmem:[%s3 + $0x2] sm:$0x1]
    %v2043 = vperm.slane %v2042, 0
    %v2044 = vmul.f32 %v2040, %v2043
    %v2045 = vmul.f32 %v2041, %v2043
    %v2046 = vld [vmem:[%s4 + $0x2] sm:$0x1]
    %v2047 = vperm.slane %v2046, 0
    %v2048 = vadd.f32 %v2044, %v2047
    %v2049 = vadd.f32 %v2045, %v2047
    %v2050 = vsub.f32 0.0, %v2048
    %v2051 = vsub.f32 0.0, %v2049
    %v2052 = vmul.f32 %v2050, 1.442695
    %v2053 = vpow.pop %v2052
    %v2054 = vmul.f32 %v2051, 1.442695
    %v2055 = vpow.pop %v2054
    %v2056 = vadd.f32 %v2053, 1.0
    %v2057 = vadd.f32 %v2055, 1.0
    %v2058 = vrcp.pop %v2056
    %v2059 = vmul.f32 %v2056, %v2058
    %v2060 = vsub.f32 1.0, %v2059
    %v2061 = vmul.f32 %v2058, %v2060
    %v2062 = vadd.f32 %v2058, %v2061
    %vm2063 = vweird.f32 %v2056
    %vm2064 = vweird.f32 %v2058
    %vm2065 = vmor %vm2063, %vm2064
    %v2066 = vsel %vm2065, %v2058, %v2062
    %v2067 = vand.u32 2147483647, %v2056
    %vm2068 = vcmp.eq.f32.partialorder %v2067, 8.507059e+37
    %v2069 = vand.u32 %v2056, 2147483648
    %v2070 = vor.u32 1.1754944e-38, %v2069
    %v2071 = vsel %vm2068, %v2070, %v2066
    %v2072 = vmul.f32 %v2048, %v2071
    %v2073 = vrcp.pop %v2057
    %v2074 = vmul.f32 %v2057, %v2073
    %v2075 = vsub.f32 1.0, %v2074
    %v2076 = vmul.f32 %v2073, %v2075
    %v2077 = vadd.f32 %v2073, %v2076
    %vm2078 = vweird.f32 %v2057
    %vm2079 = vweird.f32 %v2073
    %vm2080 = vmor %vm2078, %vm2079
    %v2081 = vsel %vm2080, %v2073, %v2077
    %v2082 = vand.u32 2147483647, %v2057
    %vm2083 = vcmp.eq.f32.partialorder %v2082, 8.507059e+37
    %v2084 = vand.u32 %v2057, 2147483648
    %v2085 = vor.u32 1.1754944e-38, %v2084
    %v2086 = vsel %vm2083, %v2085, %v2081
    %v2087 = vmul.f32 %v2049, %v2086
    %vm2088 = vcmp.ge.f32.partialorder %v2048, -2.2
    %vm2089 = vcmp.ge.f32.partialorder %v2049, -2.2
    %vm2090 = vcmp.lt.f32.partialorder %v2048, -1.8
    %vm2091 = vcmp.lt.f32.partialorder %v2049, -1.8
    %vm2092 = vmand %vm2088, %vm2090
    %vm2093 = vmand %vm2089, %vm2091
    %v2094 = vsel %vm2092, 1, 0
    %v2095 = vsel %vm2093, 1, 0
    %v2096 = vcvt.s32.f32 %v2094
    %v2097 = vcvt.s32.f32 %v2095
    %vm2098 = vcmp.ge.f32.partialorder %v2048, -1.8
    %vm2099 = vcmp.ge.f32.partialorder %v2049, -1.8
    %vm2100 = vcmp.lt.f32.partialorder %v2048, -1.4
    %vm2101 = vcmp.lt.f32.partialorder %v2049, -1.4
    %vm2102 = vmand %vm2098, %vm2100
    %vm2103 = vmand %vm2099, %vm2101
    %v2104 = vsel %vm2102, 1, 0
    %v2105 = vsel %vm2103, 1, 0
    %v2106 = vcvt.s32.f32 %v2104
    %v2107 = vcvt.s32.f32 %v2105
    %vm2108 = vcmp.ge.f32.partialorder %v2048, -1.4
    %vm2109 = vcmp.ge.f32.partialorder %v2049, -1.4
    %vm2110 = vcmp.lt.f32.partialorder %v2048, -1.0
    %vm2111 = vcmp.lt.f32.partialorder %v2049, -1.0
    %vm2112 = vmand %vm2108, %vm2110
    %vm2113 = vmand %vm2109, %vm2111
    %v2114 = vsel %vm2112, 1, 0
    %v2115 = vsel %vm2113, 1, 0
    %v2116 = vcvt.s32.f32 %v2114
    %v2117 = vcvt.s32.f32 %v2115
    %vm2118 = vcmp.ge.f32.partialorder %v2048, -1.0
    %vm2119 = vcmp.ge.f32.partialorder %v2049, -1.0
    %vm2120 = vcmp.lt.f32.partialorder %v2048, -0.6
    %vm2121 = vcmp.lt.f32.partialorder %v2049, -0.6
    %vm2122 = vmand %vm2118, %vm2120
    %vm2123 = vmand %vm2119, %vm2121
    %v2124 = vsel %vm2122, 1, 0
    %v2125 = vsel %vm2123, 1, 0
    %v2126 = vcvt.s32.f32 %v2124
    %v2127 = vcvt.s32.f32 %v2125
    %vm2128 = vcmp.ge.f32.partialorder %v2048, -0.6
    %vm2129 = vcmp.ge.f32.partialorder %v2049, -0.6
    %vm2130 = vcmp.lt.f32.partialorder %v2048, -0.2
    %vm2131 = vcmp.lt.f32.partialorder %v2049, -0.2
    %vm2132 = vmand %vm2128, %vm2130
    %vm2133 = vmand %vm2129, %vm2131
    %v2134 = vsel %vm2132, 1, 0
    %v2135 = vsel %vm2133, 1, 0
    %v2136 = vcvt.s32.f32 %v2134
    %v2137 = vcvt.s32.f32 %v2135
    %vm2138 = vcmp.ge.f32.partialorder %v2048, -0.2
    %vm2139 = vcmp.ge.f32.partialorder %v2049, -0.2
    %vm2140 = vcmp.lt.f32.partialorder %v2048, 0.2
    %vm2141 = vcmp.lt.f32.partialorder %v2049, 0.2
    %vm2142 = vmand %vm2138, %vm2140
    %vm2143 = vmand %vm2139, %vm2141
    %v2144 = vsel %vm2142, 1, 0
    %v2145 = vsel %vm2143, 1, 0
    %v2146 = vcvt.s32.f32 %v2144
    %v2147 = vcvt.s32.f32 %v2145
    %vm2148 = vcmp.ge.f32.partialorder %v2048, 0.2
    %vm2149 = vcmp.ge.f32.partialorder %v2049, 0.2
    %vm2150 = vcmp.lt.f32.partialorder %v2048, 0.6
    %vm2151 = vcmp.lt.f32.partialorder %v2049, 0.6
    %vm2152 = vmand %vm2148, %vm2150
    %vm2153 = vmand %vm2149, %vm2151
    %v2154 = vsel %vm2152, 1, 0
    %v2155 = vsel %vm2153, 1, 0
    %v2156 = vcvt.s32.f32 %v2154
    %v2157 = vcvt.s32.f32 %v2155
    %vm2158 = vcmp.ge.f32.partialorder %v2048, 0.6
    %vm2159 = vcmp.ge.f32.partialorder %v2049, 0.6
    %vm2160 = vcmp.lt.f32.partialorder %v2048, 1.0
    %vm2161 = vcmp.lt.f32.partialorder %v2049, 1.0
    %vm2162 = vmand %vm2158, %vm2160
    %vm2163 = vmand %vm2159, %vm2161
    %v2164 = vsel %vm2162, 1, 0
    %v2165 = vsel %vm2163, 1, 0
    %v2166 = vcvt.s32.f32 %v2164
    %v2167 = vcvt.s32.f32 %v2165
    %vm2168 = vcmp.ge.f32.partialorder %v2048, 1.0
    %vm2169 = vcmp.ge.f32.partialorder %v2049, 1.0
    %vm2170 = vcmp.lt.f32.partialorder %v2048, 1.4
    %vm2171 = vcmp.lt.f32.partialorder %v2049, 1.4
    %vm2172 = vmand %vm2168, %vm2170
    %vm2173 = vmand %vm2169, %vm2171
    %v2174 = vsel %vm2172, 1, 0
    %v2175 = vsel %vm2173, 1, 0
    %v2176 = vcvt.s32.f32 %v2174
    %v2177 = vcvt.s32.f32 %v2175
    %vm2178 = vcmp.ge.f32.partialorder %v2048, 1.4
    %vm2179 = vcmp.ge.f32.partialorder %v2049, 1.4
    %vm2180 = vcmp.lt.f32.partialorder %v2048, 1.8
    %vm2181 = vcmp.lt.f32.partialorder %v2049, 1.8
    %vm2182 = vmand %vm2178, %vm2180
    %vm2183 = vmand %vm2179, %vm2181
    %v2184 = vsel %vm2182, 1, 0
    %v2185 = vsel %vm2183, 1, 0
    %v2186 = vcvt.s32.f32 %v2184
    %v2187 = vcvt.s32.f32 %v2185
    %vm2188 = vcmp.ge.f32.partialorder %v2048, 1.8
    %vm2189 = vcmp.ge.f32.partialorder %v2049, 1.8
    %vm2190 = vcmp.lt.f32.partialorder %v2048, 2.2
    %vm2191 = vcmp.lt.f32.partialorder %v2049, 2.2
    %vm2192 = vmand %vm2188, %vm2190
    %vm2193 = vmand %vm2189, %vm2191
    %v2194 = vsel %vm2192, 1, 0
    %v2195 = vsel %vm2193, 1, 0
    %v2196 = vcvt.s32.f32 %v2194
    %v2197 = vcvt.s32.f32 %v2195
    %v2198 = vsub.f32 %v2048, -2.2
    %v2199 = vsub.f32 %v2049, -2.2
    %v2200 = vmul.f32 %v2198, 2.5
    %v2201 = vmul.f32 %v2199, 2.5
    %v2202 = vsub.f32 %v2048, -1.8
    %v2203 = vsub.f32 %v2049, -1.8
    %v2204 = vmul.f32 %v2202, 2.5
    %v2205 = vmul.f32 %v2203, 2.5
    %v2206 = vsub.f32 %v2048, -1.4
    %v2207 = vsub.f32 %v2049, -1.4
    %v2208 = vmul.f32 %v2206, 2.5
    %v2209 = vmul.f32 %v2207, 2.5
    %v2210 = vsub.f32 %v2048, -1.0
    %v2211 = vsub.f32 %v2049, -1.0
    %v2212 = vmul.f32 %v2210, 2.5
    %v2213 = vmul.f32 %v2211, 2.5
    %v2214 = vsub.f32 %v2048, -0.6
    %v2215 = vsub.f32 %v2049, -0.6
    %v2216 = vmul.f32 %v2214, 2.5
    %v2217 = vmul.f32 %v2215, 2.5
    %v2218 = vsub.f32 %v2048, -0.2
    %v2219 = vsub.f32 %v2049, -0.2
    %v2220 = vmul.f32 %v2218, 2.5
    %v2221 = vmul.f32 %v2219, 2.5
    %v2222 = vsub.f32 %v2048, 0.2
    %v2223 = vsub.f32 %v2049, 0.2
    %v2224 = vmul.f32 %v2222, 2.5
    %v2225 = vmul.f32 %v2223, 2.5
    %v2226 = vsub.f32 %v2048, 0.6
    %v2227 = vsub.f32 %v2049, 0.6
    %v2228 = vmul.f32 %v2226, 2.5
    %v2229 = vmul.f32 %v2227, 2.5
    %v2230 = vsub.f32 %v2048, 1.0
    %v2231 = vsub.f32 %v2049, 1.0
    %v2232 = vmul.f32 %v2230, 2.5
    %v2233 = vmul.f32 %v2231, 2.5
    %v2234 = vsub.f32 %v2048, 1.4
    %v2235 = vsub.f32 %v2049, 1.4
    %v2236 = vmul.f32 %v2234, 2.5
    %v2237 = vmul.f32 %v2235, 2.5
    %v2238 = vsub.f32 %v2048, 1.8
    %v2239 = vsub.f32 %v2049, 1.8
    %v2240 = vmul.f32 %v2238, 2.5
    %v2241 = vmul.f32 %v2239, 2.5
    %v2242 = vmul.f32 %v2200, %v2096
    %v2243 = vmul.f32 %v2201, %v2097
    %v2244 = vadd.f32 %v2242, %v2106
    %v2245 = vadd.f32 %v2243, %v2107
    %v2246 = vmul.f32 %v2204, %v2106
    %v2247 = vmul.f32 %v2205, %v2107
    %v2248 = vsub.f32 %v2244, %v2246
    %v2249 = vsub.f32 %v2245, %v2247
    %v2250 = vadd.f32 %v2246, %v2116
    %v2251 = vadd.f32 %v2247, %v2117
    %v2252 = vmul.f32 %v2208, %v2116
    %v2253 = vmul.f32 %v2209, %v2117
    %v2254 = vsub.f32 %v2250, %v2252
    %v2255 = vsub.f32 %v2251, %v2253
    %v2256 = vadd.f32 %v2252, %v2126
    %v2257 = vadd.f32 %v2253, %v2127
    %v2258 = vmul.f32 %v2212, %v2126
    %v2259 = vmul.f32 %v2213, %v2127
    %v2260 = vsub.f32 %v2256, %v2258
    %v2261 = vsub.f32 %v2257, %v2259
    %v2262 = vadd.f32 %v2258, %v2136
    %v2263 = vadd.f32 %v2259, %v2137
    %v2264 = vmul.f32 %v2216, %v2136
    %v2265 = vmul.f32 %v2217, %v2137
    %v2266 = vsub.f32 %v2262, %v2264
    %v2267 = vsub.f32 %v2263, %v2265
    %v2268 = vadd.f32 %v2264, %v2146
    %v2269 = vadd.f32 %v2265, %v2147
    %v2270 = vmul.f32 %v2220, %v2146
    %v2271 = vmul.f32 %v2221, %v2147
    %v2272 = vsub.f32 %v2268, %v2270
    %v2273 = vsub.f32 %v2269, %v2271
    %v2274 = vadd.f32 %v2270, %v2156
    %v2275 = vadd.f32 %v2271, %v2157
    %v2276 = vmul.f32 %v2224, %v2156
    %v2277 = vmul.f32 %v2225, %v2157
    %v2278 = vsub.f32 %v2274, %v2276
    %v2279 = vsub.f32 %v2275, %v2277
    %v2280 = vadd.f32 %v2276, %v2166
    %v2281 = vadd.f32 %v2277, %v2167
    %v2282 = vmul.f32 %v2228, %v2166
    %v2283 = vmul.f32 %v2229, %v2167
    %v2284 = vsub.f32 %v2280, %v2282
    %v2285 = vsub.f32 %v2281, %v2283
    %v2286 = vadd.f32 %v2282, %v2176
    %v2287 = vadd.f32 %v2283, %v2177
    %v2288 = vmul.f32 %v2232, %v2176
    %v2289 = vmul.f32 %v2233, %v2177
    %v2290 = vsub.f32 %v2286, %v2288
    %v2291 = vsub.f32 %v2287, %v2289
    %v2292 = vadd.f32 %v2288, %v2186
    %v2293 = vadd.f32 %v2289, %v2187
    %v2294 = vmul.f32 %v2236, %v2186
    %v2295 = vmul.f32 %v2237, %v2187
    %v2296 = vsub.f32 %v2292, %v2294
    %v2297 = vsub.f32 %v2293, %v2295
    %v2298 = vadd.f32 %v2294, %v2196
    %v2299 = vadd.f32 %v2295, %v2197
    %v2300 = vmul.f32 %v2240, %v2196
    %v2301 = vmul.f32 %v2241, %v2197
    %v2302 = vsub.f32 %v2298, %v2300
    %v2303 = vsub.f32 %v2299, %v2301
    %v2304 = vmul.f32 %v2198, 1.25
    %v2305 = vmul.f32 %v2199, 1.25
    %v2306 = vmul.f32 %v2202, 1.25
    %v2307 = vmul.f32 %v2203, 1.25
    %v2308 = vmul.f32 %v2206, 1.25
    %v2309 = vmul.f32 %v2207, 1.25
    %v2310 = vmul.f32 %v2210, 1.25
    %v2311 = vmul.f32 %v2211, 1.25
    %v2312 = vmul.f32 %v2214, 1.25
    %v2313 = vmul.f32 %v2215, 1.25
    %v2314 = vmul.f32 %v2218, 1.25
    %v2315 = vmul.f32 %v2219, 1.25
    %v2316 = vmul.f32 %v2222, 1.25
    %v2317 = vmul.f32 %v2223, 1.25
    %v2318 = vmul.f32 %v2226, 1.25
    %v2319 = vmul.f32 %v2227, 1.25
    %v2320 = vmul.f32 %v2230, 1.25
    %v2321 = vmul.f32 %v2231, 1.25
    %v2322 = vmul.f32 %v2234, 1.25
    %v2323 = vmul.f32 %v2235, 1.25
    %v2324 = vmul.f32 %v2304, %v2248
    %v2325 = vmul.f32 %v2305, %v2249
    %v2326 = vadd.f32 %v2324, %v2254
    %v2327 = vadd.f32 %v2325, %v2255
    %v2328 = vmul.f32 %v2306, %v2254
    %v2329 = vmul.f32 %v2307, %v2255
    %v2330 = vsub.f32 %v2326, %v2328
    %v2331 = vsub.f32 %v2327, %v2329
    %v2332 = vadd.f32 %v2328, %v2260
    %v2333 = vadd.f32 %v2329, %v2261
    %v2334 = vmul.f32 %v2308, %v2260
    %v2335 = vmul.f32 %v2309, %v2261
    %v2336 = vsub.f32 %v2332, %v2334
    %v2337 = vsub.f32 %v2333, %v2335
    %v2338 = vadd.f32 %v2334, %v2266
    %v2339 = vadd.f32 %v2335, %v2267
    %v2340 = vmul.f32 %v2310, %v2266
    %v2341 = vmul.f32 %v2311, %v2267
    %v2342 = vsub.f32 %v2338, %v2340
    %v2343 = vsub.f32 %v2339, %v2341
    %v2344 = vadd.f32 %v2340, %v2272
    %v2345 = vadd.f32 %v2341, %v2273
    %v2346 = vmul.f32 %v2312, %v2272
    %v2347 = vmul.f32 %v2313, %v2273
    %v2348 = vsub.f32 %v2344, %v2346
    %v2349 = vsub.f32 %v2345, %v2347
    %v2350 = vadd.f32 %v2346, %v2278
    %v2351 = vadd.f32 %v2347, %v2279
    %v2352 = vmul.f32 %v2314, %v2278
    %v2353 = vmul.f32 %v2315, %v2279
    %v2354 = vsub.f32 %v2350, %v2352
    %v2355 = vsub.f32 %v2351, %v2353
    %v2356 = vadd.f32 %v2352, %v2284
    %v2357 = vadd.f32 %v2353, %v2285
    %v2358 = vmul.f32 %v2316, %v2284
    %v2359 = vmul.f32 %v2317, %v2285
    %v2360 = vsub.f32 %v2356, %v2358
    %v2361 = vsub.f32 %v2357, %v2359
    %v2362 = vadd.f32 %v2358, %v2290
    %v2363 = vadd.f32 %v2359, %v2291
    %v2364 = vmul.f32 %v2318, %v2290
    %v2365 = vmul.f32 %v2319, %v2291
    %v2366 = vsub.f32 %v2362, %v2364
    %v2367 = vsub.f32 %v2363, %v2365
    %v2368 = vadd.f32 %v2364, %v2296
    %v2369 = vadd.f32 %v2365, %v2297
    %v2370 = vmul.f32 %v2320, %v2296
    %v2371 = vmul.f32 %v2321, %v2297
    %v2372 = vsub.f32 %v2368, %v2370
    %v2373 = vsub.f32 %v2369, %v2371
    %v2374 = vadd.f32 %v2370, %v2302
    %v2375 = vadd.f32 %v2371, %v2303
    %v2376 = vmul.f32 %v2322, %v2302
    %v2377 = vmul.f32 %v2323, %v2303
    %v2378 = vsub.f32 %v2374, %v2376
    %v2379 = vsub.f32 %v2375, %v2377
    %v2380 = vmul.f32 %v2198, 0.8333333
    %v2381 = vmul.f32 %v2199, 0.8333333
    %v2382 = vmul.f32 %v2202, 0.8333333
    %v2383 = vmul.f32 %v2203, 0.8333333
    %v2384 = vmul.f32 %v2206, 0.8333333
    %v2385 = vmul.f32 %v2207, 0.8333333
    %v2386 = vmul.f32 %v2210, 0.8333333
    %v2387 = vmul.f32 %v2211, 0.8333333
    %v2388 = vmul.f32 %v2214, 0.8333333
    %v2389 = vmul.f32 %v2215, 0.8333333
    %v2390 = vmul.f32 %v2218, 0.8333333
    %v2391 = vmul.f32 %v2219, 0.8333333
    %v2392 = vmul.f32 %v2222, 0.8333333
    %v2393 = vmul.f32 %v2223, 0.8333333
    %v2394 = vmul.f32 %v2226, 0.8333333
    %v2395 = vmul.f32 %v2227, 0.8333333
    %v2396 = vmul.f32 %v2230, 0.8333333
    %v2397 = vmul.f32 %v2231, 0.8333333
    %v2398 = vmul.f32 %v2380, %v2330
    %v2399 = vmul.f32 %v2381, %v2331
    %v2400 = vadd.f32 %v2398, %v2336
    %v2401 = vadd.f32 %v2399, %v2337
    %v2402 = vmul.f32 %v2382, %v2336
    %v2403 = vmul.f32 %v2383, %v2337
    %v2404 = vsub.f32 %v2400, %v2402
    %v2405 = vsub.f32 %v2401, %v2403
    %v2406 = vadd.f32 %v2402, %v2342
    %v2407 = vadd.f32 %v2403, %v2343
    %v2408 = vmul.f32 %v2384, %v2342
    %v2409 = vmul.f32 %v2385, %v2343
    %v2410 = vsub.f32 %v2406, %v2408
    %v2411 = vsub.f32 %v2407, %v2409
    %v2412 = vadd.f32 %v2408, %v2348
    %v2413 = vadd.f32 %v2409, %v2349
    %v2414 = vmul.f32 %v2386, %v2348
    %v2415 = vmul.f32 %v2387, %v2349
    %v2416 = vsub.f32 %v2412, %v2414
    %v2417 = vsub.f32 %v2413, %v2415
    %v2418 = vadd.f32 %v2414, %v2354
    %v2419 = vadd.f32 %v2415, %v2355
    %v2420 = vmul.f32 %v2388, %v2354
    %v2421 = vmul.f32 %v2389, %v2355
    %v2422 = vsub.f32 %v2418, %v2420
    %v2423 = vsub.f32 %v2419, %v2421
    %v2424 = vadd.f32 %v2420, %v2360
    %v2425 = vadd.f32 %v2421, %v2361
    %v2426 = vmul.f32 %v2390, %v2360
    %v2427 = vmul.f32 %v2391, %v2361
    %v2428 = vsub.f32 %v2424, %v2426
    %v2429 = vsub.f32 %v2425, %v2427
    %v2430 = vadd.f32 %v2426, %v2366
    %v2431 = vadd.f32 %v2427, %v2367
    %v2432 = vmul.f32 %v2392, %v2366
    %v2433 = vmul.f32 %v2393, %v2367
    %v2434 = vsub.f32 %v2430, %v2432
    %v2435 = vsub.f32 %v2431, %v2433
    %v2436 = vadd.f32 %v2432, %v2372
    %v2437 = vadd.f32 %v2433, %v2373
    %v2438 = vmul.f32 %v2394, %v2372
    %v2439 = vmul.f32 %v2395, %v2373
    %v2440 = vsub.f32 %v2436, %v2438
    %v2441 = vsub.f32 %v2437, %v2439
    %v2442 = vadd.f32 %v2438, %v2378
    %v2443 = vadd.f32 %v2439, %v2379
    %v2444 = vmul.f32 %v2396, %v2378
    %v2445 = vmul.f32 %v2397, %v2379
    %v2446 = vsub.f32 %v2442, %v2444
    %v2447 = vsub.f32 %v2443, %v2445
    %v2448 = vpack.c.bf16 %v2072, %v2072
    %v2449 = vpack.c.bf16 %v2087, %v2087
    %v2450 = vpack.c.bf16 %v2404, %v2404
    %v2451 = vpack.c.bf16 %v2405, %v2405
    %v2452 = vpack.c.bf16 %v2410, %v2410
    %v2453 = vpack.c.bf16 %v2411, %v2411
    %v2454 = vpack.c.bf16 %v2416, %v2416
    %v2455 = vpack.c.bf16 %v2417, %v2417
    %v2456 = vpack.c.bf16 %v2422, %v2422
    %v2457 = vpack.c.bf16 %v2423, %v2423
    %v2458 = vpack.c.bf16 %v2428, %v2428
    %v2459 = vpack.c.bf16 %v2429, %v2429
    %v2460 = vpack.c.bf16 %v2434, %v2434
    %v2461 = vpack.c.bf16 %v2435, %v2435
    %v2462 = vpack.c.bf16 %v2440, %v2440
    %v2463 = vpack.c.bf16 %v2441, %v2441
    %v2464 = vpack.c.bf16 %v2446, %v2446
    %v2465 = vpack.c.bf16 %v2447, %v2447
    %v2468 = vunpack.c.l.b16 %v2448
    %v2469 = vunpack.c.l.b16 %v2449
    %v2470 = vpack.c.b16 %v2469, %v2468
    %v2473 = vunpack.c.l.b16 %v2450
    %v2474 = vunpack.c.l.b16 %v2451
    %v2475 = vpack.c.b16 %v2474, %v2473
    %2476 = vrot.lane.b32.xlu0 %v2475, 32
    %v2477 = vpop.permute.xlu0 %2476
    %v2480 = vunpack.c.l.b16 %v2452
    %v2481 = vunpack.c.l.b16 %v2453
    %v2482 = vpack.c.b16 %v2481, %v2480
    %2483 = vrot.lane.b32.xlu0 %v2482, 64
    %v2484 = vpop.permute.xlu0 %2483
    %v2487 = vunpack.c.l.b16 %v2454
    %v2488 = vunpack.c.l.b16 %v2455
    %v2489 = vpack.c.b16 %v2488, %v2487
    %2490 = vrot.lane.b32.xlu0 %v2489, 96
    %v2491 = vpop.permute.xlu0 %2490
    %v2494 = vunpack.c.l.b16 %v2456
    %v2495 = vunpack.c.l.b16 %v2457
    %v2496 = vpack.c.b16 %v2495, %v2494
    %v2499 = vunpack.c.l.b16 %v2458
    %v2500 = vunpack.c.l.b16 %v2459
    %v2501 = vpack.c.b16 %v2500, %v2499
    %2502 = vrot.lane.b32.xlu0 %v2501, 32
    %v2503 = vpop.permute.xlu0 %2502
    %v2506 = vunpack.c.l.b16 %v2460
    %v2507 = vunpack.c.l.b16 %v2461
    %v2508 = vpack.c.b16 %v2507, %v2506
    %2509 = vrot.lane.b32.xlu0 %v2508, 64
    %v2510 = vpop.permute.xlu0 %2509
    %v2513 = vunpack.c.l.b16 %v2462
    %v2514 = vunpack.c.l.b16 %v2463
    %v2515 = vpack.c.b16 %v2514, %v2513
    %2516 = vrot.lane.b32.xlu0 %v2515, 96
    %v2517 = vpop.permute.xlu0 %2516
    %v2520 = vunpack.c.l.b16 %v2464
    %v2521 = vunpack.c.l.b16 %v2465
    %v2522 = vpack.c.b16 %v2521, %v2520
    %v2525 = vsel %vm54, %v2470, %v2477
    %v2527 = vsel %vm1059, %v2525, %v2484
    %v2529 = vsel %vm1062, %v2527, %v2491
    %v2533 = vsel %vm54, %v2496, %v2503
    %v2535 = vsel %vm1059, %v2533, %v2510
    %v2537 = vsel %vm1062, %v2535, %v2517
    %s2539 = scalar_lea.vmem %s5, 288
    %v2540 = vld [vmem:[%s2539] sm:$0xf]
    %v2541 = vld [vmem:[%s2539 + $0x4] sm:$0xf]
    %v2542 = vld [vmem:[%s2539 + $0x8] sm:$0xf]
    %v2543 = vld [vmem:[%s2539 + $0xc] sm:$0xf]
    %v2544 = vld [vmem:[%s2539 + $0x10] sm:$0xf]
    %v2545 = vld [vmem:[%s2539 + $0x14] sm:$0xf]
    %v2546 = vld [vmem:[%s2539 + $0x18] sm:$0xf]
    %v2547 = vld [vmem:[%s2539 + $0x1c] sm:$0xf]
    %v2548 = vld [vmem:[%s2539 + $0x20] sm:$0xf]
    %v2549 = vld [vmem:[%s2539 + $0x24] sm:$0xf]
    %v2550 = vld [vmem:[%s2539 + $0x28] sm:$0xf]
    %v2551 = vld [vmem:[%s2539 + $0x2c] sm:$0xf]
    %v2552 = vld [vmem:[%s2539 + $0x30] sm:$0xf]
    %v2553 = vld [vmem:[%s2539 + $0x34] sm:$0xf]
    %v2554 = vld [vmem:[%s2539 + $0x38] sm:$0xf]
    %v2555 = vld [vmem:[%s2539 + $0x3c] sm:$0xf]
    %v2556 = vld [vmem:[%s2539 + $0x40] sm:$0xf]
    %v2557 = vld [vmem:[%s2539 + $0x44] sm:$0xf]
    %v2558 = vld [vmem:[%s2539 + $0x48] sm:$0xf]
    %v2559 = vld [vmem:[%s2539 + $0x4c] sm:$0xf]
    %v2560 = vld [vmem:[%s2539 + $0x50] sm:$0xf]
    %v2561 = vld [vmem:[%s2539 + $0x54] sm:$0xf]
    %v2562 = vld [vmem:[%s2539 + $0x58] sm:$0xf]
    %v2563 = vld [vmem:[%s2539 + $0x5c] sm:$0xf]
    %v2564 = vld [vmem:[%s2539 + $0x60] sm:$0xf]
    %v2565 = vld [vmem:[%s2539 + $0x64] sm:$0xf]
    %v2566 = vld [vmem:[%s2539 + $0x68] sm:$0xf]
    %v2567 = vld [vmem:[%s2539 + $0x6c] sm:$0xf]
    %v2568 = vld [vmem:[%s2539 + $0x70] sm:$0xf]
    %v2569 = vld [vmem:[%s2539 + $0x74] sm:$0xf]
    %v2570 = vld [vmem:[%s2539 + $0x78] sm:$0xf]
    %v2571 = vld [vmem:[%s2539 + $0x7c] sm:$0xf]
    %v2572 = vld [vmem:[%s2539 + $0x80] sm:$0xf]
    %v2573 = vld [vmem:[%s2539 + $0x84] sm:$0xf]
    %v2574 = vld [vmem:[%s2539 + $0x88] sm:$0xf]
    %v2575 = vld [vmem:[%s2539 + $0x8c] sm:$0xf]
    %v2612 = vunpack.c.l.b16 %v2540
    %v2613 = vunpack.c.l.b16 %v2541
    %v2614 = vunpack.c.l.b16 %v2542
    %v2615 = vunpack.c.l.b16 %v2543
    %v2616 = vunpack.c.l.b16 %v2544
    %v2617 = vunpack.c.l.b16 %v2545
    %v2618 = vunpack.c.l.b16 %v2546
    %v2619 = vunpack.c.l.b16 %v2547
    %v2620 = vunpack.c.l.b16 %v2548
    %v2621 = vunpack.c.l.b16 %v2549
    %v2622 = vunpack.c.l.b16 %v2550
    %v2623 = vunpack.c.l.b16 %v2551
    %v2624 = vunpack.c.l.b16 %v2552
    %v2625 = vunpack.c.l.b16 %v2553
    %v2626 = vunpack.c.l.b16 %v2554
    %v2627 = vunpack.c.l.b16 %v2555
    %v2628 = vunpack.c.l.b16 %v2556
    %v2629 = vunpack.c.l.b16 %v2557
    %v2630 = vunpack.c.l.b16 %v2558
    %v2631 = vunpack.c.l.b16 %v2559
    %v2632 = vunpack.c.l.b16 %v2560
    %v2633 = vunpack.c.l.b16 %v2561
    %v2634 = vunpack.c.l.b16 %v2562
    %v2635 = vunpack.c.l.b16 %v2563
    %v2636 = vunpack.c.l.b16 %v2564
    %v2637 = vunpack.c.l.b16 %v2565
    %v2638 = vunpack.c.l.b16 %v2566
    %v2639 = vunpack.c.l.b16 %v2567
    %v2640 = vunpack.c.l.b16 %v2568
    %v2641 = vunpack.c.l.b16 %v2569
    %v2642 = vunpack.c.l.b16 %v2570
    %v2643 = vunpack.c.l.b16 %v2571
    %v2644 = vunpack.c.l.b16 %v2572
    %v2645 = vunpack.c.l.b16 %v2573
    %v2646 = vunpack.c.l.b16 %v2574
    %v2647 = vunpack.c.l.b16 %v2575
    %v2648 = vpack.c.b16 %v2613, %v2612
    %v2649 = vpack.c.b16 %v2615, %v2614
    %v2650 = vpack.c.b16 %v2617, %v2616
    %v2651 = vpack.c.b16 %v2619, %v2618
    %v2652 = vpack.c.b16 %v2621, %v2620
    %v2653 = vpack.c.b16 %v2623, %v2622
    %v2654 = vpack.c.b16 %v2625, %v2624
    %v2655 = vpack.c.b16 %v2627, %v2626
    %v2656 = vpack.c.b16 %v2629, %v2628
    %v2657 = vpack.c.b16 %v2631, %v2630
    %v2658 = vpack.c.b16 %v2633, %v2632
    %v2659 = vpack.c.b16 %v2635, %v2634
    %v2660 = vpack.c.b16 %v2637, %v2636
    %v2661 = vpack.c.b16 %v2639, %v2638
    %v2662 = vpack.c.b16 %v2641, %v2640
    %v2663 = vpack.c.b16 %v2643, %v2642
    %v2664 = vpack.c.b16 %v2645, %v2644
    %v2665 = vpack.c.b16 %v2647, %v2646
    %v2685 = vsel %vm54, %v2522, 0
    %2687 = vmatpush.bf16.msra.mxu0 %v2655
    %2688 = vmatpush.bf16.msra.mxu0 %v2654
    %2689 = vmatpush.bf16.msra.mxu0 %v2653
    %2690 = vmatpush.bf16.msra.mxu0 %v2652
    %2691 = vmatpush.bf16.msra.mxu0 %v2651
    %2692 = vmatpush.bf16.msra.mxu0 %v2650
    %2693 = vmatpush.bf16.msra.mxu0 %v2649
    %2694 = vmatpush.bf16.msra.mxu0 %v2648
    %2695 = vmatmul.bf16.gmra.mxu0 %v2529
    %v2696 = vpop.f32.mrf.mxu0
    %v2697 = vadd.f32 0.0, %v2696
    %v2698 = vpop.f32.mrf.mxu0
    %v2699 = vadd.f32 0.0, %v2698
    %2700 = vdwg.mxu0
    %2701 = vmatpush.bf16.msra.mxu0 %v2663
    %2702 = vmatpush.bf16.msra.mxu0 %v2662
    %2703 = vmatpush.bf16.msra.mxu0 %v2661
    %2704 = vmatpush.bf16.msra.mxu0 %v2660
    %2705 = vmatpush.bf16.msra.mxu0 %v2659
    %2706 = vmatpush.bf16.msra.mxu0 %v2658
    %2707 = vmatpush.bf16.msra.mxu0 %v2657
    %2708 = vmatpush.bf16.msra.mxu0 %v2656
    %2709 = vmatmul.bf16.gmra.mxu0 %v2537
    %v2710 = vpop.f32.mrf.mxu0
    %v2711 = vadd.f32 %v2697, %v2710
    %v2712 = vpop.f32.mrf.mxu0
    %v2713 = vadd.f32 %v2699, %v2712
    %2714 = vdwg.mxu0
    %2715 = vmatpush.bf16.msra.mxu0 0
    %2716 = vmatpush.bf16.msra.mxu0 0
    %2717 = vmatpush.bf16.msra.mxu0 0
    %2718 = vmatpush.bf16.msra.mxu0 0
    %2719 = vmatpush.bf16.msra.mxu0 0
    %2720 = vmatpush.bf16.msra.mxu0 0
    %2721 = vmatpush.bf16.msra.mxu0 %v2665
    %2722 = vmatpush.bf16.msra.mxu0 %v2664
    %2723 = vmatmul.bf16.gmra.mxu0 %v2685
    %v2724 = vpop.f32.mrf.mxu0
    %v2725 = vadd.f32 %v2711, %v2724
    %v2726 = vpop.f32.mrf.mxu0
    %v2727 = vadd.f32 %v2713, %v2726
    %2728 = vdwg.mxu0
    %v2729 = vadd.f32 %v1992, %v2725
    %v2730 = vadd.f32 %v1994, %v2727
    %2731 = vst.msk [vmem:[#allocation2] sm:$0xff] %vm54, %v2729
    %2732 = vst.msk [vmem:[#allocation2 + $0x8] sm:$0xff] %vm54, %v2730
    // Predicated region
    $region26: #{tpu_custom_call.1} parent=1 // pred_check
      _
    $region27: #{tpu_custom_call.1} parent=1 // pred_check_branch
      %2734 = sbr.rel (0) target = $region29
    $region28: #{tpu_custom_call.1} parent=1 // pred_region
      %2736 = vsyncadd [#allocation3], 0
      %s2737 = sshll.u32 [#allocation2], 4
      %s2738 = int_to_ptr.vmem [resolvable:$true] %s2737
      %s2739 = sshll.u32 %s6, 4
      %s2740 = int_to_ptr.hbm [resolvable:$true] %s2739
      %2745 = dma.vmem_to_hbm [thread:$0]  %s2738, 256, %s2740, [#allocation3], 128, 128, 8
    $region29: #{tpu_custom_call.1} parent=1 // pred_fallthru
      _
    // Predicated region
    $region30: #{tpu_custom_call.1} parent=1 // pred_check
      _
    $region31: #{tpu_custom_call.1} parent=1 // pred_check_branch
      %2747 = sbr.rel (0) target = $region33
    $region32: #{tpu_custom_call.1} parent=1 // pred_region
      %2749 = dma.done [#allocation3], 256
    $region33: #{tpu_custom_call.1} parent=1 // pred_fallthru
      _
    %2750 = vsyncpa [#allocation3], 1

</llo_original>
